<compile_context>
chip_gen: v7x
topology: tpu7x:2x2x1
jax: 0.10.0
libtpu: 0.0.40
codegen_flags: <defaults>
</compile_context>

<pallas_src>
import jax
import jax.numpy as jnp
from jax import lax
from jax.experimental import pallas as pl
from jax.experimental.pallas import tpu as pltpu


# ---------------------------------------------------------------------------
# Pallas kernel: full GRU stack over time + final FC + tanh in one invocation.
# Everything fits comfortably in VMEM at these shapes, so we use whole-array
# blocks (no grid) and fully unroll the (static) time loop in the kernel.
# ---------------------------------------------------------------------------
def gru_fc_kernel(x_ref, wi0_ref, wir_ref, wh_ref, bi_ref, bhn_ref,
                  fcw_ref, fcb_ref, out_ref, gi0_ref):
    # x_ref   : (T*B, D)        bf16, time-major rows (row = t*B + b)
    # wi0_ref : (D, 3H)         bf16, layer-0 input weights, gates fused [r|z|n]
    # wir_ref : (L-1, H, 3H)    bf16, input weights of layers 1..L-1
    # wh_ref  : (L, H, 3H)      bf16, hidden weights
    # bi_ref  : (L, 1, 3H)      f32, fused input bias (r/z parts include hh bias)
    # bhn_ref : (L, 1, H)       f32, hidden bias of the n gate (stays inside r*())
    # fcw_ref : (H, O) f32, fcb_ref : (1, O) f32
    # gi0_ref : (T*B, 3H) f32 VMEM scratch for the hoisted layer-0 projection
    B = out_ref.shape[0]
    TB = x_ref.shape[0]
    T = TB // B
    L, H, H3 = wh_ref.shape
    H2 = 2 * H

    # ---- Prologue: hoisted layer-0 input projection (one big-M MXU matmul) ----
    gi0_ref[...] = (
        jnp.dot(x_ref[...], wi0_ref[...], preferred_element_type=jnp.float32)
        + bi_ref[0]
    )

    def gru_cell(gi, gh, bhn_l, h_prev):
        # one sigmoid over the (B, 2H) r|z slab (single EUP push)
        rz = jax.nn.sigmoid(gi[:, :H2] + gh[:, :H2])
        r = rz[:, :H]
        z = rz[:, H:]
        n = jnp.tanh(gi[:, H2:] + r * (gh[:, H2:] + bhn_l))
        return (1.0 - z) * n + z * h_prev

    # ---- Recurrence: fully unrolled over time, list carry (no stack/slice) ----
    hs = [jnp.zeros((B, H), jnp.float32) for _ in range(L)]
    for t in range(T):                     # static unroll
        inp_bf = None
        for l in range(L):                 # static unroll over layers
            h_prev = hs[l]
            gh = jnp.dot(h_prev.astype(jnp.bfloat16), wh_ref[l],
                         preferred_element_type=jnp.float32)      # (B, 3H)
            if l == 0:
                gi = gi0_ref[pl.ds(t * B, B)]                     # precomputed
            else:
                gi = jnp.dot(inp_bf, wir_ref[l - 1],
                             preferred_element_type=jnp.float32) + bi_ref[l]
            h_new = gru_cell(gi, gh, bhn_ref[l], h_prev)
            hs[l] = h_new
            inp_bf = h_new.astype(jnp.bfloat16)

    # ---- FC + tanh on the last hidden state of the top layer ----
    out = jnp.tanh(jnp.dot(hs[L - 1], fcw_ref[...],
                           preferred_element_type=jnp.float32) + fcb_ref[...])
    out_ref[...] = out.astype(out_ref.dtype)


# ---------------------------------------------------------------------------
# Wrapper
# ---------------------------------------------------------------------------
def gru_model_forward(x, params):
    """x: (B, T, D) batch-first, like PyTorch. Returns (B, output_dim) f32."""
    B, T, D = x.shape
    L, H, H3 = params["wh"].shape
    O = params["fcw"].shape[1]

    # transpose + flatten + bf16 cast fuse into one cheap XLA pass over x;
    # the kernel consumes the flat time-major slab directly (no per-step
    # transposition inside the kernel).
    x2d = jnp.transpose(x, (1, 0, 2)).reshape(T * B, D).astype(jnp.bfloat16)

    # TODO(synk): for production-scale T/B/D, add a time-chunked grid
    # (time axis "arbitrary", batch axis "parallel" for v7x's 2 TCs), stream x
    # with double-buffered BlockSpecs, keep h in scratch across grid steps, and
    # size tiles against 64 MiB VMEM on v7x. At these shapes everything fits
    # whole-array in VMEM.
    vmem = pl.BlockSpec(memory_space=pltpu.MemorySpace.VMEM)
    return pl.pallas_call(
        gru_fc_kernel,
        out_shape=jax.ShapeDtypeStruct((B, O), jnp.float32),
        in_specs=[vmem] * 8,
        out_specs=vmem,
        scratch_shapes=[pltpu.VMEM((T * B, H3), jnp.float32)],
    )(x2d, params["wi0"], params["wir"], params["wh"],
      params["bi"], params["bhn"], params["fcw"], params["fcb"])


# ---------------------------------------------------------------------------
# Deterministic parameter init (mimics nn.GRU / nn.Linear uniform init bounds),
# stored directly in the fused, pre-transposed kernel layout.
# ---------------------------------------------------------------------------
def init_params(key, input_dim, hidden_dim, output_dim, num_layers):
    H = hidden_dim
    k = 1.0 / (hidden_dim ** 0.5)
    keys = jax.random.split(key, 8)
    u = lambda kk, shape: jax.random.uniform(kk, shape, jnp.float32,
                                             minval=-k, maxval=k)

    wi0 = u(keys[0], (input_dim, 3 * H))                       # layer-0 input W
    wir = u(keys[1], (max(num_layers - 1, 1), H, 3 * H))       # layers 1.. input W
    wh = u(keys[2], (num_layers, H, 3 * H))                    # hidden W
    b_ih = u(keys[3], (num_layers, 3 * H))
    b_hh = u(keys[4], (num_layers, 3 * H))
    fcw = u(keys[5], (H, output_dim))
    fcb = u(keys[6], (1, output_dim))

    # Fold b_ir+b_hr and b_iz+b_hz into the fused input bias; keep b_in there
    # too; b_hn stays separate (must remain inside the r * (...) term).
    bi = b_ih.at[:, :2 * H].add(b_hh[:, :2 * H]).reshape(num_layers, 1, 3 * H)
    bhn = b_hh[:, 2 * H:].reshape(num_layers, 1, H)

    return {
        "wi0": wi0.astype(jnp.bfloat16),
        "wir": wir.astype(jnp.bfloat16),
        "wh":  wh.astype(jnp.bfloat16),
        "bi":  bi,
        "bhn": bhn,
        "fcw": fcw,
        "fcb": fcb,
    }


# ---------------------------------------------------------------------------
# Pure-JAX reference (identical math / same bf16-rounded operands) for a check
# ---------------------------------------------------------------------------
def gru_model_ref(x, params):
    B, T, D = x.shape
    L, H, H3 = params["wh"].shape
    H2 = 2 * H
    xb = jnp.transpose(x, (1, 0, 2)).astype(jnp.bfloat16)      # (T, B, D)

    def cell(gi, gh, bhn_l, h_prev):
        rz = jax.nn.sigmoid(gi[:, :H2] + gh[:, :H2])
        r, z = rz[:, :H], rz[:, H:]
        n = jnp.tanh(gi[:, H2:] + r * (gh[:, H2:] + bhn_l))
        return (1.0 - z) * n + z * h_prev

    def step(carry, x_t):
        hs = list(carry)
        inp = x_t
        for l in range(L):
            Wi = params["wi0"] if l == 0 else params["wir"][l - 1]
            gi = jnp.dot(inp, Wi, preferred_element_type=jnp.float32) + params["bi"][l]
            gh = jnp.dot(hs[l].astype(jnp.bfloat16), params["wh"][l],
                         preferred_element_type=jnp.float32)
            hs[l] = cell(gi, gh, params["bhn"][l], hs[l])
            inp = hs[l].astype(jnp.bfloat16)
        return tuple(hs), None

    h0 = tuple(jnp.zeros((B, H), jnp.float32) for _ in range(L))
    hT, _ = lax.scan(step, h0, xb)
    return jnp.tanh(hT[L - 1] @ params["fcw"] + params["fcb"])


if __name__ == "__main__":
    # Small shapes consistent with the module: (batch, seq, input_dim), with the
    # GRUModel class defaults hidden_dim=128, output_dim=2, num_layers=2.
    B, T, D = 2, 8, 6
    H, O, L = 128, 2, 2

    key = jax.random.PRNGKey(0)
    kx, kp = jax.random.split(key)
    x = jax.random.normal(kx, (B, T, D), jnp.float32)
    params = init_params(kp, D, H, O, L)

    out = gru_model_forward(x, params)
    out = jax.block_until_ready(out)

    ref = gru_model_ref(x, params)
    assert out.shape == (B, O)
    assert jnp.allclose(out, ref, atol=5e-3, rtol=5e-3), (out, ref)

    print("KERNEL_OK")
</pallas_src>

<mosaic_0001>
module attributes {stable_mosaic.version = 11 : i64} {
  func.func @gru_fc_kernel(%arg0: memref<16x6xbf16, #tpu.memory_space<vmem>>, %arg1: memref<6x384xbf16, #tpu.memory_space<vmem>>, %arg2: memref<1x128x384xbf16, #tpu.memory_space<vmem>>, %arg3: memref<2x128x384xbf16, #tpu.memory_space<vmem>>, %arg4: memref<2x1x384xf32, #tpu.memory_space<vmem>>, %arg5: memref<2x1x128xf32, #tpu.memory_space<vmem>>, %arg6: memref<128x2xf32, #tpu.memory_space<vmem>>, %arg7: memref<1x2xf32, #tpu.memory_space<vmem>>, %arg8: memref<2x2xf32, #tpu.memory_space<vmem>>, %arg9: memref<16x384xf32, #tpu.memory_space<vmem>>) attributes {dimension_semantics = [], scalar_prefetch = 0 : i64, scratch_operands = 1 : i64, tpu.core_type = #tpu.core_type<tc>} {
    %c0 = arith.constant 0 : index
    %c0_0 = arith.constant 0 : index
    %0 = vector.load %arg0[%c0, %c0_0] : memref<16x6xbf16, #tpu.memory_space<vmem>>, vector<16x6xbf16>
    %c0_1 = arith.constant 0 : index
    %c0_2 = arith.constant 0 : index
    %1 = vector.load %arg1[%c0_1, %c0_2] : memref<6x384xbf16, #tpu.memory_space<vmem>>, vector<6x384xbf16>
    %cst = arith.constant dense<0.000000e+00> : vector<16x384xf32>
    %2 = tpu.matmul %0, %1, %cst {dimension_numbers = #tpu.dot_dimension_numbers<[1], [0], [0], [1], [0, 0, 1, 1], [], []>} : vector<16x6xbf16>, vector<6x384xbf16>, vector<16x384xf32> -> vector<16x384xf32>
    %c0_3 = arith.constant 0 : index
    %c0_4 = arith.constant 0 : index
    %c0_5 = arith.constant 0 : index
    %3 = vector.load %arg4[%c0_3, %c0_4, %c0_5] : memref<2x1x384xf32, #tpu.memory_space<vmem>>, vector<1x1x384xf32>
    %4 = vector.shape_cast %3 : vector<1x1x384xf32> to vector<1x384xf32>
    %5 = vector.broadcast %4 : vector<1x384xf32> to vector<16x384xf32>
    %6 = arith.addf %2, %5 : vector<16x384xf32>
    %c0_6 = arith.constant 0 : index
    %c0_7 = arith.constant 0 : index
    %7 = vector.load %arg9[%c0_6, %c0_7] : memref<16x384xf32, #tpu.memory_space<vmem>>, vector<16x384xf32>
    tpu.vector_store %arg9[%c0_6, %c0_7], %6 {strides = array<i32>} : memref<16x384xf32, #tpu.memory_space<vmem>>, vector<16x384xf32>,
    %cst_8 = arith.constant 0.000000e+00 : f32
    %8 = vector.broadcast %cst_8 : f32 to vector<2x128xf32>
    %cst_9 = arith.constant 0.000000e+00 : f32
    %9 = vector.broadcast %cst_9 : f32 to vector<2x128xf32>
    %10 = arith.truncf %8 : vector<2x128xf32> to vector<2x128xbf16>
    %c0_10 = arith.constant 0 : index
    %c0_11 = arith.constant 0 : index
    %c0_12 = arith.constant 0 : index
    %11 = vector.load %arg3[%c0_10, %c0_11, %c0_12] : memref<2x128x384xbf16, #tpu.memory_space<vmem>>, vector<1x128x384xbf16>
    %12 = vector.shape_cast %11 : vector<1x128x384xbf16> to vector<128x384xbf16>
    %cst_13 = arith.constant dense<0.000000e+00> : vector<2x384xf32>
    %13 = tpu.matmul %10, %12, %cst_13 {dimension_numbers = #tpu.dot_dimension_numbers<[1], [0], [0], [1], [0, 0, 1, 1], [], []>} : vector<2x128xbf16>, vector<128x384xbf16>, vector<2x384xf32> -> vector<2x384xf32>
    %c0_14 = arith.constant 0 : index
    %c0_15 = arith.constant 0 : index
    %14 = vector.load %arg9[%c0_14, %c0_15] : memref<16x384xf32, #tpu.memory_space<vmem>>, vector<2x384xf32>
    %c0_16 = arith.constant 0 : index
    %c0_17 = arith.constant 0 : index
    %c0_18 = arith.constant 0 : index
    %15 = vector.load %arg5[%c0_16, %c0_17, %c0_18] : memref<2x1x128xf32, #tpu.memory_space<vmem>>, vector<1x1x128xf32>
    %16 = vector.shape_cast %15 : vector<1x1x128xf32> to vector<1x128xf32>
    %17 = vector.extract_strided_slice %14 {offsets = [0, 0], sizes = [2, 256], strides = [1, 1]} : vector<2x384xf32> to vector<2x256xf32>
    %18 = vector.extract_strided_slice %13 {offsets = [0, 0], sizes = [2, 256], strides = [1, 1]} : vector<2x384xf32> to vector<2x256xf32>
    %19 = arith.addf %17, %18 : vector<2x256xf32>
    %20 = arith.negf %19 : vector<2x256xf32>
    %21 = math.exp %20 : vector<2x256xf32>
    %cst_19 = arith.constant 1.000000e+00 : f32
    %22 = vector.broadcast %cst_19 : f32 to vector<2x256xf32>
    %23 = arith.addf %22, %21 : vector<2x256xf32>
    %24 = arith.divf %22, %23 : vector<2x256xf32>
    %25 = vector.extract_strided_slice %24 {offsets = [0, 0], sizes = [2, 128], strides = [1, 1]} : vector<2x256xf32> to vector<2x128xf32>
    %26 = vector.extract_strided_slice %24 {offsets = [0, 128], sizes = [2, 128], strides = [1, 1]} : vector<2x256xf32> to vector<2x128xf32>
    %27 = vector.extract_strided_slice %14 {offsets = [0, 256], sizes = [2, 128], strides = [1, 1]} : vector<2x384xf32> to vector<2x128xf32>
    %28 = vector.extract_strided_slice %13 {offsets = [0, 256], sizes = [2, 128], strides = [1, 1]} : vector<2x384xf32> to vector<2x128xf32>
    %29 = vector.broadcast %16 : vector<1x128xf32> to vector<2x128xf32>
    %30 = arith.addf %28, %29 : vector<2x128xf32>
    %31 = arith.mulf %25, %30 : vector<2x128xf32>
    %32 = arith.addf %27, %31 : vector<2x128xf32>
    %33 = math.tanh %32 : vector<2x128xf32>
    %cst_20 = arith.constant 1.000000e+00 : f32
    %34 = vector.broadcast %cst_20 : f32 to vector<2x128xf32>
    %35 = arith.subf %34, %26 : vector<2x128xf32>
    %36 = arith.mulf %35, %33 : vector<2x128xf32>
    %37 = arith.mulf %26, %8 : vector<2x128xf32>
    %38 = arith.addf %36, %37 : vector<2x128xf32>
    %39 = arith.truncf %38 : vector<2x128xf32> to vector<2x128xbf16>
    %40 = arith.truncf %9 : vector<2x128xf32> to vector<2x128xbf16>
    %c1 = arith.constant 1 : index
    %c0_21 = arith.constant 0 : index
    %c0_22 = arith.constant 0 : index
    %41 = vector.load %arg3[%c1, %c0_21, %c0_22] : memref<2x128x384xbf16, #tpu.memory_space<vmem>>, vector<1x128x384xbf16>
    %42 = vector.shape_cast %41 : vector<1x128x384xbf16> to vector<128x384xbf16>
    %cst_23 = arith.constant dense<0.000000e+00> : vector<2x384xf32>
    %43 = tpu.matmul %40, %42, %cst_23 {dimension_numbers = #tpu.dot_dimension_numbers<[1], [0], [0], [1], [0, 0, 1, 1], [], []>} : vector<2x128xbf16>, vector<128x384xbf16>, vector<2x384xf32> -> vector<2x384xf32>
    %c0_24 = arith.constant 0 : index
    %c0_25 = arith.constant 0 : index
    %c0_26 = arith.constant 0 : index
    %44 = vector.load %arg2[%c0_24, %c0_25, %c0_26] : memref<1x128x384xbf16, #tpu.memory_space<vmem>>, vector<1x128x384xbf16>
    %45 = vector.shape_cast %44 : vector<1x128x384xbf16> to vector<128x384xbf16>
    %cst_27 = arith.constant dense<0.000000e+00> : vector<2x384xf32>
    %46 = tpu.matmul %39, %45, %cst_27 {dimension_numbers = #tpu.dot_dimension_numbers<[1], [0], [0], [1], [0, 0, 1, 1], [], []>} : vector<2x128xbf16>, vector<128x384xbf16>, vector<2x384xf32> -> vector<2x384xf32>
    %c1_28 = arith.constant 1 : index
    %c0_29 = arith.constant 0 : index
    %c0_30 = arith.constant 0 : index
    %47 = vector.load %arg4[%c1_28, %c0_29, %c0_30] : memref<2x1x384xf32, #tpu.memory_space<vmem>>, vector<1x1x384xf32>
    %48 = vector.shape_cast %47 : vector<1x1x384xf32> to vector<1x384xf32>
    %49 = vector.broadcast %48 : vector<1x384xf32> to vector<2x384xf32>
    %50 = arith.addf %46, %49 : vector<2x384xf32>
    %c1_31 = arith.constant 1 : index
    %c0_32 = arith.constant 0 : index
    %c0_33 = arith.constant 0 : index
    %51 = vector.load %arg5[%c1_31, %c0_32, %c0_33] : memref<2x1x128xf32, #tpu.memory_space<vmem>>, vector<1x1x128xf32>
    %52 = vector.shape_cast %51 : vector<1x1x128xf32> to vector<1x128xf32>
    %53 = vector.extract_strided_slice %50 {offsets = [0, 0], sizes = [2, 256], strides = [1, 1]} : vector<2x384xf32> to vector<2x256xf32>
    %54 = vector.extract_strided_slice %43 {offsets = [0, 0], sizes = [2, 256], strides = [1, 1]} : vector<2x384xf32> to vector<2x256xf32>
    %55 = arith.addf %53, %54 : vector<2x256xf32>
    %56 = arith.negf %55 : vector<2x256xf32>
    %57 = math.exp %56 : vector<2x256xf32>
    %cst_34 = arith.constant 1.000000e+00 : f32
    %58 = vector.broadcast %cst_34 : f32 to vector<2x256xf32>
    %59 = arith.addf %58, %57 : vector<2x256xf32>
    %60 = arith.divf %58, %59 : vector<2x256xf32>
    %61 = vector.extract_strided_slice %60 {offsets = [0, 0], sizes = [2, 128], strides = [1, 1]} : vector<2x256xf32> to vector<2x128xf32>
    %62 = vector.extract_strided_slice %60 {offsets = [0, 128], sizes = [2, 128], strides = [1, 1]} : vector<2x256xf32> to vector<2x128xf32>
    %63 = vector.extract_strided_slice %50 {offsets = [0, 256], sizes = [2, 128], strides = [1, 1]} : vector<2x384xf32> to vector<2x128xf32>
    %64 = vector.extract_strided_slice %43 {offsets = [0, 256], sizes = [2, 128], strides = [1, 1]} : vector<2x384xf32> to vector<2x128xf32>
    %65 = vector.broadcast %52 : vector<1x128xf32> to vector<2x128xf32>
    %66 = arith.addf %64, %65 : vector<2x128xf32>
    %67 = arith.mulf %61, %66 : vector<2x128xf32>
    %68 = arith.addf %63, %67 : vector<2x128xf32>
    %69 = math.tanh %68 : vector<2x128xf32>
    %cst_35 = arith.constant 1.000000e+00 : f32
    %70 = vector.broadcast %cst_35 : f32 to vector<2x128xf32>
    %71 = arith.subf %70, %62 : vector<2x128xf32>
    %72 = arith.mulf %71, %69 : vector<2x128xf32>
    %73 = arith.mulf %62, %9 : vector<2x128xf32>
    %74 = arith.addf %72, %73 : vector<2x128xf32>
    %75 = arith.truncf %38 : vector<2x128xf32> to vector<2x128xbf16>
    %c0_36 = arith.constant 0 : index
    %c0_37 = arith.constant 0 : index
    %c0_38 = arith.constant 0 : index
    %76 = vector.load %arg3[%c0_36, %c0_37, %c0_38] : memref<2x128x384xbf16, #tpu.memory_space<vmem>>, vector<1x128x384xbf16>
    %77 = vector.shape_cast %76 : vector<1x128x384xbf16> to vector<128x384xbf16>
    %cst_39 = arith.constant dense<0.000000e+00> : vector<2x384xf32>
    %78 = tpu.matmul %75, %77, %cst_39 {dimension_numbers = #tpu.dot_dimension_numbers<[1], [0], [0], [1], [0, 0, 1, 1], [], []>} : vector<2x128xbf16>, vector<128x384xbf16>, vector<2x384xf32> -> vector<2x384xf32>
    %c2 = arith.constant 2 : index
    %c0_40 = arith.constant 0 : index
    %79 = vector.load %arg9[%c2, %c0_40] : memref<16x384xf32, #tpu.memory_space<vmem>>, vector<2x384xf32>
    %c0_41 = arith.constant 0 : index
    %c0_42 = arith.constant 0 : index
    %c0_43 = arith.constant 0 : index
    %80 = vector.load %arg5[%c0_41, %c0_42, %c0_43] : memref<2x1x128xf32, #tpu.memory_space<vmem>>, vector<1x1x128xf32>
    %81 = vector.shape_cast %80 : vector<1x1x128xf32> to vector<1x128xf32>
    %82 = vector.extract_strided_slice %79 {offsets = [0, 0], sizes = [2, 256], strides = [1, 1]} : vector<2x384xf32> to vector<2x256xf32>
    %83 = vector.extract_strided_slice %78 {offsets = [0, 0], sizes = [2, 256], strides = [1, 1]} : vector<2x384xf32> to vector<2x256xf32>
    %84 = arith.addf %82, %83 : vector<2x256xf32>
    %85 = arith.negf %84 : vector<2x256xf32>
    %86 = math.exp %85 : vector<2x256xf32>
    %cst_44 = arith.constant 1.000000e+00 : f32
    %87 = vector.broadcast %cst_44 : f32 to vector<2x256xf32>
    %88 = arith.addf %87, %86 : vector<2x256xf32>
    %89 = arith.divf %87, %88 : vector<2x256xf32>
    %90 = vector.extract_strided_slice %89 {offsets = [0, 0], sizes = [2, 128], strides = [1, 1]} : vector<2x256xf32> to vector<2x128xf32>
    %91 = vector.extract_strided_slice %89 {offsets = [0, 128], sizes = [2, 128], strides = [1, 1]} : vector<2x256xf32> to vector<2x128xf32>
    %92 = vector.extract_strided_slice %79 {offsets = [0, 256], sizes = [2, 128], strides = [1, 1]} : vector<2x384xf32> to vector<2x128xf32>
    %93 = vector.extract_strided_slice %78 {offsets = [0, 256], sizes = [2, 128], strides = [1, 1]} : vector<2x384xf32> to vector<2x128xf32>
    %94 = vector.broadcast %81 : vector<1x128xf32> to vector<2x128xf32>
    %95 = arith.addf %93, %94 : vector<2x128xf32>
    %96 = arith.mulf %90, %95 : vector<2x128xf32>
    %97 = arith.addf %92, %96 : vector<2x128xf32>
    %98 = math.tanh %97 : vector<2x128xf32>
    %cst_45 = arith.constant 1.000000e+00 : f32
    %99 = vector.broadcast %cst_45 : f32 to vector<2x128xf32>
    %100 = arith.subf %99, %91 : vector<2x128xf32>
    %101 = arith.mulf %100, %98 : vector<2x128xf32>
    %102 = arith.mulf %91, %38 : vector<2x128xf32>
    %103 = arith.addf %101, %102 : vector<2x128xf32>
    %104 = arith.truncf %103 : vector<2x128xf32> to vector<2x128xbf16>
    %105 = arith.truncf %74 : vector<2x128xf32> to vector<2x128xbf16>
    %c1_46 = arith.constant 1 : index
    %c0_47 = arith.constant 0 : index
    %c0_48 = arith.constant 0 : index
    %106 = vector.load %arg3[%c1_46, %c0_47, %c0_48] : memref<2x128x384xbf16, #tpu.memory_space<vmem>>, vector<1x128x384xbf16>
    %107 = vector.shape_cast %106 : vector<1x128x384xbf16> to vector<128x384xbf16>
    %cst_49 = arith.constant dense<0.000000e+00> : vector<2x384xf32>
    %108 = tpu.matmul %105, %107, %cst_49 {dimension_numbers = #tpu.dot_dimension_numbers<[1], [0], [0], [1], [0, 0, 1, 1], [], []>} : vector<2x128xbf16>, vector<128x384xbf16>, vector<2x384xf32> -> vector<2x384xf32>
    %c0_50 = arith.constant 0 : index
    %c0_51 = arith.constant 0 : index
    %c0_52 = arith.constant 0 : index
    %109 = vector.load %arg2[%c0_50, %c0_51, %c0_52] : memref<1x128x384xbf16, #tpu.memory_space<vmem>>, vector<1x128x384xbf16>
    %110 = vector.shape_cast %109 : vector<1x128x384xbf16> to vector<128x384xbf16>
    %cst_53 = arith.constant dense<0.000000e+00> : vector<2x384xf32>
    %111 = tpu.matmul %104, %110, %cst_53 {dimension_numbers = #tpu.dot_dimension_numbers<[1], [0], [0], [1], [0, 0, 1, 1], [], []>} : vector<2x128xbf16>, vector<128x384xbf16>, vector<2x384xf32> -> vector<2x384xf32>
    %c1_54 = arith.constant 1 : index
    %c0_55 = arith.constant 0 : index
    %c0_56 = arith.constant 0 : index
    %112 = vector.load %arg4[%c1_54, %c0_55, %c0_56] : memref<2x1x384xf32, #tpu.memory_space<vmem>>, vector<1x1x384xf32>
    %113 = vector.shape_cast %112 : vector<1x1x384xf32> to vector<1x384xf32>
    %114 = vector.broadcast %113 : vector<1x384xf32> to vector<2x384xf32>
    %115 = arith.addf %111, %114 : vector<2x384xf32>
    %c1_57 = arith.constant 1 : index
    %c0_58 = arith.constant 0 : index
    %c0_59 = arith.constant 0 : index
    %116 = vector.load %arg5[%c1_57, %c0_58, %c0_59] : memref<2x1x128xf32, #tpu.memory_space<vmem>>, vector<1x1x128xf32>
    %117 = vector.shape_cast %116 : vector<1x1x128xf32> to vector<1x128xf32>
    %118 = vector.extract_strided_slice %115 {offsets = [0, 0], sizes = [2, 256], strides = [1, 1]} : vector<2x384xf32> to vector<2x256xf32>
    %119 = vector.extract_strided_slice %108 {offsets = [0, 0], sizes = [2, 256], strides = [1, 1]} : vector<2x384xf32> to vector<2x256xf32>
    %120 = arith.addf %118, %119 : vector<2x256xf32>
    %121 = arith.negf %120 : vector<2x256xf32>
    %122 = math.exp %121 : vector<2x256xf32>
    %cst_60 = arith.constant 1.000000e+00 : f32
    %123 = vector.broadcast %cst_60 : f32 to vector<2x256xf32>
    %124 = arith.addf %123, %122 : vector<2x256xf32>
    %125 = arith.divf %123, %124 : vector<2x256xf32>
    %126 = vector.extract_strided_slice %125 {offsets = [0, 0], sizes = [2, 128], strides = [1, 1]} : vector<2x256xf32> to vector<2x128xf32>
    %127 = vector.extract_strided_slice %125 {offsets = [0, 128], sizes = [2, 128], strides = [1, 1]} : vector<2x256xf32> to vector<2x128xf32>
    %128 = vector.extract_strided_slice %115 {offsets = [0, 256], sizes = [2, 128], strides = [1, 1]} : vector<2x384xf32> to vector<2x128xf32>
    %129 = vector.extract_strided_slice %108 {offsets = [0, 256], sizes = [2, 128], strides = [1, 1]} : vector<2x384xf32> to vector<2x128xf32>
    %130 = vector.broadcast %117 : vector<1x128xf32> to vector<2x128xf32>
    %131 = arith.addf %129, %130 : vector<2x128xf32>
    %132 = arith.mulf %126, %131 : vector<2x128xf32>
    %133 = arith.addf %128, %132 : vector<2x128xf32>
    %134 = math.tanh %133 : vector<2x128xf32>
    %cst_61 = arith.constant 1.000000e+00 : f32
    %135 = vector.broadcast %cst_61 : f32 to vector<2x128xf32>
    %136 = arith.subf %135, %127 : vector<2x128xf32>
    %137 = arith.mulf %136, %134 : vector<2x128xf32>
    %138 = arith.mulf %127, %74 : vector<2x128xf32>
    %139 = arith.addf %137, %138 : vector<2x128xf32>
    %140 = arith.truncf %103 : vector<2x128xf32> to vector<2x128xbf16>
    %c0_62 = arith.constant 0 : index
    %c0_63 = arith.constant 0 : index
    %c0_64 = arith.constant 0 : index
    %141 = vector.load %arg3[%c0_62, %c0_63, %c0_64] : memref<2x128x384xbf16, #tpu.memory_space<vmem>>, vector<1x128x384xbf16>
    %142 = vector.shape_cast %141 : vector<1x128x384xbf16> to vector<128x384xbf16>
    %cst_65 = arith.constant dense<0.000000e+00> : vector<2x384xf32>
    %143 = tpu.matmul %140, %142, %cst_65 {dimension_numbers = #tpu.dot_dimension_numbers<[1], [0], [0], [1], [0, 0, 1, 1], [], []>} : vector<2x128xbf16>, vector<128x384xbf16>, vector<2x384xf32> -> vector<2x384xf32>
    %c4 = arith.constant 4 : index
    %c0_66 = arith.constant 0 : index
    %144 = vector.load %arg9[%c4, %c0_66] : memref<16x384xf32, #tpu.memory_space<vmem>>, vector<2x384xf32>
    %c0_67 = arith.constant 0 : index
    %c0_68 = arith.constant 0 : index
    %c0_69 = arith.constant 0 : index
    %145 = vector.load %arg5[%c0_67, %c0_68, %c0_69] : memref<2x1x128xf32, #tpu.memory_space<vmem>>, vector<1x1x128xf32>
    %146 = vector.shape_cast %145 : vector<1x1x128xf32> to vector<1x128xf32>
    %147 = vector.extract_strided_slice %144 {offsets = [0, 0], sizes = [2, 256], strides = [1, 1]} : vector<2x384xf32> to vector<2x256xf32>
    %148 = vector.extract_strided_slice %143 {offsets = [0, 0], sizes = [2, 256], strides = [1, 1]} : vector<2x384xf32> to vector<2x256xf32>
    %149 = arith.addf %147, %148 : vector<2x256xf32>
    %150 = arith.negf %149 : vector<2x256xf32>
    %151 = math.exp %150 : vector<2x256xf32>
    %cst_70 = arith.constant 1.000000e+00 : f32
    %152 = vector.broadcast %cst_70 : f32 to vector<2x256xf32>
    %153 = arith.addf %152, %151 : vector<2x256xf32>
    %154 = arith.divf %152, %153 : vector<2x256xf32>
    %155 = vector.extract_strided_slice %154 {offsets = [0, 0], sizes = [2, 128], strides = [1, 1]} : vector<2x256xf32> to vector<2x128xf32>
    %156 = vector.extract_strided_slice %154 {offsets = [0, 128], sizes = [2, 128], strides = [1, 1]} : vector<2x256xf32> to vector<2x128xf32>
    %157 = vector.extract_strided_slice %144 {offsets = [0, 256], sizes = [2, 128], strides = [1, 1]} : vector<2x384xf32> to vector<2x128xf32>
    %158 = vector.extract_strided_slice %143 {offsets = [0, 256], sizes = [2, 128], strides = [1, 1]} : vector<2x384xf32> to vector<2x128xf32>
    %159 = vector.broadcast %146 : vector<1x128xf32> to vector<2x128xf32>
    %160 = arith.addf %158, %159 : vector<2x128xf32>
    %161 = arith.mulf %155, %160 : vector<2x128xf32>
    %162 = arith.addf %157, %161 : vector<2x128xf32>
    %163 = math.tanh %162 : vector<2x128xf32>
    %cst_71 = arith.constant 1.000000e+00 : f32
    %164 = vector.broadcast %cst_71 : f32 to vector<2x128xf32>
    %165 = arith.subf %164, %156 : vector<2x128xf32>
    %166 = arith.mulf %165, %163 : vector<2x128xf32>
    %167 = arith.mulf %156, %103 : vector<2x128xf32>
    %168 = arith.addf %166, %167 : vector<2x128xf32>
    %169 = arith.truncf %168 : vector<2x128xf32> to vector<2x128xbf16>
    %170 = arith.truncf %139 : vector<2x128xf32> to vector<2x128xbf16>
    %c1_72 = arith.constant 1 : index
    %c0_73 = arith.constant 0 : index
    %c0_74 = arith.constant 0 : index
    %171 = vector.load %arg3[%c1_72, %c0_73, %c0_74] : memref<2x128x384xbf16, #tpu.memory_space<vmem>>, vector<1x128x384xbf16>
    %172 = vector.shape_cast %171 : vector<1x128x384xbf16> to vector<128x384xbf16>
    %cst_75 = arith.constant dense<0.000000e+00> : vector<2x384xf32>
    %173 = tpu.matmul %170, %172, %cst_75 {dimension_numbers = #tpu.dot_dimension_numbers<[1], [0], [0], [1], [0, 0, 1, 1], [], []>} : vector<2x128xbf16>, vector<128x384xbf16>, vector<2x384xf32> -> vector<2x384xf32>
    %c0_76 = arith.constant 0 : index
    %c0_77 = arith.constant 0 : index
    %c0_78 = arith.constant 0 : index
    %174 = vector.load %arg2[%c0_76, %c0_77, %c0_78] : memref<1x128x384xbf16, #tpu.memory_space<vmem>>, vector<1x128x384xbf16>
    %175 = vector.shape_cast %174 : vector<1x128x384xbf16> to vector<128x384xbf16>
    %cst_79 = arith.constant dense<0.000000e+00> : vector<2x384xf32>
    %176 = tpu.matmul %169, %175, %cst_79 {dimension_numbers = #tpu.dot_dimension_numbers<[1], [0], [0], [1], [0, 0, 1, 1], [], []>} : vector<2x128xbf16>, vector<128x384xbf16>, vector<2x384xf32> -> vector<2x384xf32>
    %c1_80 = arith.constant 1 : index
    %c0_81 = arith.constant 0 : index
    %c0_82 = arith.constant 0 : index
    %177 = vector.load %arg4[%c1_80, %c0_81, %c0_82] : memref<2x1x384xf32, #tpu.memory_space<vmem>>, vector<1x1x384xf32>
    %178 = vector.shape_cast %177 : vector<1x1x384xf32> to vector<1x384xf32>
    %179 = vector.broadcast %178 : vector<1x384xf32> to vector<2x384xf32>
    %180 = arith.addf %176, %179 : vector<2x384xf32>
    %c1_83 = arith.constant 1 : index
    %c0_84 = arith.constant 0 : index
    %c0_85 = arith.constant 0 : index
    %181 = vector.load %arg5[%c1_83, %c0_84, %c0_85] : memref<2x1x128xf32, #tpu.memory_space<vmem>>, vector<1x1x128xf32>
    %182 = vector.shape_cast %181 : vector<1x1x128xf32> to vector<1x128xf32>
    %183 = vector.extract_strided_slice %180 {offsets = [0, 0], sizes = [2, 256], strides = [1, 1]} : vector<2x384xf32> to vector<2x256xf32>
    %184 = vector.extract_strided_slice %173 {offsets = [0, 0], sizes = [2, 256], strides = [1, 1]} : vector<2x384xf32> to vector<2x256xf32>
    %185 = arith.addf %183, %184 : vector<2x256xf32>
    %186 = arith.negf %185 : vector<2x256xf32>
    %187 = math.exp %186 : vector<2x256xf32>
    %cst_86 = arith.constant 1.000000e+00 : f32
    %188 = vector.broadcast %cst_86 : f32 to vector<2x256xf32>
    %189 = arith.addf %188, %187 : vector<2x256xf32>
    %190 = arith.divf %188, %189 : vector<2x256xf32>
    %191 = vector.extract_strided_slice %190 {offsets = [0, 0], sizes = [2, 128], strides = [1, 1]} : vector<2x256xf32> to vector<2x128xf32>
    %192 = vector.extract_strided_slice %190 {offsets = [0, 128], sizes = [2, 128], strides = [1, 1]} : vector<2x256xf32> to vector<2x128xf32>
    %193 = vector.extract_strided_slice %180 {offsets = [0, 256], sizes = [2, 128], strides = [1, 1]} : vector<2x384xf32> to vector<2x128xf32>
    %194 = vector.extract_strided_slice %173 {offsets = [0, 256], sizes = [2, 128], strides = [1, 1]} : vector<2x384xf32> to vector<2x128xf32>
    %195 = vector.broadcast %182 : vector<1x128xf32> to vector<2x128xf32>
    %196 = arith.addf %194, %195 : vector<2x128xf32>
    %197 = arith.mulf %191, %196 : vector<2x128xf32>
    %198 = arith.addf %193, %197 : vector<2x128xf32>
    %199 = math.tanh %198 : vector<2x128xf32>
    %cst_87 = arith.constant 1.000000e+00 : f32
    %200 = vector.broadcast %cst_87 : f32 to vector<2x128xf32>
    %201 = arith.subf %200, %192 : vector<2x128xf32>
    %202 = arith.mulf %201, %199 : vector<2x128xf32>
    %203 = arith.mulf %192, %139 : vector<2x128xf32>
    %204 = arith.addf %202, %203 : vector<2x128xf32>
    %205 = arith.truncf %168 : vector<2x128xf32> to vector<2x128xbf16>
    %c0_88 = arith.constant 0 : index
    %c0_89 = arith.constant 0 : index
    %c0_90 = arith.constant 0 : index
    %206 = vector.load %arg3[%c0_88, %c0_89, %c0_90] : memref<2x128x384xbf16, #tpu.memory_space<vmem>>, vector<1x128x384xbf16>
    %207 = vector.shape_cast %206 : vector<1x128x384xbf16> to vector<128x384xbf16>
    %cst_91 = arith.constant dense<0.000000e+00> : vector<2x384xf32>
    %208 = tpu.matmul %205, %207, %cst_91 {dimension_numbers = #tpu.dot_dimension_numbers<[1], [0], [0], [1], [0, 0, 1, 1], [], []>} : vector<2x128xbf16>, vector<128x384xbf16>, vector<2x384xf32> -> vector<2x384xf32>
    %c6 = arith.constant 6 : index
    %c0_92 = arith.constant 0 : index
    %209 = vector.load %arg9[%c6, %c0_92] : memref<16x384xf32, #tpu.memory_space<vmem>>, vector<2x384xf32>
    %c0_93 = arith.constant 0 : index
    %c0_94 = arith.constant 0 : index
    %c0_95 = arith.constant 0 : index
    %210 = vector.load %arg5[%c0_93, %c0_94, %c0_95] : memref<2x1x128xf32, #tpu.memory_space<vmem>>, vector<1x1x128xf32>
    %211 = vector.shape_cast %210 : vector<1x1x128xf32> to vector<1x128xf32>
    %212 = vector.extract_strided_slice %209 {offsets = [0, 0], sizes = [2, 256], strides = [1, 1]} : vector<2x384xf32> to vector<2x256xf32>
    %213 = vector.extract_strided_slice %208 {offsets = [0, 0], sizes = [2, 256], strides = [1, 1]} : vector<2x384xf32> to vector<2x256xf32>
    %214 = arith.addf %212, %213 : vector<2x256xf32>
    %215 = arith.negf %214 : vector<2x256xf32>
    %216 = math.exp %215 : vector<2x256xf32>
    %cst_96 = arith.constant 1.000000e+00 : f32
    %217 = vector.broadcast %cst_96 : f32 to vector<2x256xf32>
    %218 = arith.addf %217, %216 : vector<2x256xf32>
    %219 = arith.divf %217, %218 : vector<2x256xf32>
    %220 = vector.extract_strided_slice %219 {offsets = [0, 0], sizes = [2, 128], strides = [1, 1]} : vector<2x256xf32> to vector<2x128xf32>
    %221 = vector.extract_strided_slice %219 {offsets = [0, 128], sizes = [2, 128], strides = [1, 1]} : vector<2x256xf32> to vector<2x128xf32>
    %222 = vector.extract_strided_slice %209 {offsets = [0, 256], sizes = [2, 128], strides = [1, 1]} : vector<2x384xf32> to vector<2x128xf32>
    %223 = vector.extract_strided_slice %208 {offsets = [0, 256], sizes = [2, 128], strides = [1, 1]} : vector<2x384xf32> to vector<2x128xf32>
    %224 = vector.broadcast %211 : vector<1x128xf32> to vector<2x128xf32>
    %225 = arith.addf %223, %224 : vector<2x128xf32>
    %226 = arith.mulf %220, %225 : vector<2x128xf32>
    %227 = arith.addf %222, %226 : vector<2x128xf32>
    %228 = math.tanh %227 : vector<2x128xf32>
    %cst_97 = arith.constant 1.000000e+00 : f32
    %229 = vector.broadcast %cst_97 : f32 to vector<2x128xf32>
    %230 = arith.subf %229, %221 : vector<2x128xf32>
    %231 = arith.mulf %230, %228 : vector<2x128xf32>
    %232 = arith.mulf %221, %168 : vector<2x128xf32>
    %233 = arith.addf %231, %232 : vector<2x128xf32>
    %234 = arith.truncf %233 : vector<2x128xf32> to vector<2x128xbf16>
    %235 = arith.truncf %204 : vector<2x128xf32> to vector<2x128xbf16>
    %c1_98 = arith.constant 1 : index
    %c0_99 = arith.constant 0 : index
    %c0_100 = arith.constant 0 : index
    %236 = vector.load %arg3[%c1_98, %c0_99, %c0_100] : memref<2x128x384xbf16, #tpu.memory_space<vmem>>, vector<1x128x384xbf16>
    %237 = vector.shape_cast %236 : vector<1x128x384xbf16> to vector<128x384xbf16>
    %cst_101 = arith.constant dense<0.000000e+00> : vector<2x384xf32>
    %238 = tpu.matmul %235, %237, %cst_101 {dimension_numbers = #tpu.dot_dimension_numbers<[1], [0], [0], [1], [0, 0, 1, 1], [], []>} : vector<2x128xbf16>, vector<128x384xbf16>, vector<2x384xf32> -> vector<2x384xf32>
    %c0_102 = arith.constant 0 : index
    %c0_103 = arith.constant 0 : index
    %c0_104 = arith.constant 0 : index
    %239 = vector.load %arg2[%c0_102, %c0_103, %c0_104] : memref<1x128x384xbf16, #tpu.memory_space<vmem>>, vector<1x128x384xbf16>
    %240 = vector.shape_cast %239 : vector<1x128x384xbf16> to vector<128x384xbf16>
    %cst_105 = arith.constant dense<0.000000e+00> : vector<2x384xf32>
    %241 = tpu.matmul %234, %240, %cst_105 {dimension_numbers = #tpu.dot_dimension_numbers<[1], [0], [0], [1], [0, 0, 1, 1], [], []>} : vector<2x128xbf16>, vector<128x384xbf16>, vector<2x384xf32> -> vector<2x384xf32>
    %c1_106 = arith.constant 1 : index
    %c0_107 = arith.constant 0 : index
    %c0_108 = arith.constant 0 : index
    %242 = vector.load %arg4[%c1_106, %c0_107, %c0_108] : memref<2x1x384xf32, #tpu.memory_space<vmem>>, vector<1x1x384xf32>
    %243 = vector.shape_cast %242 : vector<1x1x384xf32> to vector<1x384xf32>
    %244 = vector.broadcast %243 : vector<1x384xf32> to vector<2x384xf32>
    %245 = arith.addf %241, %244 : vector<2x384xf32>
    %c1_109 = arith.constant 1 : index
    %c0_110 = arith.constant 0 : index
    %c0_111 = arith.constant 0 : index
    %246 = vector.load %arg5[%c1_109, %c0_110, %c0_111] : memref<2x1x128xf32, #tpu.memory_space<vmem>>, vector<1x1x128xf32>
    %247 = vector.shape_cast %246 : vector<1x1x128xf32> to vector<1x128xf32>
    %248 = vector.extract_strided_slice %245 {offsets = [0, 0], sizes = [2, 256], strides = [1, 1]} : vector<2x384xf32> to vector<2x256xf32>
    %249 = vector.extract_strided_slice %238 {offsets = [0, 0], sizes = [2, 256], strides = [1, 1]} : vector<2x384xf32> to vector<2x256xf32>
    %250 = arith.addf %248, %249 : vector<2x256xf32>
    %251 = arith.negf %250 : vector<2x256xf32>
    %252 = math.exp %251 : vector<2x256xf32>
    %cst_112 = arith.constant 1.000000e+00 : f32
    %253 = vector.broadcast %cst_112 : f32 to vector<2x256xf32>
    %254 = arith.addf %253, %252 : vector<2x256xf32>
    %255 = arith.divf %253, %254 : vector<2x256xf32>
    %256 = vector.extract_strided_slice %255 {offsets = [0, 0], sizes = [2, 128], strides = [1, 1]} : vector<2x256xf32> to vector<2x128xf32>
    %257 = vector.extract_strided_slice %255 {offsets = [0, 128], sizes = [2, 128], strides = [1, 1]} : vector<2x256xf32> to vector<2x128xf32>
    %258 = vector.extract_strided_slice %245 {offsets = [0, 256], sizes = [2, 128], strides = [1, 1]} : vector<2x384xf32> to vector<2x128xf32>
    %259 = vector.extract_strided_slice %238 {offsets = [0, 256], sizes = [2, 128], strides = [1, 1]} : vector<2x384xf32> to vector<2x128xf32>
    %260 = vector.broadcast %247 : vector<1x128xf32> to vector<2x128xf32>
    %261 = arith.addf %259, %260 : vector<2x128xf32>
    %262 = arith.mulf %256, %261 : vector<2x128xf32>
    %263 = arith.addf %258, %262 : vector<2x128xf32>
    %264 = math.tanh %263 : vector<2x128xf32>
    %cst_113 = arith.constant 1.000000e+00 : f32
    %265 = vector.broadcast %cst_113 : f32 to vector<2x128xf32>
    %266 = arith.subf %265, %257 : vector<2x128xf32>
    %267 = arith.mulf %266, %264 : vector<2x128xf32>
    %268 = arith.mulf %257, %204 : vector<2x128xf32>
    %269 = arith.addf %267, %268 : vector<2x128xf32>
    %270 = arith.truncf %233 : vector<2x128xf32> to vector<2x128xbf16>
    %c0_114 = arith.constant 0 : index
    %c0_115 = arith.constant 0 : index
    %c0_116 = arith.constant 0 : index
    %271 = vector.load %arg3[%c0_114, %c0_115, %c0_116] : memref<2x128x384xbf16, #tpu.memory_space<vmem>>, vector<1x128x384xbf16>
    %272 = vector.shape_cast %271 : vector<1x128x384xbf16> to vector<128x384xbf16>
    %cst_117 = arith.constant dense<0.000000e+00> : vector<2x384xf32>
    %273 = tpu.matmul %270, %272, %cst_117 {dimension_numbers = #tpu.dot_dimension_numbers<[1], [0], [0], [1], [0, 0, 1, 1], [], []>} : vector<2x128xbf16>, vector<128x384xbf16>, vector<2x384xf32> -> vector<2x384xf32>
    %c8 = arith.constant 8 : index
    %c0_118 = arith.constant 0 : index
    %274 = vector.load %arg9[%c8, %c0_118] : memref<16x384xf32, #tpu.memory_space<vmem>>, vector<2x384xf32>
    %c0_119 = arith.constant 0 : index
    %c0_120 = arith.constant 0 : index
    %c0_121 = arith.constant 0 : index
    %275 = vector.load %arg5[%c0_119, %c0_120, %c0_121] : memref<2x1x128xf32, #tpu.memory_space<vmem>>, vector<1x1x128xf32>
    %276 = vector.shape_cast %275 : vector<1x1x128xf32> to vector<1x128xf32>
    %277 = vector.extract_strided_slice %274 {offsets = [0, 0], sizes = [2, 256], strides = [1, 1]} : vector<2x384xf32> to vector<2x256xf32>
    %278 = vector.extract_strided_slice %273 {offsets = [0, 0], sizes = [2, 256], strides = [1, 1]} : vector<2x384xf32> to vector<2x256xf32>
    %279 = arith.addf %277, %278 : vector<2x256xf32>
    %280 = arith.negf %279 : vector<2x256xf32>
    %281 = math.exp %280 : vector<2x256xf32>
    %cst_122 = arith.constant 1.000000e+00 : f32
    %282 = vector.broadcast %cst_122 : f32 to vector<2x256xf32>
    %283 = arith.addf %282, %281 : vector<2x256xf32>
    %284 = arith.divf %282, %283 : vector<2x256xf32>
    %285 = vector.extract_strided_slice %284 {offsets = [0, 0], sizes = [2, 128], strides = [1, 1]} : vector<2x256xf32> to vector<2x128xf32>
    %286 = vector.extract_strided_slice %284 {offsets = [0, 128], sizes = [2, 128], strides = [1, 1]} : vector<2x256xf32> to vector<2x128xf32>
    %287 = vector.extract_strided_slice %274 {offsets = [0, 256], sizes = [2, 128], strides = [1, 1]} : vector<2x384xf32> to vector<2x128xf32>
    %288 = vector.extract_strided_slice %273 {offsets = [0, 256], sizes = [2, 128], strides = [1, 1]} : vector<2x384xf32> to vector<2x128xf32>
    %289 = vector.broadcast %276 : vector<1x128xf32> to vector<2x128xf32>
    %290 = arith.addf %288, %289 : vector<2x128xf32>
    %291 = arith.mulf %285, %290 : vector<2x128xf32>
    %292 = arith.addf %287, %291 : vector<2x128xf32>
    %293 = math.tanh %292 : vector<2x128xf32>
    %cst_123 = arith.constant 1.000000e+00 : f32
    %294 = vector.broadcast %cst_123 : f32 to vector<2x128xf32>
    %295 = arith.subf %294, %286 : vector<2x128xf32>
    %296 = arith.mulf %295, %293 : vector<2x128xf32>
    %297 = arith.mulf %286, %233 : vector<2x128xf32>
    %298 = arith.addf %296, %297 : vector<2x128xf32>
    %299 = arith.truncf %298 : vector<2x128xf32> to vector<2x128xbf16>
    %300 = arith.truncf %269 : vector<2x128xf32> to vector<2x128xbf16>
    %c1_124 = arith.constant 1 : index
    %c0_125 = arith.constant 0 : index
    %c0_126 = arith.constant 0 : index
    %301 = vector.load %arg3[%c1_124, %c0_125, %c0_126] : memref<2x128x384xbf16, #tpu.memory_space<vmem>>, vector<1x128x384xbf16>
    %302 = vector.shape_cast %301 : vector<1x128x384xbf16> to vector<128x384xbf16>
    %cst_127 = arith.constant dense<0.000000e+00> : vector<2x384xf32>
    %303 = tpu.matmul %300, %302, %cst_127 {dimension_numbers = #tpu.dot_dimension_numbers<[1], [0], [0], [1], [0, 0, 1, 1], [], []>} : vector<2x128xbf16>, vector<128x384xbf16>, vector<2x384xf32> -> vector<2x384xf32>
    %c0_128 = arith.constant 0 : index
    %c0_129 = arith.constant 0 : index
    %c0_130 = arith.constant 0 : index
    %304 = vector.load %arg2[%c0_128, %c0_129, %c0_130] : memref<1x128x384xbf16, #tpu.memory_space<vmem>>, vector<1x128x384xbf16>
    %305 = vector.shape_cast %304 : vector<1x128x384xbf16> to vector<128x384xbf16>
    %cst_131 = arith.constant dense<0.000000e+00> : vector<2x384xf32>
    %306 = tpu.matmul %299, %305, %cst_131 {dimension_numbers = #tpu.dot_dimension_numbers<[1], [0], [0], [1], [0, 0, 1, 1], [], []>} : vector<2x128xbf16>, vector<128x384xbf16>, vector<2x384xf32> -> vector<2x384xf32>
    %c1_132 = arith.constant 1 : index
    %c0_133 = arith.constant 0 : index
    %c0_134 = arith.constant 0 : index
    %307 = vector.load %arg4[%c1_132, %c0_133, %c0_134] : memref<2x1x384xf32, #tpu.memory_space<vmem>>, vector<1x1x384xf32>
    %308 = vector.shape_cast %307 : vector<1x1x384xf32> to vector<1x384xf32>
    %309 = vector.broadcast %308 : vector<1x384xf32> to vector<2x384xf32>
    %310 = arith.addf %306, %309 : vector<2x384xf32>
    %c1_135 = arith.constant 1 : index
    %c0_136 = arith.constant 0 : index
    %c0_137 = arith.constant 0 : index
    %311 = vector.load %arg5[%c1_135, %c0_136, %c0_137] : memref<2x1x128xf32, #tpu.memory_space<vmem>>, vector<1x1x128xf32>
    %312 = vector.shape_cast %311 : vector<1x1x128xf32> to vector<1x128xf32>
    %313 = vector.extract_strided_slice %310 {offsets = [0, 0], sizes = [2, 256], strides = [1, 1]} : vector<2x384xf32> to vector<2x256xf32>
    %314 = vector.extract_strided_slice %303 {offsets = [0, 0], sizes = [2, 256], strides = [1, 1]} : vector<2x384xf32> to vector<2x256xf32>
    %315 = arith.addf %313, %314 : vector<2x256xf32>
    %316 = arith.negf %315 : vector<2x256xf32>
    %317 = math.exp %316 : vector<2x256xf32>
    %cst_138 = arith.constant 1.000000e+00 : f32
    %318 = vector.broadcast %cst_138 : f32 to vector<2x256xf32>
    %319 = arith.addf %318, %317 : vector<2x256xf32>
    %320 = arith.divf %318, %319 : vector<2x256xf32>
    %321 = vector.extract_strided_slice %320 {offsets = [0, 0], sizes = [2, 128], strides = [1, 1]} : vector<2x256xf32> to vector<2x128xf32>
    %322 = vector.extract_strided_slice %320 {offsets = [0, 128], sizes = [2, 128], strides = [1, 1]} : vector<2x256xf32> to vector<2x128xf32>
    %323 = vector.extract_strided_slice %310 {offsets = [0, 256], sizes = [2, 128], strides = [1, 1]} : vector<2x384xf32> to vector<2x128xf32>
    %324 = vector.extract_strided_slice %303 {offsets = [0, 256], sizes = [2, 128], strides = [1, 1]} : vector<2x384xf32> to vector<2x128xf32>
    %325 = vector.broadcast %312 : vector<1x128xf32> to vector<2x128xf32>
    %326 = arith.addf %324, %325 : vector<2x128xf32>
    %327 = arith.mulf %321, %326 : vector<2x128xf32>
    %328 = arith.addf %323, %327 : vector<2x128xf32>
    %329 = math.tanh %328 : vector<2x128xf32>
    %cst_139 = arith.constant 1.000000e+00 : f32
    %330 = vector.broadcast %cst_139 : f32 to vector<2x128xf32>
    %331 = arith.subf %330, %322 : vector<2x128xf32>
    %332 = arith.mulf %331, %329 : vector<2x128xf32>
    %333 = arith.mulf %322, %269 : vector<2x128xf32>
    %334 = arith.addf %332, %333 : vector<2x128xf32>
    %335 = arith.truncf %298 : vector<2x128xf32> to vector<2x128xbf16>
    %c0_140 = arith.constant 0 : index
    %c0_141 = arith.constant 0 : index
    %c0_142 = arith.constant 0 : index
    %336 = vector.load %arg3[%c0_140, %c0_141, %c0_142] : memref<2x128x384xbf16, #tpu.memory_space<vmem>>, vector<1x128x384xbf16>
    %337 = vector.shape_cast %336 : vector<1x128x384xbf16> to vector<128x384xbf16>
    %cst_143 = arith.constant dense<0.000000e+00> : vector<2x384xf32>
    %338 = tpu.matmul %335, %337, %cst_143 {dimension_numbers = #tpu.dot_dimension_numbers<[1], [0], [0], [1], [0, 0, 1, 1], [], []>} : vector<2x128xbf16>, vector<128x384xbf16>, vector<2x384xf32> -> vector<2x384xf32>
    %c10 = arith.constant 10 : index
    %c0_144 = arith.constant 0 : index
    %339 = vector.load %arg9[%c10, %c0_144] : memref<16x384xf32, #tpu.memory_space<vmem>>, vector<2x384xf32>
    %c0_145 = arith.constant 0 : index
    %c0_146 = arith.constant 0 : index
    %c0_147 = arith.constant 0 : index
    %340 = vector.load %arg5[%c0_145, %c0_146, %c0_147] : memref<2x1x128xf32, #tpu.memory_space<vmem>>, vector<1x1x128xf32>
    %341 = vector.shape_cast %340 : vector<1x1x128xf32> to vector<1x128xf32>
    %342 = vector.extract_strided_slice %339 {offsets = [0, 0], sizes = [2, 256], strides = [1, 1]} : vector<2x384xf32> to vector<2x256xf32>
    %343 = vector.extract_strided_slice %338 {offsets = [0, 0], sizes = [2, 256], strides = [1, 1]} : vector<2x384xf32> to vector<2x256xf32>
    %344 = arith.addf %342, %343 : vector<2x256xf32>
    %345 = arith.negf %344 : vector<2x256xf32>
    %346 = math.exp %345 : vector<2x256xf32>
    %cst_148 = arith.constant 1.000000e+00 : f32
    %347 = vector.broadcast %cst_148 : f32 to vector<2x256xf32>
    %348 = arith.addf %347, %346 : vector<2x256xf32>
    %349 = arith.divf %347, %348 : vector<2x256xf32>
    %350 = vector.extract_strided_slice %349 {offsets = [0, 0], sizes = [2, 128], strides = [1, 1]} : vector<2x256xf32> to vector<2x128xf32>
    %351 = vector.extract_strided_slice %349 {offsets = [0, 128], sizes = [2, 128], strides = [1, 1]} : vector<2x256xf32> to vector<2x128xf32>
    %352 = vector.extract_strided_slice %339 {offsets = [0, 256], sizes = [2, 128], strides = [1, 1]} : vector<2x384xf32> to vector<2x128xf32>
    %353 = vector.extract_strided_slice %338 {offsets = [0, 256], sizes = [2, 128], strides = [1, 1]} : vector<2x384xf32> to vector<2x128xf32>
    %354 = vector.broadcast %341 : vector<1x128xf32> to vector<2x128xf32>
    %355 = arith.addf %353, %354 : vector<2x128xf32>
    %356 = arith.mulf %350, %355 : vector<2x128xf32>
    %357 = arith.addf %352, %356 : vector<2x128xf32>
    %358 = math.tanh %357 : vector<2x128xf32>
    %cst_149 = arith.constant 1.000000e+00 : f32
    %359 = vector.broadcast %cst_149 : f32 to vector<2x128xf32>
    %360 = arith.subf %359, %351 : vector<2x128xf32>
    %361 = arith.mulf %360, %358 : vector<2x128xf32>
    %362 = arith.mulf %351, %298 : vector<2x128xf32>
    %363 = arith.addf %361, %362 : vector<2x128xf32>
    %364 = arith.truncf %363 : vector<2x128xf32> to vector<2x128xbf16>
    %365 = arith.truncf %334 : vector<2x128xf32> to vector<2x128xbf16>
    %c1_150 = arith.constant 1 : index
    %c0_151 = arith.constant 0 : index
    %c0_152 = arith.constant 0 : index
    %366 = vector.load %arg3[%c1_150, %c0_151, %c0_152] : memref<2x128x384xbf16, #tpu.memory_space<vmem>>, vector<1x128x384xbf16>
    %367 = vector.shape_cast %366 : vector<1x128x384xbf16> to vector<128x384xbf16>
    %cst_153 = arith.constant dense<0.000000e+00> : vector<2x384xf32>
    %368 = tpu.matmul %365, %367, %cst_153 {dimension_numbers = #tpu.dot_dimension_numbers<[1], [0], [0], [1], [0, 0, 1, 1], [], []>} : vector<2x128xbf16>, vector<128x384xbf16>, vector<2x384xf32> -> vector<2x384xf32>
    %c0_154 = arith.constant 0 : index
    %c0_155 = arith.constant 0 : index
    %c0_156 = arith.constant 0 : index
    %369 = vector.load %arg2[%c0_154, %c0_155, %c0_156] : memref<1x128x384xbf16, #tpu.memory_space<vmem>>, vector<1x128x384xbf16>
    %370 = vector.shape_cast %369 : vector<1x128x384xbf16> to vector<128x384xbf16>
    %cst_157 = arith.constant dense<0.000000e+00> : vector<2x384xf32>
    %371 = tpu.matmul %364, %370, %cst_157 {dimension_numbers = #tpu.dot_dimension_numbers<[1], [0], [0], [1], [0, 0, 1, 1], [], []>} : vector<2x128xbf16>, vector<128x384xbf16>, vector<2x384xf32> -> vector<2x384xf32>
    %c1_158 = arith.constant 1 : index
    %c0_159 = arith.constant 0 : index
    %c0_160 = arith.constant 0 : index
    %372 = vector.load %arg4[%c1_158, %c0_159, %c0_160] : memref<2x1x384xf32, #tpu.memory_space<vmem>>, vector<1x1x384xf32>
    %373 = vector.shape_cast %372 : vector<1x1x384xf32> to vector<1x384xf32>
    %374 = vector.broadcast %373 : vector<1x384xf32> to vector<2x384xf32>
    %375 = arith.addf %371, %374 : vector<2x384xf32>
    %c1_161 = arith.constant 1 : index
    %c0_162 = arith.constant 0 : index
    %c0_163 = arith.constant 0 : index
    %376 = vector.load %arg5[%c1_161, %c0_162, %c0_163] : memref<2x1x128xf32, #tpu.memory_space<vmem>>, vector<1x1x128xf32>
    %377 = vector.shape_cast %376 : vector<1x1x128xf32> to vector<1x128xf32>
    %378 = vector.extract_strided_slice %375 {offsets = [0, 0], sizes = [2, 256], strides = [1, 1]} : vector<2x384xf32> to vector<2x256xf32>
    %379 = vector.extract_strided_slice %368 {offsets = [0, 0], sizes = [2, 256], strides = [1, 1]} : vector<2x384xf32> to vector<2x256xf32>
    %380 = arith.addf %378, %379 : vector<2x256xf32>
    %381 = arith.negf %380 : vector<2x256xf32>
    %382 = math.exp %381 : vector<2x256xf32>
    %cst_164 = arith.constant 1.000000e+00 : f32
    %383 = vector.broadcast %cst_164 : f32 to vector<2x256xf32>
    %384 = arith.addf %383, %382 : vector<2x256xf32>
    %385 = arith.divf %383, %384 : vector<2x256xf32>
    %386 = vector.extract_strided_slice %385 {offsets = [0, 0], sizes = [2, 128], strides = [1, 1]} : vector<2x256xf32> to vector<2x128xf32>
    %387 = vector.extract_strided_slice %385 {offsets = [0, 128], sizes = [2, 128], strides = [1, 1]} : vector<2x256xf32> to vector<2x128xf32>
    %388 = vector.extract_strided_slice %375 {offsets = [0, 256], sizes = [2, 128], strides = [1, 1]} : vector<2x384xf32> to vector<2x128xf32>
    %389 = vector.extract_strided_slice %368 {offsets = [0, 256], sizes = [2, 128], strides = [1, 1]} : vector<2x384xf32> to vector<2x128xf32>
    %390 = vector.broadcast %377 : vector<1x128xf32> to vector<2x128xf32>
    %391 = arith.addf %389, %390 : vector<2x128xf32>
    %392 = arith.mulf %386, %391 : vector<2x128xf32>
    %393 = arith.addf %388, %392 : vector<2x128xf32>
    %394 = math.tanh %393 : vector<2x128xf32>
    %cst_165 = arith.constant 1.000000e+00 : f32
    %395 = vector.broadcast %cst_165 : f32 to vector<2x128xf32>
    %396 = arith.subf %395, %387 : vector<2x128xf32>
    %397 = arith.mulf %396, %394 : vector<2x128xf32>
    %398 = arith.mulf %387, %334 : vector<2x128xf32>
    %399 = arith.addf %397, %398 : vector<2x128xf32>
    %400 = arith.truncf %363 : vector<2x128xf32> to vector<2x128xbf16>
    %c0_166 = arith.constant 0 : index
    %c0_167 = arith.constant 0 : index
    %c0_168 = arith.constant 0 : index
    %401 = vector.load %arg3[%c0_166, %c0_167, %c0_168] : memref<2x128x384xbf16, #tpu.memory_space<vmem>>, vector<1x128x384xbf16>
    %402 = vector.shape_cast %401 : vector<1x128x384xbf16> to vector<128x384xbf16>
    %cst_169 = arith.constant dense<0.000000e+00> : vector<2x384xf32>
    %403 = tpu.matmul %400, %402, %cst_169 {dimension_numbers = #tpu.dot_dimension_numbers<[1], [0], [0], [1], [0, 0, 1, 1], [], []>} : vector<2x128xbf16>, vector<128x384xbf16>, vector<2x384xf32> -> vector<2x384xf32>
    %c12 = arith.constant 12 : index
    %c0_170 = arith.constant 0 : index
    %404 = vector.load %arg9[%c12, %c0_170] : memref<16x384xf32, #tpu.memory_space<vmem>>, vector<2x384xf32>
    %c0_171 = arith.constant 0 : index
    %c0_172 = arith.constant 0 : index
    %c0_173 = arith.constant 0 : index
    %405 = vector.load %arg5[%c0_171, %c0_172, %c0_173] : memref<2x1x128xf32, #tpu.memory_space<vmem>>, vector<1x1x128xf32>
    %406 = vector.shape_cast %405 : vector<1x1x128xf32> to vector<1x128xf32>
    %407 = vector.extract_strided_slice %404 {offsets = [0, 0], sizes = [2, 256], strides = [1, 1]} : vector<2x384xf32> to vector<2x256xf32>
    %408 = vector.extract_strided_slice %403 {offsets = [0, 0], sizes = [2, 256], strides = [1, 1]} : vector<2x384xf32> to vector<2x256xf32>
    %409 = arith.addf %407, %408 : vector<2x256xf32>
    %410 = arith.negf %409 : vector<2x256xf32>
    %411 = math.exp %410 : vector<2x256xf32>
    %cst_174 = arith.constant 1.000000e+00 : f32
    %412 = vector.broadcast %cst_174 : f32 to vector<2x256xf32>
    %413 = arith.addf %412, %411 : vector<2x256xf32>
    %414 = arith.divf %412, %413 : vector<2x256xf32>
    %415 = vector.extract_strided_slice %414 {offsets = [0, 0], sizes = [2, 128], strides = [1, 1]} : vector<2x256xf32> to vector<2x128xf32>
    %416 = vector.extract_strided_slice %414 {offsets = [0, 128], sizes = [2, 128], strides = [1, 1]} : vector<2x256xf32> to vector<2x128xf32>
    %417 = vector.extract_strided_slice %404 {offsets = [0, 256], sizes = [2, 128], strides = [1, 1]} : vector<2x384xf32> to vector<2x128xf32>
    %418 = vector.extract_strided_slice %403 {offsets = [0, 256], sizes = [2, 128], strides = [1, 1]} : vector<2x384xf32> to vector<2x128xf32>
    %419 = vector.broadcast %406 : vector<1x128xf32> to vector<2x128xf32>
    %420 = arith.addf %418, %419 : vector<2x128xf32>
    %421 = arith.mulf %415, %420 : vector<2x128xf32>
    %422 = arith.addf %417, %421 : vector<2x128xf32>
    %423 = math.tanh %422 : vector<2x128xf32>
    %cst_175 = arith.constant 1.000000e+00 : f32
    %424 = vector.broadcast %cst_175 : f32 to vector<2x128xf32>
    %425 = arith.subf %424, %416 : vector<2x128xf32>
    %426 = arith.mulf %425, %423 : vector<2x128xf32>
    %427 = arith.mulf %416, %363 : vector<2x128xf32>
    %428 = arith.addf %426, %427 : vector<2x128xf32>
    %429 = arith.truncf %428 : vector<2x128xf32> to vector<2x128xbf16>
    %430 = arith.truncf %399 : vector<2x128xf32> to vector<2x128xbf16>
    %c1_176 = arith.constant 1 : index
    %c0_177 = arith.constant 0 : index
    %c0_178 = arith.constant 0 : index
    %431 = vector.load %arg3[%c1_176, %c0_177, %c0_178] : memref<2x128x384xbf16, #tpu.memory_space<vmem>>, vector<1x128x384xbf16>
    %432 = vector.shape_cast %431 : vector<1x128x384xbf16> to vector<128x384xbf16>
    %cst_179 = arith.constant dense<0.000000e+00> : vector<2x384xf32>
    %433 = tpu.matmul %430, %432, %cst_179 {dimension_numbers = #tpu.dot_dimension_numbers<[1], [0], [0], [1], [0, 0, 1, 1], [], []>} : vector<2x128xbf16>, vector<128x384xbf16>, vector<2x384xf32> -> vector<2x384xf32>
    %c0_180 = arith.constant 0 : index
    %c0_181 = arith.constant 0 : index
    %c0_182 = arith.constant 0 : index
    %434 = vector.load %arg2[%c0_180, %c0_181, %c0_182] : memref<1x128x384xbf16, #tpu.memory_space<vmem>>, vector<1x128x384xbf16>
    %435 = vector.shape_cast %434 : vector<1x128x384xbf16> to vector<128x384xbf16>
    %cst_183 = arith.constant dense<0.000000e+00> : vector<2x384xf32>
    %436 = tpu.matmul %429, %435, %cst_183 {dimension_numbers = #tpu.dot_dimension_numbers<[1], [0], [0], [1], [0, 0, 1, 1], [], []>} : vector<2x128xbf16>, vector<128x384xbf16>, vector<2x384xf32> -> vector<2x384xf32>
    %c1_184 = arith.constant 1 : index
    %c0_185 = arith.constant 0 : index
    %c0_186 = arith.constant 0 : index
    %437 = vector.load %arg4[%c1_184, %c0_185, %c0_186] : memref<2x1x384xf32, #tpu.memory_space<vmem>>, vector<1x1x384xf32>
    %438 = vector.shape_cast %437 : vector<1x1x384xf32> to vector<1x384xf32>
    %439 = vector.broadcast %438 : vector<1x384xf32> to vector<2x384xf32>
    %440 = arith.addf %436, %439 : vector<2x384xf32>
    %c1_187 = arith.constant 1 : index
    %c0_188 = arith.constant 0 : index
    %c0_189 = arith.constant 0 : index
    %441 = vector.load %arg5[%c1_187, %c0_188, %c0_189] : memref<2x1x128xf32, #tpu.memory_space<vmem>>, vector<1x1x128xf32>
    %442 = vector.shape_cast %441 : vector<1x1x128xf32> to vector<1x128xf32>
    %443 = vector.extract_strided_slice %440 {offsets = [0, 0], sizes = [2, 256], strides = [1, 1]} : vector<2x384xf32> to vector<2x256xf32>
    %444 = vector.extract_strided_slice %433 {offsets = [0, 0], sizes = [2, 256], strides = [1, 1]} : vector<2x384xf32> to vector<2x256xf32>
    %445 = arith.addf %443, %444 : vector<2x256xf32>
    %446 = arith.negf %445 : vector<2x256xf32>
    %447 = math.exp %446 : vector<2x256xf32>
    %cst_190 = arith.constant 1.000000e+00 : f32
    %448 = vector.broadcast %cst_190 : f32 to vector<2x256xf32>
    %449 = arith.addf %448, %447 : vector<2x256xf32>
    %450 = arith.divf %448, %449 : vector<2x256xf32>
    %451 = vector.extract_strided_slice %450 {offsets = [0, 0], sizes = [2, 128], strides = [1, 1]} : vector<2x256xf32> to vector<2x128xf32>
    %452 = vector.extract_strided_slice %450 {offsets = [0, 128], sizes = [2, 128], strides = [1, 1]} : vector<2x256xf32> to vector<2x128xf32>
    %453 = vector.extract_strided_slice %440 {offsets = [0, 256], sizes = [2, 128], strides = [1, 1]} : vector<2x384xf32> to vector<2x128xf32>
    %454 = vector.extract_strided_slice %433 {offsets = [0, 256], sizes = [2, 128], strides = [1, 1]} : vector<2x384xf32> to vector<2x128xf32>
    %455 = vector.broadcast %442 : vector<1x128xf32> to vector<2x128xf32>
    %456 = arith.addf %454, %455 : vector<2x128xf32>
    %457 = arith.mulf %451, %456 : vector<2x128xf32>
    %458 = arith.addf %453, %457 : vector<2x128xf32>
    %459 = math.tanh %458 : vector<2x128xf32>
    %cst_191 = arith.constant 1.000000e+00 : f32
    %460 = vector.broadcast %cst_191 : f32 to vector<2x128xf32>
    %461 = arith.subf %460, %452 : vector<2x128xf32>
    %462 = arith.mulf %461, %459 : vector<2x128xf32>
    %463 = arith.mulf %452, %399 : vector<2x128xf32>
    %464 = arith.addf %462, %463 : vector<2x128xf32>
    %465 = arith.truncf %428 : vector<2x128xf32> to vector<2x128xbf16>
    %c0_192 = arith.constant 0 : index
    %c0_193 = arith.constant 0 : index
    %c0_194 = arith.constant 0 : index
    %466 = vector.load %arg3[%c0_192, %c0_193, %c0_194] : memref<2x128x384xbf16, #tpu.memory_space<vmem>>, vector<1x128x384xbf16>
    %467 = vector.shape_cast %466 : vector<1x128x384xbf16> to vector<128x384xbf16>
    %cst_195 = arith.constant dense<0.000000e+00> : vector<2x384xf32>
    %468 = tpu.matmul %465, %467, %cst_195 {dimension_numbers = #tpu.dot_dimension_numbers<[1], [0], [0], [1], [0, 0, 1, 1], [], []>} : vector<2x128xbf16>, vector<128x384xbf16>, vector<2x384xf32> -> vector<2x384xf32>
    %c14 = arith.constant 14 : index
    %c0_196 = arith.constant 0 : index
    %469 = vector.load %arg9[%c14, %c0_196] : memref<16x384xf32, #tpu.memory_space<vmem>>, vector<2x384xf32>
    %c0_197 = arith.constant 0 : index
    %c0_198 = arith.constant 0 : index
    %c0_199 = arith.constant 0 : index
    %470 = vector.load %arg5[%c0_197, %c0_198, %c0_199] : memref<2x1x128xf32, #tpu.memory_space<vmem>>, vector<1x1x128xf32>
    %471 = vector.shape_cast %470 : vector<1x1x128xf32> to vector<1x128xf32>
    %472 = vector.extract_strided_slice %469 {offsets = [0, 0], sizes = [2, 256], strides = [1, 1]} : vector<2x384xf32> to vector<2x256xf32>
    %473 = vector.extract_strided_slice %468 {offsets = [0, 0], sizes = [2, 256], strides = [1, 1]} : vector<2x384xf32> to vector<2x256xf32>
    %474 = arith.addf %472, %473 : vector<2x256xf32>
    %475 = arith.negf %474 : vector<2x256xf32>
    %476 = math.exp %475 : vector<2x256xf32>
    %cst_200 = arith.constant 1.000000e+00 : f32
    %477 = vector.broadcast %cst_200 : f32 to vector<2x256xf32>
    %478 = arith.addf %477, %476 : vector<2x256xf32>
    %479 = arith.divf %477, %478 : vector<2x256xf32>
    %480 = vector.extract_strided_slice %479 {offsets = [0, 0], sizes = [2, 128], strides = [1, 1]} : vector<2x256xf32> to vector<2x128xf32>
    %481 = vector.extract_strided_slice %479 {offsets = [0, 128], sizes = [2, 128], strides = [1, 1]} : vector<2x256xf32> to vector<2x128xf32>
    %482 = vector.extract_strided_slice %469 {offsets = [0, 256], sizes = [2, 128], strides = [1, 1]} : vector<2x384xf32> to vector<2x128xf32>
    %483 = vector.extract_strided_slice %468 {offsets = [0, 256], sizes = [2, 128], strides = [1, 1]} : vector<2x384xf32> to vector<2x128xf32>
    %484 = vector.broadcast %471 : vector<1x128xf32> to vector<2x128xf32>
    %485 = arith.addf %483, %484 : vector<2x128xf32>
    %486 = arith.mulf %480, %485 : vector<2x128xf32>
    %487 = arith.addf %482, %486 : vector<2x128xf32>
    %488 = math.tanh %487 : vector<2x128xf32>
    %cst_201 = arith.constant 1.000000e+00 : f32
    %489 = vector.broadcast %cst_201 : f32 to vector<2x128xf32>
    %490 = arith.subf %489, %481 : vector<2x128xf32>
    %491 = arith.mulf %490, %488 : vector<2x128xf32>
    %492 = arith.mulf %481, %428 : vector<2x128xf32>
    %493 = arith.addf %491, %492 : vector<2x128xf32>
    %494 = arith.truncf %493 : vector<2x128xf32> to vector<2x128xbf16>
    %495 = arith.truncf %464 : vector<2x128xf32> to vector<2x128xbf16>
    %c1_202 = arith.constant 1 : index
    %c0_203 = arith.constant 0 : index
    %c0_204 = arith.constant 0 : index
    %496 = vector.load %arg3[%c1_202, %c0_203, %c0_204] : memref<2x128x384xbf16, #tpu.memory_space<vmem>>, vector<1x128x384xbf16>
    %497 = vector.shape_cast %496 : vector<1x128x384xbf16> to vector<128x384xbf16>
    %cst_205 = arith.constant dense<0.000000e+00> : vector<2x384xf32>
    %498 = tpu.matmul %495, %497, %cst_205 {dimension_numbers = #tpu.dot_dimension_numbers<[1], [0], [0], [1], [0, 0, 1, 1], [], []>} : vector<2x128xbf16>, vector<128x384xbf16>, vector<2x384xf32> -> vector<2x384xf32>
    %c0_206 = arith.constant 0 : index
    %c0_207 = arith.constant 0 : index
    %c0_208 = arith.constant 0 : index
    %499 = vector.load %arg2[%c0_206, %c0_207, %c0_208] : memref<1x128x384xbf16, #tpu.memory_space<vmem>>, vector<1x128x384xbf16>
    %500 = vector.shape_cast %499 : vector<1x128x384xbf16> to vector<128x384xbf16>
    %cst_209 = arith.constant dense<0.000000e+00> : vector<2x384xf32>
    %501 = tpu.matmul %494, %500, %cst_209 {dimension_numbers = #tpu.dot_dimension_numbers<[1], [0], [0], [1], [0, 0, 1, 1], [], []>} : vector<2x128xbf16>, vector<128x384xbf16>, vector<2x384xf32> -> vector<2x384xf32>
    %c1_210 = arith.constant 1 : index
    %c0_211 = arith.constant 0 : index
    %c0_212 = arith.constant 0 : index
    %502 = vector.load %arg4[%c1_210, %c0_211, %c0_212] : memref<2x1x384xf32, #tpu.memory_space<vmem>>, vector<1x1x384xf32>
    %503 = vector.shape_cast %502 : vector<1x1x384xf32> to vector<1x384xf32>
    %504 = vector.broadcast %503 : vector<1x384xf32> to vector<2x384xf32>
    %505 = arith.addf %501, %504 : vector<2x384xf32>
    %c1_213 = arith.constant 1 : index
    %c0_214 = arith.constant 0 : index
    %c0_215 = arith.constant 0 : index
    %506 = vector.load %arg5[%c1_213, %c0_214, %c0_215] : memref<2x1x128xf32, #tpu.memory_space<vmem>>, vector<1x1x128xf32>
    %507 = vector.shape_cast %506 : vector<1x1x128xf32> to vector<1x128xf32>
    %508 = vector.extract_strided_slice %505 {offsets = [0, 0], sizes = [2, 256], strides = [1, 1]} : vector<2x384xf32> to vector<2x256xf32>
    %509 = vector.extract_strided_slice %498 {offsets = [0, 0], sizes = [2, 256], strides = [1, 1]} : vector<2x384xf32> to vector<2x256xf32>
    %510 = arith.addf %508, %509 : vector<2x256xf32>
    %511 = arith.negf %510 : vector<2x256xf32>
    %512 = math.exp %511 : vector<2x256xf32>
    %cst_216 = arith.constant 1.000000e+00 : f32
    %513 = vector.broadcast %cst_216 : f32 to vector<2x256xf32>
    %514 = arith.addf %513, %512 : vector<2x256xf32>
    %515 = arith.divf %513, %514 : vector<2x256xf32>
    %516 = vector.extract_strided_slice %515 {offsets = [0, 0], sizes = [2, 128], strides = [1, 1]} : vector<2x256xf32> to vector<2x128xf32>
    %517 = vector.extract_strided_slice %515 {offsets = [0, 128], sizes = [2, 128], strides = [1, 1]} : vector<2x256xf32> to vector<2x128xf32>
    %518 = vector.extract_strided_slice %505 {offsets = [0, 256], sizes = [2, 128], strides = [1, 1]} : vector<2x384xf32> to vector<2x128xf32>
    %519 = vector.extract_strided_slice %498 {offsets = [0, 256], sizes = [2, 128], strides = [1, 1]} : vector<2x384xf32> to vector<2x128xf32>
    %520 = vector.broadcast %507 : vector<1x128xf32> to vector<2x128xf32>
    %521 = arith.addf %519, %520 : vector<2x128xf32>
    %522 = arith.mulf %516, %521 : vector<2x128xf32>
    %523 = arith.addf %518, %522 : vector<2x128xf32>
    %524 = math.tanh %523 : vector<2x128xf32>
    %cst_217 = arith.constant 1.000000e+00 : f32
    %525 = vector.broadcast %cst_217 : f32 to vector<2x128xf32>
    %526 = arith.subf %525, %517 : vector<2x128xf32>
    %527 = arith.mulf %526, %524 : vector<2x128xf32>
    %528 = arith.mulf %517, %464 : vector<2x128xf32>
    %529 = arith.addf %527, %528 : vector<2x128xf32>
    %c0_218 = arith.constant 0 : index
    %c0_219 = arith.constant 0 : index
    %530 = vector.load %arg6[%c0_218, %c0_219] : memref<128x2xf32, #tpu.memory_space<vmem>>, vector<128x2xf32>
    %cst_220 = arith.constant dense<0.000000e+00> : vector<2x2xf32>
    %531 = tpu.matmul %529, %530, %cst_220 {dimension_numbers = #tpu.dot_dimension_numbers<[1], [0], [0], [1], [0, 0, 1, 1], [], []>} : vector<2x128xf32>, vector<128x2xf32>, vector<2x2xf32> -> vector<2x2xf32>
    %c0_221 = arith.constant 0 : index
    %c0_222 = arith.constant 0 : index
    %532 = vector.load %arg7[%c0_221, %c0_222] : memref<1x2xf32, #tpu.memory_space<vmem>>, vector<1x2xf32>
    %533 = vector.broadcast %532 : vector<1x2xf32> to vector<2x2xf32>
    %534 = arith.addf %531, %533 : vector<2x2xf32>
    %535 = math.tanh %534 : vector<2x2xf32>
    %c0_223 = arith.constant 0 : index
    %c0_224 = arith.constant 0 : index
    %536 = vector.load %arg8[%c0_223, %c0_224] : memref<2x2xf32, #tpu.memory_space<vmem>>, vector<2x2xf32>
    tpu.vector_store %arg8[%c0_223, %c0_224], %535 {strides = array<i32>} : memref<2x2xf32, #tpu.memory_space<vmem>>, vector<2x2xf32>,
    return
  }
}

</mosaic_0001>

<llo_original>
// kernel: tpu_custom_call.1
$region0: #{tpu_custom_call.1}
  #allocation0 [shape = 'u32[]', space=smem, size = 0x4, offset = 0x4, fixed_abs, tag = 'smem constant byte address 0x4 - core index']
  #allocation1 [shape = 'u32[144,128]{1,0:T(1,128)}', space=vmem, size = 0x12000, scoped, tag = 'internal scratch']
  #allocation2 [shape = 'f32[16,384]{1,0:T(8,128)}', space=vmem, size = 0x6000, scoped, tag = 'scratch operand']
  %s0 = inlined_call_operand.vmem [shape: bf16[16,6], index: 0, kind: input, shape index: {}]
  %s1 = inlined_call_operand.vmem [shape: bf16[6,384], index: 1, kind: input, shape index: {}]
  %s2 = inlined_call_operand.hbm [shape: bf16[1,128,384], index: 2, kind: input, shape index: {}]
  %s3 = inlined_call_operand.hbm [shape: bf16[2,128,384], index: 3, kind: input, shape index: {}]
  %s4 = inlined_call_operand.vmem [shape: f32[2,1,384], index: 4, kind: input, shape index: {}]
  %s5 = inlined_call_operand.vmem [shape: f32[2,1,128], index: 5, kind: input, shape index: {}]
  %s6 = inlined_call_operand.vmem [shape: f32[128,2], index: 6, kind: input, shape index: {}]
  %s7 = inlined_call_operand.vmem [shape: f32[1,2], index: 7, kind: input, shape index: {}]
  %s8 = inlined_call_operand.hbm [shape: f32[2,2], index: 8, kind: output, shape index: {}]
  %s9 = sld [smem:[#allocation0]]
  $region50: #{tpu_custom_call.1} parent=0
    _
  %s11 = ssub.s32 1, %s9
  %s12 = scalar_select 0, %s11, %s9
  $region1: #{tpu_custom_call.1} parent=0
    #allocation3 [shape = 'u8[98304]{0}', space=vmem, size = 0x18000, scoped, tag = 'input window, operand 2, single buffered']
    #allocation4 [shape = 's32[1]{0}', space=sflag, size = 0x4, scoped, tag = 'scoped memory for tpu_custom_call.1']
    #allocation5 [shape = 's32[1]{0}', space=sflag, size = 0x4, scoped, tag = 'scoped memory for tpu_custom_call.1']
    #allocation6 [shape = 'u8[196608]{0}', space=vmem, size = 0x30000, scoped, tag = 'input window, operand 3, single buffered']
    #allocation7 [shape = 's32[1]{0}', space=sflag, size = 0x4, scoped, tag = 'scoped memory for tpu_custom_call.1']
    #allocation8 [shape = 'u8[1024]{0}', space=vmem, size = 0x400, scoped, tag = 'output window, operand 0, single buffered']
    %13 = vsyncpa [#allocation4], 0
    %14 = vsyncpa [#allocation7], 0
    %15 = vsyncpa [#allocation5], 0
    // Predicated region
    $region2: #{tpu_custom_call.1} parent=1 // pred_check
      _
    $region3: #{tpu_custom_call.1} parent=1 // pred_check_branch
      %17 = sbr.rel (0) target = $region5
    $region4: #{tpu_custom_call.1} parent=1 // pred_region
      _
    $region5: #{tpu_custom_call.1} parent=1 // pred_fallthru
      _
    // Predicated region
    $region6: #{tpu_custom_call.1} parent=1 // pred_check
      _
    $region7: #{tpu_custom_call.1} parent=1 // pred_check_branch
      %19 = sbr.rel (0) target = $region9
    $region8: #{tpu_custom_call.1} parent=1 // pred_region
      _
    $region9: #{tpu_custom_call.1} parent=1 // pred_fallthru
      _
    // Predicated region
    $region10: #{tpu_custom_call.1} parent=1 // pred_check
      _
    $region11: #{tpu_custom_call.1} parent=1 // pred_check_branch
      %21 = sbr.rel (0) target = $region13
    $region12: #{tpu_custom_call.1} parent=1 // pred_region
      %s23 = ssub.s32 3072, 3072
      %24 = vsyncadd [#allocation4], %s23
      %s25 = sshll.u32 [#allocation3], 4
      %s26 = int_to_ptr.vmem [resolvable:$true] %s25
      %31 = dma.hbm_to_vmem [thread:$0]  %s2, 3072, %s26, [#allocation4], 192, 192, 12
    $region13: #{tpu_custom_call.1} parent=1 // pred_fallthru
      _
    // Predicated region
    $region14: #{tpu_custom_call.1} parent=1 // pred_check
      _
    $region15: #{tpu_custom_call.1} parent=1 // pred_check_branch
      %33 = sbr.rel (0) target = $region17
    $region16: #{tpu_custom_call.1} parent=1 // pred_region
      %s35 = ssub.s32 6144, 6144
      %36 = vsyncadd [#allocation7], %s35
      %s37 = sshll.u32 [#allocation6], 4
      %s38 = int_to_ptr.vmem [resolvable:$true] %s37
      %43 = dma.hbm_to_vmem [thread:$0]  %s3, 6144, %s38, [#allocation7], 192, 192, 12
    $region17: #{tpu_custom_call.1} parent=1 // pred_fallthru
      _
    // Predicated region
    $region18: #{tpu_custom_call.1} parent=1 // pred_check
      _
    $region19: #{tpu_custom_call.1} parent=1 // pred_check_branch
      %45 = sbr.rel (0) target = $region21
    $region20: #{tpu_custom_call.1} parent=1 // pred_region
      _
    $region21: #{tpu_custom_call.1} parent=1 // pred_fallthru
      _
    // Predicated region
    $region22: #{tpu_custom_call.1} parent=1 // pred_check
      _
    $region23: #{tpu_custom_call.1} parent=1 // pred_check_branch
      %47 = sbr.rel (0) target = $region25
    $region24: #{tpu_custom_call.1} parent=1 // pred_region
      _
    $region25: #{tpu_custom_call.1} parent=1 // pred_fallthru
      _
    // Predicated region
    $region26: #{tpu_custom_call.1} parent=1 // pred_check
      _
    $region27: #{tpu_custom_call.1} parent=1 // pred_check_branch
      %49 = sbr.rel (0) target = $region29
    $region28: #{tpu_custom_call.1} parent=1 // pred_region
      _
    $region29: #{tpu_custom_call.1} parent=1 // pred_fallthru
      _
    // Predicated region
    $region30: #{tpu_custom_call.1} parent=1 // pred_check
      _
    $region31: #{tpu_custom_call.1} parent=1 // pred_check_branch
      %51 = sbr.rel (0) target = $region33
    $region32: #{tpu_custom_call.1} parent=1 // pred_region
      _
    $region33: #{tpu_custom_call.1} parent=1 // pred_fallthru
      _
    // Predicated region
    $region34: #{tpu_custom_call.1} parent=1 // pred_check
      _
    $region35: #{tpu_custom_call.1} parent=1 // pred_check_branch
      %53 = sbr.rel (0) target = $region37
    $region36: #{tpu_custom_call.1} parent=1 // pred_region
      %54 = dma.done [#allocation4], 3072
    $region37: #{tpu_custom_call.1} parent=1 // pred_fallthru
      _
    // Predicated region
    $region38: #{tpu_custom_call.1} parent=1 // pred_check
      _
    $region39: #{tpu_custom_call.1} parent=1 // pred_check_branch
      %56 = sbr.rel (0) target = $region41
    $region40: #{tpu_custom_call.1} parent=1 // pred_region
      %57 = dma.done [#allocation7], 6144
    $region41: #{tpu_custom_call.1} parent=1 // pred_fallthru
      _
    %v59 = vld [vmem:[%s0] sm:$0xf]
    %v60 = vld [vmem:[%s0 + $0x4] sm:$0xf]
    %v61 = vld [vmem:[%s1] sm:$0x77]
    %v62 = vld [vmem:[%s1 + $0x8] sm:$0x7]
    %v63 = vld [vmem:[%s4] sm:$0x7]
    %v65 = vlaneseq
    %v66 = vshrl.u32 %v65, 7
    %v67 = vsub.s32 0, %v66
    %v68 = vrot.slane %v63, %v67
    %v69 = vlaneseq
    %v70 = vshrl.u32 %v69, 7
    %v71 = vsub.s32 1, %v70
    %v72 = vrot.slane %v63, %v71
    %v73 = vlaneseq
    %v74 = vshrl.u32 %v73, 7
    %v75 = vsub.s32 2, %v74
    %v76 = vrot.slane %v63, %v75
    %v82 = vunpack.c.l.b16 %v59
    %v83 = vunpack.c.l.b16 %v60
    %v84 = vpack.c.b16 %v83, %v82
    %v87 = vunpack.c.l.b16 %v61
    %v88 = vunpack.c.h.b16 %v61
    %v89 = vunpack.c.l.b16 %v62
    %v90 = vpack.c.b16 %v87, %v87
    %v91 = vpack.c.b16 %v88, %v88
    %v92 = vpack.c.b16 %v89, %v89
    %vm93 = vcmask 48128
    %v95 = vsel %vm93, %v84, 0
    %vm97 = vcmask 1042432
    %v99 = vsel %vm97, %v90, 0
    %v102 = vsel %vm97, %v91, 0
    %v105 = vsel %vm97, %v92, 0
    %107 = vmatprep.subr.bf16.mxu0 %v102
    %108 = vmatpush1.bf16.msra.mxu0 %v99
    %109 = vmatprep.subr.bf16.mxu0 0
    %110 = vmatpush1.bf16.msra.mxu0 0
    %111 = vmatprep.subr.bf16.mxu0 0
    %112 = vmatpush1.bf16.msra.mxu0 0
    %113 = vmatprep.subr.bf16.mxu0 0
    %114 = vmatpush1.bf16.msra.mxu0 0
    %115 = vmatprep.subr.bf16.mxu0 0
    %116 = vmatpush1.bf16.msra.mxu0 0
    %117 = vmatprep.subr.bf16.mxu0 0
    %118 = vmatpush1.bf16.msra.mxu0 0
    %119 = vmatprep.subr.bf16.mxu0 0
    %120 = vmatpush1.bf16.msra.mxu0 0
    %121 = vmatprep.subr.bf16.mxu0 0
    %122 = vmatpush1.bf16.msra.mxu0 0
    %123 = vmatprep.subr.bf16.mxu0 0
    %124 = vmatpush1.bf16.msra.mxu0 0
    %125 = vmatprep.subr.bf16.mxu0 0
    %126 = vmatpush1.bf16.msra.mxu0 0
    %127 = vmatprep.subr.bf16.mxu0 0
    %128 = vmatpush1.bf16.msra.mxu0 0
    %129 = vmatprep.subr.bf16.mxu0 0
    %130 = vmatpush1.bf16.msra.mxu0 0
    %131 = vmatprep.subr.bf16.mxu0 0
    %132 = vmatpush1.bf16.msra.mxu0 0
    %133 = vmatprep.subr.bf16.mxu0 0
    %134 = vmatpush1.bf16.msra.mxu0 0
    %135 = vmatprep.subr.bf16.mxu0 0
    %136 = vmatpush1.bf16.msra.mxu0 0
    %137 = vmatprep.subr.bf16.mxu0 0
    %138 = vmatpush1.bf16.msra.mxu0 0
    %139 = vmatprep.mubr.bf16.mxu0 0
    %140 = vmatmul.mubr.bf16.gmra.mrb[0].mxu0 %v95
    %v141 = vpop.f32.mrb[0].mxu0
    %v142 = vadd.f32 %v68, %v141
    %v143 = vpop.f32.mrb[0].mxu0
    %v144 = vadd.f32 %v72, %v143
    %v145 = vpop.f32.mrb[0].mxu0
    %v146 = vadd.f32 %v68, %v145
    %v147 = vpop.f32.mrb[0].mxu0
    %v148 = vadd.f32 %v72, %v147
    %149 = vdwg.mxu0
    %150 = vmatprep.subr.bf16.mxu0 0
    %151 = vmatpush1.bf16.msra.mxu0 %v105
    %152 = vmatprep.subr.bf16.mxu0 0
    %153 = vmatpush1.bf16.msra.mxu0 0
    %154 = vmatprep.subr.bf16.mxu0 0
    %155 = vmatpush1.bf16.msra.mxu0 0
    %156 = vmatprep.subr.bf16.mxu0 0
    %157 = vmatpush1.bf16.msra.mxu0 0
    %158 = vmatprep.subr.bf16.mxu0 0
    %159 = vmatpush1.bf16.msra.mxu0 0
    %160 = vmatprep.subr.bf16.mxu0 0
    %161 = vmatpush1.bf16.msra.mxu0 0
    %162 = vmatprep.subr.bf16.mxu0 0
    %163 = vmatpush1.bf16.msra.mxu0 0
    %164 = vmatprep.subr.bf16.mxu0 0
    %165 = vmatpush1.bf16.msra.mxu0 0
    %166 = vmatprep.subr.bf16.mxu0 0
    %167 = vmatpush1.bf16.msra.mxu0 0
    %168 = vmatprep.subr.bf16.mxu0 0
    %169 = vmatpush1.bf16.msra.mxu0 0
    %170 = vmatprep.subr.bf16.mxu0 0
    %171 = vmatpush1.bf16.msra.mxu0 0
    %172 = vmatprep.subr.bf16.mxu0 0
    %173 = vmatpush1.bf16.msra.mxu0 0
    %174 = vmatprep.subr.bf16.mxu0 0
    %175 = vmatpush1.bf16.msra.mxu0 0
    %176 = vmatprep.subr.bf16.mxu0 0
    %177 = vmatpush1.bf16.msra.mxu0 0
    %178 = vmatprep.subr.bf16.mxu0 0
    %179 = vmatpush1.bf16.msra.mxu0 0
    %180 = vmatprep.subr.bf16.mxu0 0
    %181 = vmatpush1.bf16.msra.mxu0 0
    %182 = vmatprep.mubr.bf16.mxu0 0
    %183 = vmatmul.mubr.bf16.gmra.mrb[0].mxu0 %v95
    %v184 = vpop.f32.mrb[0].mxu0
    %v185 = vadd.f32 %v76, %v184
    %v186 = vpop.f32.mrb[0].mxu0
    %v187 = vpop.f32.mrb[0].mxu0
    %v188 = vadd.f32 %v76, %v187
    %v189 = vpop.f32.mrb[0].mxu0
    %190 = vdwg.mxu0
    %191 = vst [vmem:[#allocation2] sm:$0xff] %v142
    %192 = vst [vmem:[#allocation2 + $0x8] sm:$0xff] %v144
    %193 = vst [vmem:[#allocation2 + $0x10] sm:$0xff] %v185
    %194 = vst [vmem:[#allocation2 + $0x18] sm:$0xff] %v146
    %195 = vst [vmem:[#allocation2 + $0x20] sm:$0xff] %v148
    %196 = vst [vmem:[#allocation2 + $0x28] sm:$0xff] %v188
    %v197 = vld [vmem:[#allocation6] sm:$0xff]
    %v198 = vld [vmem:[#allocation6 + $0x8] sm:$0xf]
    %v199 = vld [vmem:[#allocation6 + $0xc] sm:$0xff]
    %v200 = vld [vmem:[#allocation6 + $0x14] sm:$0xf]
    %v201 = vld [vmem:[#allocation6 + $0x18] sm:$0xff]
    %v202 = vld [vmem:[#allocation6 + $0x20] sm:$0xf]
    %v203 = vld [vmem:[#allocation6 + $0x24] sm:$0xff]
    %v204 = vld [vmem:[#allocation6 + $0x2c] sm:$0xf]
    %v205 = vld [vmem:[#allocation6 + $0x30] sm:$0xff]
    %v206 = vld [vmem:[#allocation6 + $0x38] sm:$0xf]
    %v207 = vld [vmem:[#allocation6 + $0x3c] sm:$0xff]
    %v208 = vld [vmem:[#allocation6 + $0x44] sm:$0xf]
    %v209 = vld [vmem:[#allocation6 + $0x48] sm:$0xff]
    %v210 = vld [vmem:[#allocation6 + $0x50] sm:$0xf]
    %v211 = vld [vmem:[#allocation6 + $0x54] sm:$0xff]
    %v212 = vld [vmem:[#allocation6 + $0x5c] sm:$0xf]
    %v213 = vld [vmem:[#allocation6 + $0x60] sm:$0xff]
    %v214 = vld [vmem:[#allocation6 + $0x68] sm:$0xf]
    %v215 = vld [vmem:[#allocation6 + $0x6c] sm:$0xff]
    %v216 = vld [vmem:[#allocation6 + $0x74] sm:$0xf]
    %v217 = vld [vmem:[#allocation6 + $0x78] sm:$0xff]
    %v218 = vld [vmem:[#allocation6 + $0x80] sm:$0xf]
    %v219 = vld [vmem:[#allocation6 + $0x84] sm:$0xff]
    %v220 = vld [vmem:[#allocation6 + $0x8c] sm:$0xf]
    %v221 = vld [vmem:[#allocation6 + $0x90] sm:$0xff]
    %v222 = vld [vmem:[#allocation6 + $0x98] sm:$0xf]
    %v223 = vld [vmem:[#allocation6 + $0x9c] sm:$0xff]
    %v224 = vld [vmem:[#allocation6 + $0xa4] sm:$0xf]
    %v225 = vld [vmem:[#allocation6 + $0xa8] sm:$0xff]
    %v226 = vld [vmem:[#allocation6 + $0xb0] sm:$0xf]
    %v227 = vld [vmem:[#allocation6 + $0xb4] sm:$0xff]
    %v228 = vld [vmem:[#allocation6 + $0xbc] sm:$0xf]
    %v261 = vunpack.c.l.b16 %v197
    %v262 = vunpack.c.h.b16 %v197
    %v263 = vunpack.c.l.b16 %v198
    %v264 = vunpack.c.l.b16 %v199
    %v265 = vunpack.c.h.b16 %v199
    %v266 = vunpack.c.l.b16 %v200
    %v267 = vunpack.c.l.b16 %v201
    %v268 = vunpack.c.h.b16 %v201
    %v269 = vunpack.c.l.b16 %v202
    %v270 = vunpack.c.l.b16 %v203
    %v271 = vunpack.c.h.b16 %v203
    %v272 = vunpack.c.l.b16 %v204
    %v273 = vunpack.c.l.b16 %v205
    %v274 = vunpack.c.h.b16 %v205
    %v275 = vunpack.c.l.b16 %v206
    %v276 = vunpack.c.l.b16 %v207
    %v277 = vunpack.c.h.b16 %v207
    %v278 = vunpack.c.l.b16 %v208
    %v279 = vunpack.c.l.b16 %v209
    %v280 = vunpack.c.h.b16 %v209
    %v281 = vunpack.c.l.b16 %v210
    %v282 = vunpack.c.l.b16 %v211
    %v283 = vunpack.c.h.b16 %v211
    %v284 = vunpack.c.l.b16 %v212
    %v285 = vunpack.c.l.b16 %v213
    %v286 = vunpack.c.h.b16 %v213
    %v287 = vunpack.c.l.b16 %v214
    %v288 = vunpack.c.l.b16 %v215
    %v289 = vunpack.c.h.b16 %v215
    %v290 = vunpack.c.l.b16 %v216
    %v291 = vunpack.c.l.b16 %v217
    %v292 = vunpack.c.h.b16 %v217
    %v293 = vunpack.c.l.b16 %v218
    %v294 = vunpack.c.l.b16 %v219
    %v295 = vunpack.c.h.b16 %v219
    %v296 = vunpack.c.l.b16 %v220
    %v297 = vunpack.c.l.b16 %v221
    %v298 = vunpack.c.h.b16 %v221
    %v299 = vunpack.c.l.b16 %v222
    %v300 = vunpack.c.l.b16 %v223
    %v301 = vunpack.c.h.b16 %v223
    %v302 = vunpack.c.l.b16 %v224
    %v303 = vunpack.c.l.b16 %v225
    %v304 = vunpack.c.h.b16 %v225
    %v305 = vunpack.c.l.b16 %v226
    %v306 = vunpack.c.l.b16 %v227
    %v307 = vunpack.c.h.b16 %v227
    %v308 = vunpack.c.l.b16 %v228
    %v309 = vpack.c.b16 %v264, %v261
    %v310 = vpack.c.b16 %v265, %v262
    %v311 = vpack.c.b16 %v266, %v263
    %v312 = vpack.c.b16 %v270, %v267
    %v313 = vpack.c.b16 %v271, %v268
    %v314 = vpack.c.b16 %v272, %v269
    %v315 = vpack.c.b16 %v276, %v273
    %v316 = vpack.c.b16 %v277, %v274
    %v317 = vpack.c.b16 %v278, %v275
    %v318 = vpack.c.b16 %v282, %v279
    %v319 = vpack.c.b16 %v283, %v280
    %v320 = vpack.c.b16 %v284, %v281
    %v321 = vpack.c.b16 %v288, %v285
    %v322 = vpack.c.b16 %v289, %v286
    %v323 = vpack.c.b16 %v290, %v287
    %v324 = vpack.c.b16 %v294, %v291
    %v325 = vpack.c.b16 %v295, %v292
    %v326 = vpack.c.b16 %v296, %v293
    %v327 = vpack.c.b16 %v300, %v297
    %v328 = vpack.c.b16 %v301, %v298
    %v329 = vpack.c.b16 %v302, %v299
    %v330 = vpack.c.b16 %v306, %v303
    %v331 = vpack.c.b16 %v307, %v304
    %v332 = vpack.c.b16 %v308, %v305
    %357 = vmatprep.subr.bf16.mxu0 %v310
    %358 = vmatpush1.bf16.msra.mxu0 %v309
    %359 = vmatprep.subr.bf16.mxu0 %v313
    %360 = vmatpush1.bf16.msra.mxu0 %v312
    %361 = vmatprep.subr.bf16.mxu0 %v316
    %362 = vmatpush1.bf16.msra.mxu0 %v315
    %363 = vmatprep.subr.bf16.mxu0 %v319
    %364 = vmatpush1.bf16.msra.mxu0 %v318
    %365 = vmatprep.subr.bf16.mxu0 %v322
    %366 = vmatpush1.bf16.msra.mxu0 %v321
    %367 = vmatprep.subr.bf16.mxu0 %v325
    %368 = vmatpush1.bf16.msra.mxu0 %v324
    %369 = vmatprep.subr.bf16.mxu0 %v328
    %370 = vmatpush1.bf16.msra.mxu0 %v327
    %371 = vmatprep.subr.bf16.mxu0 %v331
    %372 = vmatpush1.bf16.msra.mxu0 %v330
    %373 = vmatprep.subr.bf16.mxu0 0
    %374 = vmatpush1.bf16.msra.mxu0 0
    %375 = vmatprep.subr.bf16.mxu0 0
    %376 = vmatpush1.bf16.msra.mxu0 0
    %377 = vmatprep.subr.bf16.mxu0 0
    %378 = vmatpush1.bf16.msra.mxu0 0
    %379 = vmatprep.subr.bf16.mxu0 0
    %380 = vmatpush1.bf16.msra.mxu0 0
    %381 = vmatprep.subr.bf16.mxu0 0
    %382 = vmatpush1.bf16.msra.mxu0 0
    %383 = vmatprep.subr.bf16.mxu0 0
    %384 = vmatpush1.bf16.msra.mxu0 0
    %385 = vmatprep.subr.bf16.mxu0 0
    %386 = vmatpush1.bf16.msra.mxu0 0
    %387 = vmatprep.subr.bf16.mxu0 0
    %388 = vmatpush1.bf16.msra.mxu0 0
    %389 = vmatprep.mubr.bf16.mxu0 0
    %390 = vmatmul.mubr.bf16.gmra.mrb[0].mxu0 0
    %v391 = vpop.f32.mrb[0].mxu0
    %v392 = vadd.f32 0.0, %v391
    %v393 = vpop.f32.mrb[0].mxu0
    %v394 = vadd.f32 0.0, %v393
    %v395 = vpop.f32.mrb[0].mxu0
    %v396 = vpop.f32.mrb[0].mxu0
    %397 = vdwg.mxu0
    %398 = vmatprep.subr.bf16.mxu0 0
    %399 = vmatpush1.bf16.msra.mxu0 %v311
    %400 = vmatprep.subr.bf16.mxu0 0
    %401 = vmatpush1.bf16.msra.mxu0 %v314
    %402 = vmatprep.subr.bf16.mxu0 0
    %403 = vmatpush1.bf16.msra.mxu0 %v317
    %404 = vmatprep.subr.bf16.mxu0 0
    %405 = vmatpush1.bf16.msra.mxu0 %v320
    %406 = vmatprep.subr.bf16.mxu0 0
    %407 = vmatpush1.bf16.msra.mxu0 %v323
    %408 = vmatprep.subr.bf16.mxu0 0
    %409 = vmatpush1.bf16.msra.mxu0 %v326
    %410 = vmatprep.subr.bf16.mxu0 0
    %411 = vmatpush1.bf16.msra.mxu0 %v329
    %412 = vmatprep.subr.bf16.mxu0 0
    %413 = vmatpush1.bf16.msra.mxu0 %v332
    %414 = vmatprep.subr.bf16.mxu0 0
    %415 = vmatpush1.bf16.msra.mxu0 0
    %416 = vmatprep.subr.bf16.mxu0 0
    %417 = vmatpush1.bf16.msra.mxu0 0
    %418 = vmatprep.subr.bf16.mxu0 0
    %419 = vmatpush1.bf16.msra.mxu0 0
    %420 = vmatprep.subr.bf16.mxu0 0
    %421 = vmatpush1.bf16.msra.mxu0 0
    %422 = vmatprep.subr.bf16.mxu0 0
    %423 = vmatpush1.bf16.msra.mxu0 0
    %424 = vmatprep.subr.bf16.mxu0 0
    %425 = vmatpush1.bf16.msra.mxu0 0
    %426 = vmatprep.subr.bf16.mxu0 0
    %427 = vmatpush1.bf16.msra.mxu0 0
    %428 = vmatprep.subr.bf16.mxu0 0
    %429 = vmatpush1.bf16.msra.mxu0 0
    %430 = vmatprep.mubr.bf16.mxu0 0
    %431 = vmatmul.mubr.bf16.gmra.mrb[0].mxu0 0
    %v432 = vpop.f32.mrb[0].mxu0
    %v433 = vadd.f32 0.0, %v432
    %v434 = vpop.f32.mrb[0].mxu0
    %v435 = vpop.f32.mrb[0].mxu0
    %v436 = vpop.f32.mrb[0].mxu0
    %437 = vdwg.mxu0
    %v438 = vld [vmem:[#allocation2] sm:$0x3]
    %v439 = vld [vmem:[#allocation2 + $0x8] sm:$0x3]
    %v440 = vld [vmem:[#allocation2 + $0x10] sm:$0x3]
    %v441 = vld [vmem:[%s5] sm:$0x1]
    %v442 = vadd.f32 %v438, %v392
    %v443 = vadd.f32 %v439, %v394
    %v444 = vxor.u32 %v442, 2147483648
    %v445 = vxor.u32 %v443, 2147483648
    %v446 = vmul.f32 %v444, 1.442695
    %v447 = vpow.pop %v446
    %v448 = vmul.f32 %v445, 1.442695
    %v449 = vpow.pop %v448
    %v450 = vadd.f32 %v447, 1.0
    %v451 = vadd.f32 %v449, 1.0
    %v452 = vrcp.pop %v450
    %v453 = vmul.f32 1.0, %v452
    %v454 = vrcp.pop %v451
    %v455 = vmul.f32 1.0, %v454
    %v457 = vlaneseq
    %v458 = vshrl.u32 %v457, 7
    %v459 = vsub.s32 0, %v458
    %v460 = vrot.slane %v441, %v459
    %v462 = vadd.f32 %v433, %v460
    %v463 = vmul.f32 %v453, %v462
    %v464 = vadd.f32 %v440, %v463
    %v465 = vtanh.pop %v464
    %v466 = vsub.f32 1.0, %v455
    %v467 = vmul.f32 %v466, %v465
    %v468 = vmul.f32 %v455, 0.0
    %v469 = vadd.f32 %v467, %v468
    %v470 = vpack.c.bf16 %v469, %v469
    %s471 = scalar_lea.vmem [#allocation6], 192
    %v472 = vld [vmem:[%s471] sm:$0xff]
    %v473 = vld [vmem:[%s471 + $0x8] sm:$0xf]
    %v474 = vld [vmem:[%s471 + $0xc] sm:$0xff]
    %v475 = vld [vmem:[%s471 + $0x14] sm:$0xf]
    %v476 = vld [vmem:[%s471 + $0x18] sm:$0xff]
    %v477 = vld [vmem:[%s471 + $0x20] sm:$0xf]
    %v478 = vld [vmem:[%s471 + $0x24] sm:$0xff]
    %v479 = vld [vmem:[%s471 + $0x2c] sm:$0xf]
    %v480 = vld [vmem:[%s471 + $0x30] sm:$0xff]
    %v481 = vld [vmem:[%s471 + $0x38] sm:$0xf]
    %v482 = vld [vmem:[%s471 + $0x3c] sm:$0xff]
    %v483 = vld [vmem:[%s471 + $0x44] sm:$0xf]
    %v484 = vld [vmem:[%s471 + $0x48] sm:$0xff]
    %v485 = vld [vmem:[%s471 + $0x50] sm:$0xf]
    %v486 = vld [vmem:[%s471 + $0x54] sm:$0xff]
    %v487 = vld [vmem:[%s471 + $0x5c] sm:$0xf]
    %v488 = vld [vmem:[%s471 + $0x60] sm:$0xff]
    %v489 = vld [vmem:[%s471 + $0x68] sm:$0xf]
    %v490 = vld [vmem:[%s471 + $0x6c] sm:$0xff]
    %v491 = vld [vmem:[%s471 + $0x74] sm:$0xf]
    %v492 = vld [vmem:[%s471 + $0x78] sm:$0xff]
    %v493 = vld [vmem:[%s471 + $0x80] sm:$0xf]
    %v494 = vld [vmem:[%s471 + $0x84] sm:$0xff]
    %v495 = vld [vmem:[%s471 + $0x8c] sm:$0xf]
    %v496 = vld [vmem:[%s471 + $0x90] sm:$0xff]
    %v497 = vld [vmem:[%s471 + $0x98] sm:$0xf]
    %v498 = vld [vmem:[%s471 + $0x9c] sm:$0xff]
    %v499 = vld [vmem:[%s471 + $0xa4] sm:$0xf]
    %v500 = vld [vmem:[%s471 + $0xa8] sm:$0xff]
    %v501 = vld [vmem:[%s471 + $0xb0] sm:$0xf]
    %v502 = vld [vmem:[%s471 + $0xb4] sm:$0xff]
    %v503 = vld [vmem:[%s471 + $0xbc] sm:$0xf]
    %v536 = vunpack.c.l.b16 %v472
    %v537 = vunpack.c.h.b16 %v472
    %v538 = vunpack.c.l.b16 %v473
    %v539 = vunpack.c.l.b16 %v474
    %v540 = vunpack.c.h.b16 %v474
    %v541 = vunpack.c.l.b16 %v475
    %v542 = vunpack.c.l.b16 %v476
    %v543 = vunpack.c.h.b16 %v476
    %v544 = vunpack.c.l.b16 %v477
    %v545 = vunpack.c.l.b16 %v478
    %v546 = vunpack.c.h.b16 %v478
    %v547 = vunpack.c.l.b16 %v479
    %v548 = vunpack.c.l.b16 %v480
    %v549 = vunpack.c.h.b16 %v480
    %v550 = vunpack.c.l.b16 %v481
    %v551 = vunpack.c.l.b16 %v482
    %v552 = vunpack.c.h.b16 %v482
    %v553 = vunpack.c.l.b16 %v483
    %v554 = vunpack.c.l.b16 %v484
    %v555 = vunpack.c.h.b16 %v484
    %v556 = vunpack.c.l.b16 %v485
    %v557 = vunpack.c.l.b16 %v486
    %v558 = vunpack.c.h.b16 %v486
    %v559 = vunpack.c.l.b16 %v487
    %v560 = vunpack.c.l.b16 %v488
    %v561 = vunpack.c.h.b16 %v488
    %v562 = vunpack.c.l.b16 %v489
    %v563 = vunpack.c.l.b16 %v490
    %v564 = vunpack.c.h.b16 %v490
    %v565 = vunpack.c.l.b16 %v491
    %v566 = vunpack.c.l.b16 %v492
    %v567 = vunpack.c.h.b16 %v492
    %v568 = vunpack.c.l.b16 %v493
    %v569 = vunpack.c.l.b16 %v494
    %v570 = vunpack.c.h.b16 %v494
    %v571 = vunpack.c.l.b16 %v495
    %v572 = vunpack.c.l.b16 %v496
    %v573 = vunpack.c.h.b16 %v496
    %v574 = vunpack.c.l.b16 %v497
    %v575 = vunpack.c.l.b16 %v498
    %v576 = vunpack.c.h.b16 %v498
    %v577 = vunpack.c.l.b16 %v499
    %v578 = vunpack.c.l.b16 %v500
    %v579 = vunpack.c.h.b16 %v500
    %v580 = vunpack.c.l.b16 %v501
    %v581 = vunpack.c.l.b16 %v502
    %v582 = vunpack.c.h.b16 %v502
    %v583 = vunpack.c.l.b16 %v503
    %v584 = vpack.c.b16 %v539, %v536
    %v585 = vpack.c.b16 %v540, %v537
    %v586 = vpack.c.b16 %v541, %v538
    %v587 = vpack.c.b16 %v545, %v542
    %v588 = vpack.c.b16 %v546, %v543
    %v589 = vpack.c.b16 %v547, %v544
    %v590 = vpack.c.b16 %v551, %v548
    %v591 = vpack.c.b16 %v552, %v549
    %v592 = vpack.c.b16 %v553, %v550
    %v593 = vpack.c.b16 %v557, %v554
    %v594 = vpack.c.b16 %v558, %v555
    %v595 = vpack.c.b16 %v559, %v556
    %v596 = vpack.c.b16 %v563, %v560
    %v597 = vpack.c.b16 %v564, %v561
    %v598 = vpack.c.b16 %v565, %v562
    %v599 = vpack.c.b16 %v569, %v566
    %v600 = vpack.c.b16 %v570, %v567
    %v601 = vpack.c.b16 %v571, %v568
    %v602 = vpack.c.b16 %v575, %v572
    %v603 = vpack.c.b16 %v576, %v573
    %v604 = vpack.c.b16 %v577, %v574
    %v605 = vpack.c.b16 %v581, %v578
    %v606 = vpack.c.b16 %v582, %v579
    %v607 = vpack.c.b16 %v583, %v580
    %632 = vmatprep.subr.bf16.mxu0 %v585
    %633 = vmatpush1.bf16.msra.mxu0 %v584
    %634 = vmatprep.subr.bf16.mxu0 %v588
    %635 = vmatpush1.bf16.msra.mxu0 %v587
    %636 = vmatprep.subr.bf16.mxu0 %v591
    %637 = vmatpush1.bf16.msra.mxu0 %v590
    %638 = vmatprep.subr.bf16.mxu0 %v594
    %639 = vmatpush1.bf16.msra.mxu0 %v593
    %640 = vmatprep.subr.bf16.mxu0 %v597
    %641 = vmatpush1.bf16.msra.mxu0 %v596
    %642 = vmatprep.subr.bf16.mxu0 %v600
    %643 = vmatpush1.bf16.msra.mxu0 %v599
    %644 = vmatprep.subr.bf16.mxu0 %v603
    %645 = vmatpush1.bf16.msra.mxu0 %v602
    %646 = vmatprep.subr.bf16.mxu0 %v606
    %647 = vmatpush1.bf16.msra.mxu0 %v605
    %648 = vmatprep.subr.bf16.mxu0 0
    %649 = vmatpush1.bf16.msra.mxu0 0
    %650 = vmatprep.subr.bf16.mxu0 0
    %651 = vmatpush1.bf16.msra.mxu0 0
    %652 = vmatprep.subr.bf16.mxu0 0
    %653 = vmatpush1.bf16.msra.mxu0 0
    %654 = vmatprep.subr.bf16.mxu0 0
    %655 = vmatpush1.bf16.msra.mxu0 0
    %656 = vmatprep.subr.bf16.mxu0 0
    %657 = vmatpush1.bf16.msra.mxu0 0
    %658 = vmatprep.subr.bf16.mxu0 0
    %659 = vmatpush1.bf16.msra.mxu0 0
    %660 = vmatprep.subr.bf16.mxu0 0
    %661 = vmatpush1.bf16.msra.mxu0 0
    %662 = vmatprep.subr.bf16.mxu0 0
    %663 = vmatpush1.bf16.msra.mxu0 0
    %664 = vmatprep.mubr.bf16.mxu0 0
    %665 = vmatmul.mubr.bf16.gmra.mrb[0].mxu0 0
    %v666 = vpop.f32.mrb[0].mxu0
    %v667 = vadd.f32 0.0, %v666
    %v668 = vpop.f32.mrb[0].mxu0
    %v669 = vadd.f32 0.0, %v668
    %v670 = vpop.f32.mrb[0].mxu0
    %v671 = vpop.f32.mrb[0].mxu0
    %672 = vdwg.mxu0
    %673 = vmatprep.subr.bf16.mxu0 0
    %674 = vmatpush1.bf16.msra.mxu0 %v586
    %675 = vmatprep.subr.bf16.mxu0 0
    %676 = vmatpush1.bf16.msra.mxu0 %v589
    %677 = vmatprep.subr.bf16.mxu0 0
    %678 = vmatpush1.bf16.msra.mxu0 %v592
    %679 = vmatprep.subr.bf16.mxu0 0
    %680 = vmatpush1.bf16.msra.mxu0 %v595
    %681 = vmatprep.subr.bf16.mxu0 0
    %682 = vmatpush1.bf16.msra.mxu0 %v598
    %683 = vmatprep.subr.bf16.mxu0 0
    %684 = vmatpush1.bf16.msra.mxu0 %v601
    %685 = vmatprep.subr.bf16.mxu0 0
    %686 = vmatpush1.bf16.msra.mxu0 %v604
    %687 = vmatprep.subr.bf16.mxu0 0
    %688 = vmatpush1.bf16.msra.mxu0 %v607
    %689 = vmatprep.subr.bf16.mxu0 0
    %690 = vmatpush1.bf16.msra.mxu0 0
    %691 = vmatprep.subr.bf16.mxu0 0
    %692 = vmatpush1.bf16.msra.mxu0 0
    %693 = vmatprep.subr.bf16.mxu0 0
    %694 = vmatpush1.bf16.msra.mxu0 0
    %695 = vmatprep.subr.bf16.mxu0 0
    %696 = vmatpush1.bf16.msra.mxu0 0
    %697 = vmatprep.subr.bf16.mxu0 0
    %698 = vmatpush1.bf16.msra.mxu0 0
    %699 = vmatprep.subr.bf16.mxu0 0
    %700 = vmatpush1.bf16.msra.mxu0 0
    %701 = vmatprep.subr.bf16.mxu0 0
    %702 = vmatpush1.bf16.msra.mxu0 0
    %703 = vmatprep.subr.bf16.mxu0 0
    %704 = vmatpush1.bf16.msra.mxu0 0
    %705 = vmatprep.mubr.bf16.mxu0 0
    %706 = vmatmul.mubr.bf16.gmra.mrb[0].mxu0 0
    %v707 = vpop.f32.mrb[0].mxu0
    %v708 = vadd.f32 0.0, %v707
    %v709 = vpop.f32.mrb[0].mxu0
    %v710 = vpop.f32.mrb[0].mxu0
    %v711 = vpop.f32.mrb[0].mxu0
    %712 = vdwg.mxu0
    %v713 = vld [vmem:[#allocation3] sm:$0xff]
    %v714 = vld [vmem:[#allocation3 + $0x8] sm:$0xf]
    %v715 = vld [vmem:[#allocation3 + $0xc] sm:$0xff]
    %v716 = vld [vmem:[#allocation3 + $0x14] sm:$0xf]
    %v717 = vld [vmem:[#allocation3 + $0x18] sm:$0xff]
    %v718 = vld [vmem:[#allocation3 + $0x20] sm:$0xf]
    %v719 = vld [vmem:[#allocation3 + $0x24] sm:$0xff]
    %v720 = vld [vmem:[#allocation3 + $0x2c] sm:$0xf]
    %v721 = vld [vmem:[#allocation3 + $0x30] sm:$0xff]
    %v722 = vld [vmem:[#allocation3 + $0x38] sm:$0xf]
    %v723 = vld [vmem:[#allocation3 + $0x3c] sm:$0xff]
    %v724 = vld [vmem:[#allocation3 + $0x44] sm:$0xf]
    %v725 = vld [vmem:[#allocation3 + $0x48] sm:$0xff]
    %v726 = vld [vmem:[#allocation3 + $0x50] sm:$0xf]
    %v727 = vld [vmem:[#allocation3 + $0x54] sm:$0xff]
    %v728 = vld [vmem:[#allocation3 + $0x5c] sm:$0xf]
    %v729 = vld [vmem:[#allocation3 + $0x60] sm:$0xff]
    %v730 = vld [vmem:[#allocation3 + $0x68] sm:$0xf]
    %v731 = vld [vmem:[#allocation3 + $0x6c] sm:$0xff]
    %v732 = vld [vmem:[#allocation3 + $0x74] sm:$0xf]
    %v733 = vld [vmem:[#allocation3 + $0x78] sm:$0xff]
    %v734 = vld [vmem:[#allocation3 + $0x80] sm:$0xf]
    %v735 = vld [vmem:[#allocation3 + $0x84] sm:$0xff]
    %v736 = vld [vmem:[#allocation3 + $0x8c] sm:$0xf]
    %v737 = vld [vmem:[#allocation3 + $0x90] sm:$0xff]
    %v738 = vld [vmem:[#allocation3 + $0x98] sm:$0xf]
    %v739 = vld [vmem:[#allocation3 + $0x9c] sm:$0xff]
    %v740 = vld [vmem:[#allocation3 + $0xa4] sm:$0xf]
    %v741 = vld [vmem:[#allocation3 + $0xa8] sm:$0xff]
    %v742 = vld [vmem:[#allocation3 + $0xb0] sm:$0xf]
    %v743 = vld [vmem:[#allocation3 + $0xb4] sm:$0xff]
    %v744 = vld [vmem:[#allocation3 + $0xbc] sm:$0xf]
    %s745 = scalar_lea.vmem %s4, 3
    %v746 = vld [vmem:[%s745] sm:$0x7]
    %v748 = vlaneseq
    %v749 = vshrl.u32 %v748, 7
    %v750 = vsub.s32 0, %v749
    %v751 = vrot.slane %v746, %v750
    %v752 = vlaneseq
    %v753 = vshrl.u32 %v752, 7
    %v754 = vsub.s32 1, %v753
    %v755 = vrot.slane %v746, %v754
    %v756 = vlaneseq
    %v757 = vshrl.u32 %v756, 7
    %v758 = vsub.s32 2, %v757
    %v759 = vrot.slane %v746, %v758
    %v795 = vunpack.c.l.b16 %v713
    %v796 = vunpack.c.h.b16 %v713
    %v797 = vunpack.c.l.b16 %v714
    %v798 = vunpack.c.l.b16 %v715
    %v799 = vunpack.c.h.b16 %v715
    %v800 = vunpack.c.l.b16 %v716
    %v801 = vunpack.c.l.b16 %v717
    %v802 = vunpack.c.h.b16 %v717
    %v803 = vunpack.c.l.b16 %v718
    %v804 = vunpack.c.l.b16 %v719
    %v805 = vunpack.c.h.b16 %v719
    %v806 = vunpack.c.l.b16 %v720
    %v807 = vunpack.c.l.b16 %v721
    %v808 = vunpack.c.h.b16 %v721
    %v809 = vunpack.c.l.b16 %v722
    %v810 = vunpack.c.l.b16 %v723
    %v811 = vunpack.c.h.b16 %v723
    %v812 = vunpack.c.l.b16 %v724
    %v813 = vunpack.c.l.b16 %v725
    %v814 = vunpack.c.h.b16 %v725
    %v815 = vunpack.c.l.b16 %v726
    %v816 = vunpack.c.l.b16 %v727
    %v817 = vunpack.c.h.b16 %v727
    %v818 = vunpack.c.l.b16 %v728
    %v819 = vunpack.c.l.b16 %v729
    %v820 = vunpack.c.h.b16 %v729
    %v821 = vunpack.c.l.b16 %v730
    %v822 = vunpack.c.l.b16 %v731
    %v823 = vunpack.c.h.b16 %v731
    %v824 = vunpack.c.l.b16 %v732
    %v825 = vunpack.c.l.b16 %v733
    %v826 = vunpack.c.h.b16 %v733
    %v827 = vunpack.c.l.b16 %v734
    %v828 = vunpack.c.l.b16 %v735
    %v829 = vunpack.c.h.b16 %v735
    %v830 = vunpack.c.l.b16 %v736
    %v831 = vunpack.c.l.b16 %v737
    %v832 = vunpack.c.h.b16 %v737
    %v833 = vunpack.c.l.b16 %v738
    %v834 = vunpack.c.l.b16 %v739
    %v835 = vunpack.c.h.b16 %v739
    %v836 = vunpack.c.l.b16 %v740
    %v837 = vunpack.c.l.b16 %v741
    %v838 = vunpack.c.h.b16 %v741
    %v839 = vunpack.c.l.b16 %v742
    %v840 = vunpack.c.l.b16 %v743
    %v841 = vunpack.c.h.b16 %v743
    %v842 = vunpack.c.l.b16 %v744
    %v843 = vpack.c.b16 %v798, %v795
    %v844 = vpack.c.b16 %v799, %v796
    %v845 = vpack.c.b16 %v800, %v797
    %v846 = vpack.c.b16 %v804, %v801
    %v847 = vpack.c.b16 %v805, %v802
    %v848 = vpack.c.b16 %v806, %v803
    %v849 = vpack.c.b16 %v810, %v807
    %v850 = vpack.c.b16 %v811, %v808
    %v851 = vpack.c.b16 %v812, %v809
    %v852 = vpack.c.b16 %v816, %v813
    %v853 = vpack.c.b16 %v817, %v814
    %v854 = vpack.c.b16 %v818, %v815
    %v855 = vpack.c.b16 %v822, %v819
    %v856 = vpack.c.b16 %v823, %v820
    %v857 = vpack.c.b16 %v824, %v821
    %v858 = vpack.c.b16 %v828, %v825
    %v859 = vpack.c.b16 %v829, %v826
    %v860 = vpack.c.b16 %v830, %v827
    %v861 = vpack.c.b16 %v834, %v831
    %v862 = vpack.c.b16 %v835, %v832
    %v863 = vpack.c.b16 %v836, %v833
    %v864 = vpack.c.b16 %v840, %v837
    %v865 = vpack.c.b16 %v841, %v838
    %v866 = vpack.c.b16 %v842, %v839
    %891 = vmatprep.subr.bf16.mxu0 %v844
    %892 = vmatpush1.bf16.msra.mxu0 %v843
    %893 = vmatprep.subr.bf16.mxu0 %v847
    %894 = vmatpush1.bf16.msra.mxu0 %v846
    %895 = vmatprep.subr.bf16.mxu0 %v850
    %896 = vmatpush1.bf16.msra.mxu0 %v849
    %897 = vmatprep.subr.bf16.mxu0 %v853
    %898 = vmatpush1.bf16.msra.mxu0 %v852
    %899 = vmatprep.subr.bf16.mxu0 %v856
    %900 = vmatpush1.bf16.msra.mxu0 %v855
    %901 = vmatprep.subr.bf16.mxu0 %v859
    %902 = vmatpush1.bf16.msra.mxu0 %v858
    %903 = vmatprep.subr.bf16.mxu0 %v862
    %904 = vmatpush1.bf16.msra.mxu0 %v861
    %905 = vmatprep.subr.bf16.mxu0 %v865
    %906 = vmatpush1.bf16.msra.mxu0 %v864
    %907 = vmatprep.subr.bf16.mxu0 0
    %908 = vmatpush1.bf16.msra.mxu0 0
    %909 = vmatprep.subr.bf16.mxu0 0
    %910 = vmatpush1.bf16.msra.mxu0 0
    %911 = vmatprep.subr.bf16.mxu0 0
    %912 = vmatpush1.bf16.msra.mxu0 0
    %913 = vmatprep.subr.bf16.mxu0 0
    %914 = vmatpush1.bf16.msra.mxu0 0
    %915 = vmatprep.subr.bf16.mxu0 0
    %916 = vmatpush1.bf16.msra.mxu0 0
    %917 = vmatprep.subr.bf16.mxu0 0
    %918 = vmatpush1.bf16.msra.mxu0 0
    %919 = vmatprep.subr.bf16.mxu0 0
    %920 = vmatpush1.bf16.msra.mxu0 0
    %921 = vmatprep.subr.bf16.mxu0 0
    %922 = vmatpush1.bf16.msra.mxu0 0
    %923 = vmatprep.mubr.bf16.mxu0 0
    %924 = vmatmul.mubr.bf16.gmra.mrb[0].mxu0 %v470
    %v925 = vpop.f32.mrb[0].mxu0
    %v926 = vadd.f32 %v751, %v925
    %v927 = vpop.f32.mrb[0].mxu0
    %v928 = vadd.f32 %v755, %v927
    %v929 = vpop.f32.mrb[0].mxu0
    %v930 = vpop.f32.mrb[0].mxu0
    %931 = vdwg.mxu0
    %932 = vmatprep.subr.bf16.mxu0 0
    %933 = vmatpush1.bf16.msra.mxu0 %v845
    %934 = vmatprep.subr.bf16.mxu0 0
    %935 = vmatpush1.bf16.msra.mxu0 %v848
    %936 = vmatprep.subr.bf16.mxu0 0
    %937 = vmatpush1.bf16.msra.mxu0 %v851
    %938 = vmatprep.subr.bf16.mxu0 0
    %939 = vmatpush1.bf16.msra.mxu0 %v854
    %940 = vmatprep.subr.bf16.mxu0 0
    %941 = vmatpush1.bf16.msra.mxu0 %v857
    %942 = vmatprep.subr.bf16.mxu0 0
    %943 = vmatpush1.bf16.msra.mxu0 %v860
    %944 = vmatprep.subr.bf16.mxu0 0
    %945 = vmatpush1.bf16.msra.mxu0 %v863
    %946 = vmatprep.subr.bf16.mxu0 0
    %947 = vmatpush1.bf16.msra.mxu0 %v866
    %948 = vmatprep.subr.bf16.mxu0 0
    %949 = vmatpush1.bf16.msra.mxu0 0
    %950 = vmatprep.subr.bf16.mxu0 0
    %951 = vmatpush1.bf16.msra.mxu0 0
    %952 = vmatprep.subr.bf16.mxu0 0
    %953 = vmatpush1.bf16.msra.mxu0 0
    %954 = vmatprep.subr.bf16.mxu0 0
    %955 = vmatpush1.bf16.msra.mxu0 0
    %956 = vmatprep.subr.bf16.mxu0 0
    %957 = vmatpush1.bf16.msra.mxu0 0
    %958 = vmatprep.subr.bf16.mxu0 0
    %959 = vmatpush1.bf16.msra.mxu0 0
    %960 = vmatprep.subr.bf16.mxu0 0
    %961 = vmatpush1.bf16.msra.mxu0 0
    %962 = vmatprep.subr.bf16.mxu0 0
    %963 = vmatpush1.bf16.msra.mxu0 0
    %964 = vmatprep.mubr.bf16.mxu0 0
    %965 = vmatmul.mubr.bf16.gmra.mrb[0].mxu0 %v470
    %v966 = vpop.f32.mrb[0].mxu0
    %v967 = vadd.f32 %v759, %v966
    %v968 = vpop.f32.mrb[0].mxu0
    %v969 = vpop.f32.mrb[0].mxu0
    %v970 = vpop.f32.mrb[0].mxu0
    %971 = vdwg.mxu0
    %s972 = scalar_lea.vmem %s5, 1
    %v973 = vld [vmem:[%s972] sm:$0x1]
    %v974 = vadd.f32 %v926, %v667
    %v975 = vadd.f32 %v928, %v669
    %v976 = vxor.u32 %v974, 2147483648
    %v977 = vxor.u32 %v975, 2147483648
    %v978 = vmul.f32 %v976, 1.442695
    %v979 = vpow.pop %v978
    %v980 = vmul.f32 %v977, 1.442695
    %v981 = vpow.pop %v980
    %v982 = vadd.f32 %v979, 1.0
    %v983 = vadd.f32 %v981, 1.0
    %v984 = vrcp.pop %v982
    %v985 = vmul.f32 1.0, %v984
    %v986 = vrcp.pop %v983
    %v987 = vmul.f32 1.0, %v986
    %v989 = vlaneseq
    %v990 = vshrl.u32 %v989, 7
    %v991 = vsub.s32 0, %v990
    %v992 = vrot.slane %v973, %v991
    %v994 = vadd.f32 %v708, %v992
    %v995 = vmul.f32 %v985, %v994
    %v996 = vadd.f32 %v967, %v995
    %v997 = vtanh.pop %v996
    %v998 = vsub.f32 1.0, %v987
    %v999 = vmul.f32 %v998, %v997
    %v1000 = vmul.f32 %v987, 0.0
    %v1001 = vadd.f32 %v999, %v1000
    %1002 = vmatprep.subr.bf16.mxu0 %v310
    %1003 = vmatpush1.bf16.msra.mxu0 %v309
    %1004 = vmatprep.subr.bf16.mxu0 %v313
    %1005 = vmatpush1.bf16.msra.mxu0 %v312
    %1006 = vmatprep.subr.bf16.mxu0 %v316
    %1007 = vmatpush1.bf16.msra.mxu0 %v315
    %1008 = vmatprep.subr.bf16.mxu0 %v319
    %1009 = vmatpush1.bf16.msra.mxu0 %v318
    %1010 = vmatprep.subr.bf16.mxu0 %v322
    %1011 = vmatpush1.bf16.msra.mxu0 %v321
    %1012 = vmatprep.subr.bf16.mxu0 %v325
    %1013 = vmatpush1.bf16.msra.mxu0 %v324
    %1014 = vmatprep.subr.bf16.mxu0 %v328
    %1015 = vmatpush1.bf16.msra.mxu0 %v327
    %1016 = vmatprep.subr.bf16.mxu0 %v331
    %1017 = vmatpush1.bf16.msra.mxu0 %v330
    %1018 = vmatprep.subr.bf16.mxu0 0
    %1019 = vmatpush1.bf16.msra.mxu0 0
    %1020 = vmatprep.subr.bf16.mxu0 0
    %1021 = vmatpush1.bf16.msra.mxu0 0
    %1022 = vmatprep.subr.bf16.mxu0 0
    %1023 = vmatpush1.bf16.msra.mxu0 0
    %1024 = vmatprep.subr.bf16.mxu0 0
    %1025 = vmatpush1.bf16.msra.mxu0 0
    %1026 = vmatprep.subr.bf16.mxu0 0
    %1027 = vmatpush1.bf16.msra.mxu0 0
    %1028 = vmatprep.subr.bf16.mxu0 0
    %1029 = vmatpush1.bf16.msra.mxu0 0
    %1030 = vmatprep.subr.bf16.mxu0 0
    %1031 = vmatpush1.bf16.msra.mxu0 0
    %1032 = vmatprep.subr.bf16.mxu0 0
    %1033 = vmatpush1.bf16.msra.mxu0 0
    %1034 = vmatprep.mubr.bf16.mxu0 0
    %1035 = vmatmul.mubr.bf16.gmra.mrb[0].mxu0 %v470
    %v1036 = vpop.f32.mrb[0].mxu0
    %v1037 = vadd.f32 0.0, %v1036
    %v1038 = vpop.f32.mrb[0].mxu0
    %v1039 = vadd.f32 0.0, %v1038
    %v1040 = vpop.f32.mrb[0].mxu0
    %v1041 = vpop.f32.mrb[0].mxu0
    %1042 = vdwg.mxu0
    %1043 = vmatprep.subr.bf16.mxu0 0
    %1044 = vmatpush1.bf16.msra.mxu0 %v311
    %1045 = vmatprep.subr.bf16.mxu0 0
    %1046 = vmatpush1.bf16.msra.mxu0 %v314
    %1047 = vmatprep.subr.bf16.mxu0 0
    %1048 = vmatpush1.bf16.msra.mxu0 %v317
    %1049 = vmatprep.subr.bf16.mxu0 0
    %1050 = vmatpush1.bf16.msra.mxu0 %v320
    %1051 = vmatprep.subr.bf16.mxu0 0
    %1052 = vmatpush1.bf16.msra.mxu0 %v323
    %1053 = vmatprep.subr.bf16.mxu0 0
    %1054 = vmatpush1.bf16.msra.mxu0 %v326
    %1055 = vmatprep.subr.bf16.mxu0 0
    %1056 = vmatpush1.bf16.msra.mxu0 %v329
    %1057 = vmatprep.subr.bf16.mxu0 0
    %1058 = vmatpush1.bf16.msra.mxu0 %v332
    %1059 = vmatprep.subr.bf16.mxu0 0
    %1060 = vmatpush1.bf16.msra.mxu0 0
    %1061 = vmatprep.subr.bf16.mxu0 0
    %1062 = vmatpush1.bf16.msra.mxu0 0
    %1063 = vmatprep.subr.bf16.mxu0 0
    %1064 = vmatpush1.bf16.msra.mxu0 0
    %1065 = vmatprep.subr.bf16.mxu0 0
    %1066 = vmatpush1.bf16.msra.mxu0 0
    %1067 = vmatprep.subr.bf16.mxu0 0
    %1068 = vmatpush1.bf16.msra.mxu0 0
    %1069 = vmatprep.subr.bf16.mxu0 0
    %1070 = vmatpush1.bf16.msra.mxu0 0
    %1071 = vmatprep.subr.bf16.mxu0 0
    %1072 = vmatpush1.bf16.msra.mxu0 0
    %1073 = vmatprep.subr.bf16.mxu0 0
    %1074 = vmatpush1.bf16.msra.mxu0 0
    %1075 = vmatprep.mubr.bf16.mxu0 0
    %1076 = vmatmul.mubr.bf16.gmra.mrb[0].mxu0 %v470
    %v1077 = vpop.f32.mrb[0].mxu0
    %v1078 = vadd.f32 0.0, %v1077
    %v1079 = vpop.f32.mrb[0].mxu0
    %v1080 = vpop.f32.mrb[0].mxu0
    %v1081 = vpop.f32.mrb[0].mxu0
    %1082 = vdwg.mxu0
    %v1083 = vld [vmem:[#allocation2] sm:$0xc]
    %v1084 = vld [vmem:[#allocation2 + $0x8] sm:$0xc]
    %v1085 = vld [vmem:[#allocation2 + $0x10] sm:$0xc]
    %v1088 = vrot.slane %v1037, 6
    %v1089 = vrot.slane %v1039, 6
    %v1092 = vadd.f32 %v1083, %v1088
    %v1093 = vadd.f32 %v1084, %v1089
    %v1094 = vxor.u32 %v1092, 2147483648
    %v1095 = vxor.u32 %v1093, 2147483648
    %v1096 = vmul.f32 %v1094, 1.442695
    %v1097 = vpow.pop %v1096
    %v1098 = vmul.f32 %v1095, 1.442695
    %v1099 = vpow.pop %v1098
    %v1100 = vadd.f32 %v1097, 1.0
    %v1101 = vadd.f32 %v1099, 1.0
    %v1102 = vrcp.pop %v1100
    %v1103 = vmul.f32 1.0, %v1102
    %v1104 = vrcp.pop %v1101
    %v1105 = vmul.f32 1.0, %v1104
    %v1106 = vadd.f32 %v1078, %v460
    %v1108 = vrot.slane %v1106, 6
    %v1110 = vmul.f32 %v1103, %v1108
    %v1111 = vadd.f32 %v1085, %v1110
    %v1112 = vtanh.pop %v1111
    %v1113 = vsub.f32 1.0, %v1105
    %v1114 = vmul.f32 %v1113, %v1112
    %v1116 = vrot.slane %v469, 6
    %v1118 = vmul.f32 %v1105, %v1116
    %v1119 = vadd.f32 %v1114, %v1118
    %v1120 = vpack.c.bf16 %v1119, %v1119
    %v1121 = vpack.c.bf16 %v1001, %v1001
    %1122 = vmatprep.subr.bf16.mxu0 %v585
    %1123 = vmatpush1.bf16.msra.mxu0 %v584
    %1124 = vmatprep.subr.bf16.mxu0 %v588
    %1125 = vmatpush1.bf16.msra.mxu0 %v587
    %1126 = vmatprep.subr.bf16.mxu0 %v591
    %1127 = vmatpush1.bf16.msra.mxu0 %v590
    %1128 = vmatprep.subr.bf16.mxu0 %v594
    %1129 = vmatpush1.bf16.msra.mxu0 %v593
    %1130 = vmatprep.subr.bf16.mxu0 %v597
    %1131 = vmatpush1.bf16.msra.mxu0 %v596
    %1132 = vmatprep.subr.bf16.mxu0 %v600
    %1133 = vmatpush1.bf16.msra.mxu0 %v599
    %1134 = vmatprep.subr.bf16.mxu0 %v603
    %1135 = vmatpush1.bf16.msra.mxu0 %v602
    %1136 = vmatprep.subr.bf16.mxu0 %v606
    %1137 = vmatpush1.bf16.msra.mxu0 %v605
    %1138 = vmatprep.subr.bf16.mxu0 0
    %1139 = vmatpush1.bf16.msra.mxu0 0
    %1140 = vmatprep.subr.bf16.mxu0 0
    %1141 = vmatpush1.bf16.msra.mxu0 0
    %1142 = vmatprep.subr.bf16.mxu0 0
    %1143 = vmatpush1.bf16.msra.mxu0 0
    %1144 = vmatprep.subr.bf16.mxu0 0
    %1145 = vmatpush1.bf16.msra.mxu0 0
    %1146 = vmatprep.subr.bf16.mxu0 0
    %1147 = vmatpush1.bf16.msra.mxu0 0
    %1148 = vmatprep.subr.bf16.mxu0 0
    %1149 = vmatpush1.bf16.msra.mxu0 0
    %1150 = vmatprep.subr.bf16.mxu0 0
    %1151 = vmatpush1.bf16.msra.mxu0 0
    %1152 = vmatprep.subr.bf16.mxu0 0
    %1153 = vmatpush1.bf16.msra.mxu0 0
    %1154 = vmatprep.mubr.bf16.mxu0 0
    %1155 = vmatmul.mubr.bf16.gmra.mrb[0].mxu0 %v1121
    %v1156 = vpop.f32.mrb[0].mxu0
    %v1157 = vadd.f32 0.0, %v1156
    %v1158 = vpop.f32.mrb[0].mxu0
    %v1159 = vadd.f32 0.0, %v1158
    %v1160 = vpop.f32.mrb[0].mxu0
    %v1161 = vpop.f32.mrb[0].mxu0
    %1162 = vdwg.mxu0
    %1163 = vmatprep.subr.bf16.mxu0 0
    %1164 = vmatpush1.bf16.msra.mxu0 %v586
    %1165 = vmatprep.subr.bf16.mxu0 0
    %1166 = vmatpush1.bf16.msra.mxu0 %v589
    %1167 = vmatprep.subr.bf16.mxu0 0
    %1168 = vmatpush1.bf16.msra.mxu0 %v592
    %1169 = vmatprep.subr.bf16.mxu0 0
    %1170 = vmatpush1.bf16.msra.mxu0 %v595
    %1171 = vmatprep.subr.bf16.mxu0 0
    %1172 = vmatpush1.bf16.msra.mxu0 %v598
    %1173 = vmatprep.subr.bf16.mxu0 0
    %1174 = vmatpush1.bf16.msra.mxu0 %v601
    %1175 = vmatprep.subr.bf16.mxu0 0
    %1176 = vmatpush1.bf16.msra.mxu0 %v604
    %1177 = vmatprep.subr.bf16.mxu0 0
    %1178 = vmatpush1.bf16.msra.mxu0 %v607
    %1179 = vmatprep.subr.bf16.mxu0 0
    %1180 = vmatpush1.bf16.msra.mxu0 0
    %1181 = vmatprep.subr.bf16.mxu0 0
    %1182 = vmatpush1.bf16.msra.mxu0 0
    %1183 = vmatprep.subr.bf16.mxu0 0
    %1184 = vmatpush1.bf16.msra.mxu0 0
    %1185 = vmatprep.subr.bf16.mxu0 0
    %1186 = vmatpush1.bf16.msra.mxu0 0
    %1187 = vmatprep.subr.bf16.mxu0 0
    %1188 = vmatpush1.bf16.msra.mxu0 0
    %1189 = vmatprep.subr.bf16.mxu0 0
    %1190 = vmatpush1.bf16.msra.mxu0 0
    %1191 = vmatprep.subr.bf16.mxu0 0
    %1192 = vmatpush1.bf16.msra.mxu0 0
    %1193 = vmatprep.subr.bf16.mxu0 0
    %1194 = vmatpush1.bf16.msra.mxu0 0
    %1195 = vmatprep.mubr.bf16.mxu0 0
    %1196 = vmatmul.mubr.bf16.gmra.mrb[0].mxu0 %v1121
    %v1197 = vpop.f32.mrb[0].mxu0
    %v1198 = vadd.f32 0.0, %v1197
    %v1199 = vpop.f32.mrb[0].mxu0
    %v1200 = vpop.f32.mrb[0].mxu0
    %v1201 = vpop.f32.mrb[0].mxu0
    %1202 = vdwg.mxu0
    %v1204 = vrot.slane %v1120, 1
    %1206 = vmatprep.subr.bf16.mxu0 %v844
    %1207 = vmatpush1.bf16.msra.mxu0 %v843
    %1208 = vmatprep.subr.bf16.mxu0 %v847
    %1209 = vmatpush1.bf16.msra.mxu0 %v846
    %1210 = vmatprep.subr.bf16.mxu0 %v850
    %1211 = vmatpush1.bf16.msra.mxu0 %v849
    %1212 = vmatprep.subr.bf16.mxu0 %v853
    %1213 = vmatpush1.bf16.msra.mxu0 %v852
    %1214 = vmatprep.subr.bf16.mxu0 %v856
    %1215 = vmatpush1.bf16.msra.mxu0 %v855
    %1216 = vmatprep.subr.bf16.mxu0 %v859
    %1217 = vmatpush1.bf16.msra.mxu0 %v858
    %1218 = vmatprep.subr.bf16.mxu0 %v862
    %1219 = vmatpush1.bf16.msra.mxu0 %v861
    %1220 = vmatprep.subr.bf16.mxu0 %v865
    %1221 = vmatpush1.bf16.msra.mxu0 %v864
    %1222 = vmatprep.subr.bf16.mxu0 0
    %1223 = vmatpush1.bf16.msra.mxu0 0
    %1224 = vmatprep.subr.bf16.mxu0 0
    %1225 = vmatpush1.bf16.msra.mxu0 0
    %1226 = vmatprep.subr.bf16.mxu0 0
    %1227 = vmatpush1.bf16.msra.mxu0 0
    %1228 = vmatprep.subr.bf16.mxu0 0
    %1229 = vmatpush1.bf16.msra.mxu0 0
    %1230 = vmatprep.subr.bf16.mxu0 0
    %1231 = vmatpush1.bf16.msra.mxu0 0
    %1232 = vmatprep.subr.bf16.mxu0 0
    %1233 = vmatpush1.bf16.msra.mxu0 0
    %1234 = vmatprep.subr.bf16.mxu0 0
    %1235 = vmatpush1.bf16.msra.mxu0 0
    %1236 = vmatprep.subr.bf16.mxu0 0
    %1237 = vmatpush1.bf16.msra.mxu0 0
    %1238 = vmatprep.mubr.bf16.mxu0 0
    %1239 = vmatmul.mubr.bf16.gmra.mrb[0].mxu0 %v1204
    %v1240 = vpop.f32.mrb[0].mxu0
    %v1241 = vadd.f32 %v751, %v1240
    %v1242 = vpop.f32.mrb[0].mxu0
    %v1243 = vadd.f32 %v755, %v1242
    %v1244 = vpop.f32.mrb[0].mxu0
    %v1245 = vpop.f32.mrb[0].mxu0
    %1246 = vdwg.mxu0
    %1247 = vmatprep.subr.bf16.mxu0 0
    %1248 = vmatpush1.bf16.msra.mxu0 %v845
    %1249 = vmatprep.subr.bf16.mxu0 0
    %1250 = vmatpush1.bf16.msra.mxu0 %v848
    %1251 = vmatprep.subr.bf16.mxu0 0
    %1252 = vmatpush1.bf16.msra.mxu0 %v851
    %1253 = vmatprep.subr.bf16.mxu0 0
    %1254 = vmatpush1.bf16.msra.mxu0 %v854
    %1255 = vmatprep.subr.bf16.mxu0 0
    %1256 = vmatpush1.bf16.msra.mxu0 %v857
    %1257 = vmatprep.subr.bf16.mxu0 0
    %1258 = vmatpush1.bf16.msra.mxu0 %v860
    %1259 = vmatprep.subr.bf16.mxu0 0
    %1260 = vmatpush1.bf16.msra.mxu0 %v863
    %1261 = vmatprep.subr.bf16.mxu0 0
    %1262 = vmatpush1.bf16.msra.mxu0 %v866
    %1263 = vmatprep.subr.bf16.mxu0 0
    %1264 = vmatpush1.bf16.msra.mxu0 0
    %1265 = vmatprep.subr.bf16.mxu0 0
    %1266 = vmatpush1.bf16.msra.mxu0 0
    %1267 = vmatprep.subr.bf16.mxu0 0
    %1268 = vmatpush1.bf16.msra.mxu0 0
    %1269 = vmatprep.subr.bf16.mxu0 0
    %1270 = vmatpush1.bf16.msra.mxu0 0
    %1271 = vmatprep.subr.bf16.mxu0 0
    %1272 = vmatpush1.bf16.msra.mxu0 0
    %1273 = vmatprep.subr.bf16.mxu0 0
    %1274 = vmatpush1.bf16.msra.mxu0 0
    %1275 = vmatprep.subr.bf16.mxu0 0
    %1276 = vmatpush1.bf16.msra.mxu0 0
    %1277 = vmatprep.subr.bf16.mxu0 0
    %1278 = vmatpush1.bf16.msra.mxu0 0
    %1279 = vmatprep.mubr.bf16.mxu0 0
    %1280 = vmatmul.mubr.bf16.gmra.mrb[0].mxu0 %v1204
    %v1281 = vpop.f32.mrb[0].mxu0
    %v1282 = vadd.f32 %v759, %v1281
    %v1283 = vpop.f32.mrb[0].mxu0
    %v1284 = vpop.f32.mrb[0].mxu0
    %v1285 = vpop.f32.mrb[0].mxu0
    %1286 = vdwg.mxu0
    %v1287 = vadd.f32 %v1241, %v1157
    %v1288 = vadd.f32 %v1243, %v1159
    %v1289 = vxor.u32 %v1287, 2147483648
    %v1290 = vxor.u32 %v1288, 2147483648
    %v1291 = vmul.f32 %v1289, 1.442695
    %v1292 = vpow.pop %v1291
    %v1293 = vmul.f32 %v1290, 1.442695
    %v1294 = vpow.pop %v1293
    %v1295 = vadd.f32 %v1292, 1.0
    %v1296 = vadd.f32 %v1294, 1.0
    %v1297 = vrcp.pop %v1295
    %v1298 = vmul.f32 1.0, %v1297
    %v1299 = vrcp.pop %v1296
    %v1300 = vmul.f32 1.0, %v1299
    %v1301 = vadd.f32 %v1198, %v992
    %v1302 = vmul.f32 %v1298, %v1301
    %v1303 = vadd.f32 %v1282, %v1302
    %v1304 = vtanh.pop %v1303
    %v1305 = vsub.f32 1.0, %v1300
    %v1306 = vmul.f32 %v1305, %v1304
    %v1307 = vmul.f32 %v1300, %v1001
    %v1308 = vadd.f32 %v1306, %v1307
    %1309 = vmatprep.subr.bf16.mxu0 %v310
    %1310 = vmatpush1.bf16.msra.mxu0 %v309
    %1311 = vmatprep.subr.bf16.mxu0 %v313
    %1312 = vmatpush1.bf16.msra.mxu0 %v312
    %1313 = vmatprep.subr.bf16.mxu0 %v316
    %1314 = vmatpush1.bf16.msra.mxu0 %v315
    %1315 = vmatprep.subr.bf16.mxu0 %v319
    %1316 = vmatpush1.bf16.msra.mxu0 %v318
    %1317 = vmatprep.subr.bf16.mxu0 %v322
    %1318 = vmatpush1.bf16.msra.mxu0 %v321
    %1319 = vmatprep.subr.bf16.mxu0 %v325
    %1320 = vmatpush1.bf16.msra.mxu0 %v324
    %1321 = vmatprep.subr.bf16.mxu0 %v328
    %1322 = vmatpush1.bf16.msra.mxu0 %v327
    %1323 = vmatprep.subr.bf16.mxu0 %v331
    %1324 = vmatpush1.bf16.msra.mxu0 %v330
    %1325 = vmatprep.subr.bf16.mxu0 0
    %1326 = vmatpush1.bf16.msra.mxu0 0
    %1327 = vmatprep.subr.bf16.mxu0 0
    %1328 = vmatpush1.bf16.msra.mxu0 0
    %1329 = vmatprep.subr.bf16.mxu0 0
    %1330 = vmatpush1.bf16.msra.mxu0 0
    %1331 = vmatprep.subr.bf16.mxu0 0
    %1332 = vmatpush1.bf16.msra.mxu0 0
    %1333 = vmatprep.subr.bf16.mxu0 0
    %1334 = vmatpush1.bf16.msra.mxu0 0
    %1335 = vmatprep.subr.bf16.mxu0 0
    %1336 = vmatpush1.bf16.msra.mxu0 0
    %1337 = vmatprep.subr.bf16.mxu0 0
    %1338 = vmatpush1.bf16.msra.mxu0 0
    %1339 = vmatprep.subr.bf16.mxu0 0
    %1340 = vmatpush1.bf16.msra.mxu0 0
    %1341 = vmatprep.mubr.bf16.mxu0 0
    %1342 = vmatmul.mubr.bf16.gmra.mrb[0].mxu0 %v1204
    %v1343 = vpop.f32.mrb[0].mxu0
    %v1344 = vadd.f32 0.0, %v1343
    %v1345 = vpop.f32.mrb[0].mxu0
    %v1346 = vadd.f32 0.0, %v1345
    %v1347 = vpop.f32.mrb[0].mxu0
    %v1348 = vpop.f32.mrb[0].mxu0
    %1349 = vdwg.mxu0
    %1350 = vmatprep.subr.bf16.mxu0 0
    %1351 = vmatpush1.bf16.msra.mxu0 %v311
    %1352 = vmatprep.subr.bf16.mxu0 0
    %1353 = vmatpush1.bf16.msra.mxu0 %v314
    %1354 = vmatprep.subr.bf16.mxu0 0
    %1355 = vmatpush1.bf16.msra.mxu0 %v317
    %1356 = vmatprep.subr.bf16.mxu0 0
    %1357 = vmatpush1.bf16.msra.mxu0 %v320
    %1358 = vmatprep.subr.bf16.mxu0 0
    %1359 = vmatpush1.bf16.msra.mxu0 %v323
    %1360 = vmatprep.subr.bf16.mxu0 0
    %1361 = vmatpush1.bf16.msra.mxu0 %v326
    %1362 = vmatprep.subr.bf16.mxu0 0
    %1363 = vmatpush1.bf16.msra.mxu0 %v329
    %1364 = vmatprep.subr.bf16.mxu0 0
    %1365 = vmatpush1.bf16.msra.mxu0 %v332
    %1366 = vmatprep.subr.bf16.mxu0 0
    %1367 = vmatpush1.bf16.msra.mxu0 0
    %1368 = vmatprep.subr.bf16.mxu0 0
    %1369 = vmatpush1.bf16.msra.mxu0 0
    %1370 = vmatprep.subr.bf16.mxu0 0
    %1371 = vmatpush1.bf16.msra.mxu0 0
    %1372 = vmatprep.subr.bf16.mxu0 0
    %1373 = vmatpush1.bf16.msra.mxu0 0
    %1374 = vmatprep.subr.bf16.mxu0 0
    %1375 = vmatpush1.bf16.msra.mxu0 0
    %1376 = vmatprep.subr.bf16.mxu0 0
    %1377 = vmatpush1.bf16.msra.mxu0 0
    %1378 = vmatprep.subr.bf16.mxu0 0
    %1379 = vmatpush1.bf16.msra.mxu0 0
    %1380 = vmatprep.subr.bf16.mxu0 0
    %1381 = vmatpush1.bf16.msra.mxu0 0
    %1382 = vmatprep.mubr.bf16.mxu0 0
    %1383 = vmatmul.mubr.bf16.gmra.mrb[0].mxu0 %v1204
    %v1384 = vpop.f32.mrb[0].mxu0
    %v1385 = vadd.f32 0.0, %v1384
    %v1386 = vpop.f32.mrb[0].mxu0
    %v1387 = vpop.f32.mrb[0].mxu0
    %v1388 = vpop.f32.mrb[0].mxu0
    %1389 = vdwg.mxu0
    %v1390 = vld [vmem:[#allocation2] sm:$0x30]
    %v1391 = vld [vmem:[#allocation2 + $0x8] sm:$0x30]
    %v1392 = vld [vmem:[#allocation2 + $0x10] sm:$0x30]
    %v1395 = vrot.slane %v1344, 4
    %v1396 = vrot.slane %v1346, 4
    %v1399 = vadd.f32 %v1390, %v1395
    %v1400 = vadd.f32 %v1391, %v1396
    %v1401 = vxor.u32 %v1399, 2147483648
    %v1402 = vxor.u32 %v1400, 2147483648
    %v1403 = vmul.f32 %v1401, 1.442695
    %v1404 = vpow.pop %v1403
    %v1405 = vmul.f32 %v1402, 1.442695
    %v1406 = vpow.pop %v1405
    %v1407 = vadd.f32 %v1404, 1.0
    %v1408 = vadd.f32 %v1406, 1.0
    %v1409 = vrcp.pop %v1407
    %v1410 = vmul.f32 1.0, %v1409
    %v1411 = vrcp.pop %v1408
    %v1412 = vmul.f32 1.0, %v1411
    %v1413 = vadd.f32 %v1385, %v460
    %v1415 = vrot.slane %v1413, 4
    %v1417 = vmul.f32 %v1410, %v1415
    %v1418 = vadd.f32 %v1392, %v1417
    %v1419 = vtanh.pop %v1418
    %v1420 = vsub.f32 1.0, %v1412
    %v1421 = vmul.f32 %v1420, %v1419
    %v1423 = vrot.slane %v1119, 6
    %v1425 = vmul.f32 %v1412, %v1423
    %v1426 = vadd.f32 %v1421, %v1425
    %v1427 = vpack.c.bf16 %v1426, %v1426
    %v1428 = vpack.c.bf16 %v1308, %v1308
    %1429 = vmatprep.subr.bf16.mxu0 %v585
    %1430 = vmatpush1.bf16.msra.mxu0 %v584
    %1431 = vmatprep.subr.bf16.mxu0 %v588
    %1432 = vmatpush1.bf16.msra.mxu0 %v587
    %1433 = vmatprep.subr.bf16.mxu0 %v591
    %1434 = vmatpush1.bf16.msra.mxu0 %v590
    %1435 = vmatprep.subr.bf16.mxu0 %v594
    %1436 = vmatpush1.bf16.msra.mxu0 %v593
    %1437 = vmatprep.subr.bf16.mxu0 %v597
    %1438 = vmatpush1.bf16.msra.mxu0 %v596
    %1439 = vmatprep.subr.bf16.mxu0 %v600
    %1440 = vmatpush1.bf16.msra.mxu0 %v599
    %1441 = vmatprep.subr.bf16.mxu0 %v603
    %1442 = vmatpush1.bf16.msra.mxu0 %v602
    %1443 = vmatprep.subr.bf16.mxu0 %v606
    %1444 = vmatpush1.bf16.msra.mxu0 %v605
    %1445 = vmatprep.subr.bf16.mxu0 0
    %1446 = vmatpush1.bf16.msra.mxu0 0
    %1447 = vmatprep.subr.bf16.mxu0 0
    %1448 = vmatpush1.bf16.msra.mxu0 0
    %1449 = vmatprep.subr.bf16.mxu0 0
    %1450 = vmatpush1.bf16.msra.mxu0 0
    %1451 = vmatprep.subr.bf16.mxu0 0
    %1452 = vmatpush1.bf16.msra.mxu0 0
    %1453 = vmatprep.subr.bf16.mxu0 0
    %1454 = vmatpush1.bf16.msra.mxu0 0
    %1455 = vmatprep.subr.bf16.mxu0 0
    %1456 = vmatpush1.bf16.msra.mxu0 0
    %1457 = vmatprep.subr.bf16.mxu0 0
    %1458 = vmatpush1.bf16.msra.mxu0 0
    %1459 = vmatprep.subr.bf16.mxu0 0
    %1460 = vmatpush1.bf16.msra.mxu0 0
    %1461 = vmatprep.mubr.bf16.mxu0 0
    %1462 = vmatmul.mubr.bf16.gmra.mrb[0].mxu0 %v1428
    %v1463 = vpop.f32.mrb[0].mxu0
    %v1464 = vadd.f32 0.0, %v1463
    %v1465 = vpop.f32.mrb[0].mxu0
    %v1466 = vadd.f32 0.0, %v1465
    %v1467 = vpop.f32.mrb[0].mxu0
    %v1468 = vpop.f32.mrb[0].mxu0
    %1469 = vdwg.mxu0
    %1470 = vmatprep.subr.bf16.mxu0 0
    %1471 = vmatpush1.bf16.msra.mxu0 %v586
    %1472 = vmatprep.subr.bf16.mxu0 0
    %1473 = vmatpush1.bf16.msra.mxu0 %v589
    %1474 = vmatprep.subr.bf16.mxu0 0
    %1475 = vmatpush1.bf16.msra.mxu0 %v592
    %1476 = vmatprep.subr.bf16.mxu0 0
    %1477 = vmatpush1.bf16.msra.mxu0 %v595
    %1478 = vmatprep.subr.bf16.mxu0 0
    %1479 = vmatpush1.bf16.msra.mxu0 %v598
    %1480 = vmatprep.subr.bf16.mxu0 0
    %1481 = vmatpush1.bf16.msra.mxu0 %v601
    %1482 = vmatprep.subr.bf16.mxu0 0
    %1483 = vmatpush1.bf16.msra.mxu0 %v604
    %1484 = vmatprep.subr.bf16.mxu0 0
    %1485 = vmatpush1.bf16.msra.mxu0 %v607
    %1486 = vmatprep.subr.bf16.mxu0 0
    %1487 = vmatpush1.bf16.msra.mxu0 0
    %1488 = vmatprep.subr.bf16.mxu0 0
    %1489 = vmatpush1.bf16.msra.mxu0 0
    %1490 = vmatprep.subr.bf16.mxu0 0
    %1491 = vmatpush1.bf16.msra.mxu0 0
    %1492 = vmatprep.subr.bf16.mxu0 0
    %1493 = vmatpush1.bf16.msra.mxu0 0
    %1494 = vmatprep.subr.bf16.mxu0 0
    %1495 = vmatpush1.bf16.msra.mxu0 0
    %1496 = vmatprep.subr.bf16.mxu0 0
    %1497 = vmatpush1.bf16.msra.mxu0 0
    %1498 = vmatprep.subr.bf16.mxu0 0
    %1499 = vmatpush1.bf16.msra.mxu0 0
    %1500 = vmatprep.subr.bf16.mxu0 0
    %1501 = vmatpush1.bf16.msra.mxu0 0
    %1502 = vmatprep.mubr.bf16.mxu0 0
    %1503 = vmatmul.mubr.bf16.gmra.mrb[0].mxu0 %v1428
    %v1504 = vpop.f32.mrb[0].mxu0
    %v1505 = vadd.f32 0.0, %v1504
    %v1506 = vpop.f32.mrb[0].mxu0
    %v1507 = vpop.f32.mrb[0].mxu0
    %v1508 = vpop.f32.mrb[0].mxu0
    %1509 = vdwg.mxu0
    %v1511 = vrot.slane %v1427, 2
    %1513 = vmatprep.subr.bf16.mxu0 %v844
    %1514 = vmatpush1.bf16.msra.mxu0 %v843
    %1515 = vmatprep.subr.bf16.mxu0 %v847
    %1516 = vmatpush1.bf16.msra.mxu0 %v846
    %1517 = vmatprep.subr.bf16.mxu0 %v850
    %1518 = vmatpush1.bf16.msra.mxu0 %v849
    %1519 = vmatprep.subr.bf16.mxu0 %v853
    %1520 = vmatpush1.bf16.msra.mxu0 %v852
    %1521 = vmatprep.subr.bf16.mxu0 %v856
    %1522 = vmatpush1.bf16.msra.mxu0 %v855
    %1523 = vmatprep.subr.bf16.mxu0 %v859
    %1524 = vmatpush1.bf16.msra.mxu0 %v858
    %1525 = vmatprep.subr.bf16.mxu0 %v862
    %1526 = vmatpush1.bf16.msra.mxu0 %v861
    %1527 = vmatprep.subr.bf16.mxu0 %v865
    %1528 = vmatpush1.bf16.msra.mxu0 %v864
    %1529 = vmatprep.subr.bf16.mxu0 0
    %1530 = vmatpush1.bf16.msra.mxu0 0
    %1531 = vmatprep.subr.bf16.mxu0 0
    %1532 = vmatpush1.bf16.msra.mxu0 0
    %1533 = vmatprep.subr.bf16.mxu0 0
    %1534 = vmatpush1.bf16.msra.mxu0 0
    %1535 = vmatprep.subr.bf16.mxu0 0
    %1536 = vmatpush1.bf16.msra.mxu0 0
    %1537 = vmatprep.subr.bf16.mxu0 0
    %1538 = vmatpush1.bf16.msra.mxu0 0
    %1539 = vmatprep.subr.bf16.mxu0 0
    %1540 = vmatpush1.bf16.msra.mxu0 0
    %1541 = vmatprep.subr.bf16.mxu0 0
    %1542 = vmatpush1.bf16.msra.mxu0 0
    %1543 = vmatprep.subr.bf16.mxu0 0
    %1544 = vmatpush1.bf16.msra.mxu0 0
    %1545 = vmatprep.mubr.bf16.mxu0 0
    %1546 = vmatmul.mubr.bf16.gmra.mrb[0].mxu0 %v1511
    %v1547 = vpop.f32.mrb[0].mxu0
    %v1548 = vadd.f32 %v751, %v1547
    %v1549 = vpop.f32.mrb[0].mxu0
    %v1550 = vadd.f32 %v755, %v1549
    %v1551 = vpop.f32.mrb[0].mxu0
    %v1552 = vpop.f32.mrb[0].mxu0
    %1553 = vdwg.mxu0
    %1554 = vmatprep.subr.bf16.mxu0 0
    %1555 = vmatpush1.bf16.msra.mxu0 %v845
    %1556 = vmatprep.subr.bf16.mxu0 0
    %1557 = vmatpush1.bf16.msra.mxu0 %v848
    %1558 = vmatprep.subr.bf16.mxu0 0
    %1559 = vmatpush1.bf16.msra.mxu0 %v851
    %1560 = vmatprep.subr.bf16.mxu0 0
    %1561 = vmatpush1.bf16.msra.mxu0 %v854
    %1562 = vmatprep.subr.bf16.mxu0 0
    %1563 = vmatpush1.bf16.msra.mxu0 %v857
    %1564 = vmatprep.subr.bf16.mxu0 0
    %1565 = vmatpush1.bf16.msra.mxu0 %v860
    %1566 = vmatprep.subr.bf16.mxu0 0
    %1567 = vmatpush1.bf16.msra.mxu0 %v863
    %1568 = vmatprep.subr.bf16.mxu0 0
    %1569 = vmatpush1.bf16.msra.mxu0 %v866
    %1570 = vmatprep.subr.bf16.mxu0 0
    %1571 = vmatpush1.bf16.msra.mxu0 0
    %1572 = vmatprep.subr.bf16.mxu0 0
    %1573 = vmatpush1.bf16.msra.mxu0 0
    %1574 = vmatprep.subr.bf16.mxu0 0
    %1575 = vmatpush1.bf16.msra.mxu0 0
    %1576 = vmatprep.subr.bf16.mxu0 0
    %1577 = vmatpush1.bf16.msra.mxu0 0
    %1578 = vmatprep.subr.bf16.mxu0 0
    %1579 = vmatpush1.bf16.msra.mxu0 0
    %1580 = vmatprep.subr.bf16.mxu0 0
    %1581 = vmatpush1.bf16.msra.mxu0 0
    %1582 = vmatprep.subr.bf16.mxu0 0
    %1583 = vmatpush1.bf16.msra.mxu0 0
    %1584 = vmatprep.subr.bf16.mxu0 0
    %1585 = vmatpush1.bf16.msra.mxu0 0
    %1586 = vmatprep.mubr.bf16.mxu0 0
    %1587 = vmatmul.mubr.bf16.gmra.mrb[0].mxu0 %v1511
    %v1588 = vpop.f32.mrb[0].mxu0
    %v1589 = vadd.f32 %v759, %v1588
    %v1590 = vpop.f32.mrb[0].mxu0
    %v1591 = vpop.f32.mrb[0].mxu0
    %v1592 = vpop.f32.mrb[0].mxu0
    %1593 = vdwg.mxu0
    %v1594 = vadd.f32 %v1548, %v1464
    %v1595 = vadd.f32 %v1550, %v1466
    %v1596 = vxor.u32 %v1594, 2147483648
    %v1597 = vxor.u32 %v1595, 2147483648
    %v1598 = vmul.f32 %v1596, 1.442695
    %v1599 = vpow.pop %v1598
    %v1600 = vmul.f32 %v1597, 1.442695
    %v1601 = vpow.pop %v1600
    %v1602 = vadd.f32 %v1599, 1.0
    %v1603 = vadd.f32 %v1601, 1.0
    %v1604 = vrcp.pop %v1602
    %v1605 = vmul.f32 1.0, %v1604
    %v1606 = vrcp.pop %v1603
    %v1607 = vmul.f32 1.0, %v1606
    %v1608 = vadd.f32 %v1505, %v992
    %v1609 = vmul.f32 %v1605, %v1608
    %v1610 = vadd.f32 %v1589, %v1609
    %v1611 = vtanh.pop %v1610
    %v1612 = vsub.f32 1.0, %v1607
    %v1613 = vmul.f32 %v1612, %v1611
    %v1614 = vmul.f32 %v1607, %v1308
    %v1615 = vadd.f32 %v1613, %v1614
    %1616 = vmatprep.subr.bf16.mxu0 %v310
    %1617 = vmatpush1.bf16.msra.mxu0 %v309
    %1618 = vmatprep.subr.bf16.mxu0 %v313
    %1619 = vmatpush1.bf16.msra.mxu0 %v312
    %1620 = vmatprep.subr.bf16.mxu0 %v316
    %1621 = vmatpush1.bf16.msra.mxu0 %v315
    %1622 = vmatprep.subr.bf16.mxu0 %v319
    %1623 = vmatpush1.bf16.msra.mxu0 %v318
    %1624 = vmatprep.subr.bf16.mxu0 %v322
    %1625 = vmatpush1.bf16.msra.mxu0 %v321
    %1626 = vmatprep.subr.bf16.mxu0 %v325
    %1627 = vmatpush1.bf16.msra.mxu0 %v324
    %1628 = vmatprep.subr.bf16.mxu0 %v328
    %1629 = vmatpush1.bf16.msra.mxu0 %v327
    %1630 = vmatprep.subr.bf16.mxu0 %v331
    %1631 = vmatpush1.bf16.msra.mxu0 %v330
    %1632 = vmatprep.subr.bf16.mxu0 0
    %1633 = vmatpush1.bf16.msra.mxu0 0
    %1634 = vmatprep.subr.bf16.mxu0 0
    %1635 = vmatpush1.bf16.msra.mxu0 0
    %1636 = vmatprep.subr.bf16.mxu0 0
    %1637 = vmatpush1.bf16.msra.mxu0 0
    %1638 = vmatprep.subr.bf16.mxu0 0
    %1639 = vmatpush1.bf16.msra.mxu0 0
    %1640 = vmatprep.subr.bf16.mxu0 0
    %1641 = vmatpush1.bf16.msra.mxu0 0
    %1642 = vmatprep.subr.bf16.mxu0 0
    %1643 = vmatpush1.bf16.msra.mxu0 0
    %1644 = vmatprep.subr.bf16.mxu0 0
    %1645 = vmatpush1.bf16.msra.mxu0 0
    %1646 = vmatprep.subr.bf16.mxu0 0
    %1647 = vmatpush1.bf16.msra.mxu0 0
    %1648 = vmatprep.mubr.bf16.mxu0 0
    %1649 = vmatmul.mubr.bf16.gmra.mrb[0].mxu0 %v1511
    %v1650 = vpop.f32.mrb[0].mxu0
    %v1651 = vadd.f32 0.0, %v1650
    %v1652 = vpop.f32.mrb[0].mxu0
    %v1653 = vadd.f32 0.0, %v1652
    %v1654 = vpop.f32.mrb[0].mxu0
    %v1655 = vpop.f32.mrb[0].mxu0
    %1656 = vdwg.mxu0
    %1657 = vmatprep.subr.bf16.mxu0 0
    %1658 = vmatpush1.bf16.msra.mxu0 %v311
    %1659 = vmatprep.subr.bf16.mxu0 0
    %1660 = vmatpush1.bf16.msra.mxu0 %v314
    %1661 = vmatprep.subr.bf16.mxu0 0
    %1662 = vmatpush1.bf16.msra.mxu0 %v317
    %1663 = vmatprep.subr.bf16.mxu0 0
    %1664 = vmatpush1.bf16.msra.mxu0 %v320
    %1665 = vmatprep.subr.bf16.mxu0 0
    %1666 = vmatpush1.bf16.msra.mxu0 %v323
    %1667 = vmatprep.subr.bf16.mxu0 0
    %1668 = vmatpush1.bf16.msra.mxu0 %v326
    %1669 = vmatprep.subr.bf16.mxu0 0
    %1670 = vmatpush1.bf16.msra.mxu0 %v329
    %1671 = vmatprep.subr.bf16.mxu0 0
    %1672 = vmatpush1.bf16.msra.mxu0 %v332
    %1673 = vmatprep.subr.bf16.mxu0 0
    %1674 = vmatpush1.bf16.msra.mxu0 0
    %1675 = vmatprep.subr.bf16.mxu0 0
    %1676 = vmatpush1.bf16.msra.mxu0 0
    %1677 = vmatprep.subr.bf16.mxu0 0
    %1678 = vmatpush1.bf16.msra.mxu0 0
    %1679 = vmatprep.subr.bf16.mxu0 0
    %1680 = vmatpush1.bf16.msra.mxu0 0
    %1681 = vmatprep.subr.bf16.mxu0 0
    %1682 = vmatpush1.bf16.msra.mxu0 0
    %1683 = vmatprep.subr.bf16.mxu0 0
    %1684 = vmatpush1.bf16.msra.mxu0 0
    %1685 = vmatprep.subr.bf16.mxu0 0
    %1686 = vmatpush1.bf16.msra.mxu0 0
    %1687 = vmatprep.subr.bf16.mxu0 0
    %1688 = vmatpush1.bf16.msra.mxu0 0
    %1689 = vmatprep.mubr.bf16.mxu0 0
    %1690 = vmatmul.mubr.bf16.gmra.mrb[0].mxu0 %v1511
    %v1691 = vpop.f32.mrb[0].mxu0
    %v1692 = vadd.f32 0.0, %v1691
    %v1693 = vpop.f32.mrb[0].mxu0
    %v1694 = vpop.f32.mrb[0].mxu0
    %v1695 = vpop.f32.mrb[0].mxu0
    %1696 = vdwg.mxu0
    %v1697 = vld [vmem:[#allocation2] sm:$0xc0]
    %v1698 = vld [vmem:[#allocation2 + $0x8] sm:$0xc0]
    %v1699 = vld [vmem:[#allocation2 + $0x10] sm:$0xc0]
    %v1702 = vrot.slane %v1651, 2
    %v1703 = vrot.slane %v1653, 2
    %v1706 = vadd.f32 %v1697, %v1702
    %v1707 = vadd.f32 %v1698, %v1703
    %v1708 = vxor.u32 %v1706, 2147483648
    %v1709 = vxor.u32 %v1707, 2147483648
    %v1710 = vmul.f32 %v1708, 1.442695
    %v1711 = vpow.pop %v1710
    %v1712 = vmul.f32 %v1709, 1.442695
    %v1713 = vpow.pop %v1712
    %v1714 = vadd.f32 %v1711, 1.0
    %v1715 = vadd.f32 %v1713, 1.0
    %v1716 = vrcp.pop %v1714
    %v1717 = vmul.f32 1.0, %v1716
    %v1718 = vrcp.pop %v1715
    %v1719 = vmul.f32 1.0, %v1718
    %v1720 = vadd.f32 %v1692, %v460
    %v1722 = vrot.slane %v1720, 2
    %v1724 = vmul.f32 %v1717, %v1722
    %v1725 = vadd.f32 %v1699, %v1724
    %v1726 = vtanh.pop %v1725
    %v1727 = vsub.f32 1.0, %v1719
    %v1728 = vmul.f32 %v1727, %v1726
    %v1730 = vrot.slane %v1426, 6
    %v1732 = vmul.f32 %v1719, %v1730
    %v1733 = vadd.f32 %v1728, %v1732
    %v1734 = vpack.c.bf16 %v1733, %v1733
    %v1735 = vpack.c.bf16 %v1615, %v1615
    %1736 = vmatprep.subr.bf16.mxu0 %v585
    %1737 = vmatpush1.bf16.msra.mxu0 %v584
    %1738 = vmatprep.subr.bf16.mxu0 %v588
    %1739 = vmatpush1.bf16.msra.mxu0 %v587
    %1740 = vmatprep.subr.bf16.mxu0 %v591
    %1741 = vmatpush1.bf16.msra.mxu0 %v590
    %1742 = vmatprep.subr.bf16.mxu0 %v594
    %1743 = vmatpush1.bf16.msra.mxu0 %v593
    %1744 = vmatprep.subr.bf16.mxu0 %v597
    %1745 = vmatpush1.bf16.msra.mxu0 %v596
    %1746 = vmatprep.subr.bf16.mxu0 %v600
    %1747 = vmatpush1.bf16.msra.mxu0 %v599
    %1748 = vmatprep.subr.bf16.mxu0 %v603
    %1749 = vmatpush1.bf16.msra.mxu0 %v602
    %1750 = vmatprep.subr.bf16.mxu0 %v606
    %1751 = vmatpush1.bf16.msra.mxu0 %v605
    %1752 = vmatprep.subr.bf16.mxu0 0
    %1753 = vmatpush1.bf16.msra.mxu0 0
    %1754 = vmatprep.subr.bf16.mxu0 0
    %1755 = vmatpush1.bf16.msra.mxu0 0
    %1756 = vmatprep.subr.bf16.mxu0 0
    %1757 = vmatpush1.bf16.msra.mxu0 0
    %1758 = vmatprep.subr.bf16.mxu0 0
    %1759 = vmatpush1.bf16.msra.mxu0 0
    %1760 = vmatprep.subr.bf16.mxu0 0
    %1761 = vmatpush1.bf16.msra.mxu0 0
    %1762 = vmatprep.subr.bf16.mxu0 0
    %1763 = vmatpush1.bf16.msra.mxu0 0
    %1764 = vmatprep.subr.bf16.mxu0 0
    %1765 = vmatpush1.bf16.msra.mxu0 0
    %1766 = vmatprep.subr.bf16.mxu0 0
    %1767 = vmatpush1.bf16.msra.mxu0 0
    %1768 = vmatprep.mubr.bf16.mxu0 0
    %1769 = vmatmul.mubr.bf16.gmra.mrb[0].mxu0 %v1735
    %v1770 = vpop.f32.mrb[0].mxu0
    %v1771 = vadd.f32 0.0, %v1770
    %v1772 = vpop.f32.mrb[0].mxu0
    %v1773 = vadd.f32 0.0, %v1772
    %v1774 = vpop.f32.mrb[0].mxu0
    %v1775 = vpop.f32.mrb[0].mxu0
    %1776 = vdwg.mxu0
    %1777 = vmatprep.subr.bf16.mxu0 0
    %1778 = vmatpush1.bf16.msra.mxu0 %v586
    %1779 = vmatprep.subr.bf16.mxu0 0
    %1780 = vmatpush1.bf16.msra.mxu0 %v589
    %1781 = vmatprep.subr.bf16.mxu0 0
    %1782 = vmatpush1.bf16.msra.mxu0 %v592
    %1783 = vmatprep.subr.bf16.mxu0 0
    %1784 = vmatpush1.bf16.msra.mxu0 %v595
    %1785 = vmatprep.subr.bf16.mxu0 0
    %1786 = vmatpush1.bf16.msra.mxu0 %v598
    %1787 = vmatprep.subr.bf16.mxu0 0
    %1788 = vmatpush1.bf16.msra.mxu0 %v601
    %1789 = vmatprep.subr.bf16.mxu0 0
    %1790 = vmatpush1.bf16.msra.mxu0 %v604
    %1791 = vmatprep.subr.bf16.mxu0 0
    %1792 = vmatpush1.bf16.msra.mxu0 %v607
    %1793 = vmatprep.subr.bf16.mxu0 0
    %1794 = vmatpush1.bf16.msra.mxu0 0
    %1795 = vmatprep.subr.bf16.mxu0 0
    %1796 = vmatpush1.bf16.msra.mxu0 0
    %1797 = vmatprep.subr.bf16.mxu0 0
    %1798 = vmatpush1.bf16.msra.mxu0 0
    %1799 = vmatprep.subr.bf16.mxu0 0
    %1800 = vmatpush1.bf16.msra.mxu0 0
    %1801 = vmatprep.subr.bf16.mxu0 0
    %1802 = vmatpush1.bf16.msra.mxu0 0
    %1803 = vmatprep.subr.bf16.mxu0 0
    %1804 = vmatpush1.bf16.msra.mxu0 0
    %1805 = vmatprep.subr.bf16.mxu0 0
    %1806 = vmatpush1.bf16.msra.mxu0 0
    %1807 = vmatprep.subr.bf16.mxu0 0
    %1808 = vmatpush1.bf16.msra.mxu0 0
    %1809 = vmatprep.mubr.bf16.mxu0 0
    %1810 = vmatmul.mubr.bf16.gmra.mrb[0].mxu0 %v1735
    %v1811 = vpop.f32.mrb[0].mxu0
    %v1812 = vadd.f32 0.0, %v1811
    %v1813 = vpop.f32.mrb[0].mxu0
    %v1814 = vpop.f32.mrb[0].mxu0
    %v1815 = vpop.f32.mrb[0].mxu0
    %1816 = vdwg.mxu0
    %v1818 = vrot.slane %v1734, 3
    %1820 = vmatprep.subr.bf16.mxu0 %v844
    %1821 = vmatpush1.bf16.msra.mxu0 %v843
    %1822 = vmatprep.subr.bf16.mxu0 %v847
    %1823 = vmatpush1.bf16.msra.mxu0 %v846
    %1824 = vmatprep.subr.bf16.mxu0 %v850
    %1825 = vmatpush1.bf16.msra.mxu0 %v849
    %1826 = vmatprep.subr.bf16.mxu0 %v853
    %1827 = vmatpush1.bf16.msra.mxu0 %v852
    %1828 = vmatprep.subr.bf16.mxu0 %v856
    %1829 = vmatpush1.bf16.msra.mxu0 %v855
    %1830 = vmatprep.subr.bf16.mxu0 %v859
    %1831 = vmatpush1.bf16.msra.mxu0 %v858
    %1832 = vmatprep.subr.bf16.mxu0 %v862
    %1833 = vmatpush1.bf16.msra.mxu0 %v861
    %1834 = vmatprep.subr.bf16.mxu0 %v865
    %1835 = vmatpush1.bf16.msra.mxu0 %v864
    %1836 = vmatprep.subr.bf16.mxu0 0
    %1837 = vmatpush1.bf16.msra.mxu0 0
    %1838 = vmatprep.subr.bf16.mxu0 0
    %1839 = vmatpush1.bf16.msra.mxu0 0
    %1840 = vmatprep.subr.bf16.mxu0 0
    %1841 = vmatpush1.bf16.msra.mxu0 0
    %1842 = vmatprep.subr.bf16.mxu0 0
    %1843 = vmatpush1.bf16.msra.mxu0 0
    %1844 = vmatprep.subr.bf16.mxu0 0
    %1845 = vmatpush1.bf16.msra.mxu0 0
    %1846 = vmatprep.subr.bf16.mxu0 0
    %1847 = vmatpush1.bf16.msra.mxu0 0
    %1848 = vmatprep.subr.bf16.mxu0 0
    %1849 = vmatpush1.bf16.msra.mxu0 0
    %1850 = vmatprep.subr.bf16.mxu0 0
    %1851 = vmatpush1.bf16.msra.mxu0 0
    %1852 = vmatprep.mubr.bf16.mxu0 0
    %1853 = vmatmul.mubr.bf16.gmra.mrb[0].mxu0 %v1818
    %v1854 = vpop.f32.mrb[0].mxu0
    %v1855 = vadd.f32 %v751, %v1854
    %v1856 = vpop.f32.mrb[0].mxu0
    %v1857 = vadd.f32 %v755, %v1856
    %v1858 = vpop.f32.mrb[0].mxu0
    %v1859 = vpop.f32.mrb[0].mxu0
    %1860 = vdwg.mxu0
    %1861 = vmatprep.subr.bf16.mxu0 0
    %1862 = vmatpush1.bf16.msra.mxu0 %v845
    %1863 = vmatprep.subr.bf16.mxu0 0
    %1864 = vmatpush1.bf16.msra.mxu0 %v848
    %1865 = vmatprep.subr.bf16.mxu0 0
    %1866 = vmatpush1.bf16.msra.mxu0 %v851
    %1867 = vmatprep.subr.bf16.mxu0 0
    %1868 = vmatpush1.bf16.msra.mxu0 %v854
    %1869 = vmatprep.subr.bf16.mxu0 0
    %1870 = vmatpush1.bf16.msra.mxu0 %v857
    %1871 = vmatprep.subr.bf16.mxu0 0
    %1872 = vmatpush1.bf16.msra.mxu0 %v860
    %1873 = vmatprep.subr.bf16.mxu0 0
    %1874 = vmatpush1.bf16.msra.mxu0 %v863
    %1875 = vmatprep.subr.bf16.mxu0 0
    %1876 = vmatpush1.bf16.msra.mxu0 %v866
    %1877 = vmatprep.subr.bf16.mxu0 0
    %1878 = vmatpush1.bf16.msra.mxu0 0
    %1879 = vmatprep.subr.bf16.mxu0 0
    %1880 = vmatpush1.bf16.msra.mxu0 0
    %1881 = vmatprep.subr.bf16.mxu0 0
    %1882 = vmatpush1.bf16.msra.mxu0 0
    %1883 = vmatprep.subr.bf16.mxu0 0
    %1884 = vmatpush1.bf16.msra.mxu0 0
    %1885 = vmatprep.subr.bf16.mxu0 0
    %1886 = vmatpush1.bf16.msra.mxu0 0
    %1887 = vmatprep.subr.bf16.mxu0 0
    %1888 = vmatpush1.bf16.msra.mxu0 0
    %1889 = vmatprep.subr.bf16.mxu0 0
    %1890 = vmatpush1.bf16.msra.mxu0 0
    %1891 = vmatprep.subr.bf16.mxu0 0
    %1892 = vmatpush1.bf16.msra.mxu0 0
    %1893 = vmatprep.mubr.bf16.mxu0 0
    %1894 = vmatmul.mubr.bf16.gmra.mrb[0].mxu0 %v1818
    %v1895 = vpop.f32.mrb[0].mxu0
    %v1896 = vadd.f32 %v759, %v1895
    %v1897 = vpop.f32.mrb[0].mxu0
    %v1898 = vpop.f32.mrb[0].mxu0
    %v1899 = vpop.f32.mrb[0].mxu0
    %1900 = vdwg.mxu0
    %v1901 = vadd.f32 %v1855, %v1771
    %v1902 = vadd.f32 %v1857, %v1773
    %v1903 = vxor.u32 %v1901, 2147483648
    %v1904 = vxor.u32 %v1902, 2147483648
    %v1905 = vmul.f32 %v1903, 1.442695
    %v1906 = vpow.pop %v1905
    %v1907 = vmul.f32 %v1904, 1.442695
    %v1908 = vpow.pop %v1907
    %v1909 = vadd.f32 %v1906, 1.0
    %v1910 = vadd.f32 %v1908, 1.0
    %v1911 = vrcp.pop %v1909
    %v1912 = vmul.f32 1.0, %v1911
    %v1913 = vrcp.pop %v1910
    %v1914 = vmul.f32 1.0, %v1913
    %v1915 = vadd.f32 %v1812, %v992
    %v1916 = vmul.f32 %v1912, %v1915
    %v1917 = vadd.f32 %v1896, %v1916
    %v1918 = vtanh.pop %v1917
    %v1919 = vsub.f32 1.0, %v1914
    %v1920 = vmul.f32 %v1919, %v1918
    %v1921 = vmul.f32 %v1914, %v1615
    %v1922 = vadd.f32 %v1920, %v1921
    %1923 = vmatprep.subr.bf16.mxu0 %v310
    %1924 = vmatpush1.bf16.msra.mxu0 %v309
    %1925 = vmatprep.subr.bf16.mxu0 %v313
    %1926 = vmatpush1.bf16.msra.mxu0 %v312
    %1927 = vmatprep.subr.bf16.mxu0 %v316
    %1928 = vmatpush1.bf16.msra.mxu0 %v315
    %1929 = vmatprep.subr.bf16.mxu0 %v319
    %1930 = vmatpush1.bf16.msra.mxu0 %v318
    %1931 = vmatprep.subr.bf16.mxu0 %v322
    %1932 = vmatpush1.bf16.msra.mxu0 %v321
    %1933 = vmatprep.subr.bf16.mxu0 %v325
    %1934 = vmatpush1.bf16.msra.mxu0 %v324
    %1935 = vmatprep.subr.bf16.mxu0 %v328
    %1936 = vmatpush1.bf16.msra.mxu0 %v327
    %1937 = vmatprep.subr.bf16.mxu0 %v331
    %1938 = vmatpush1.bf16.msra.mxu0 %v330
    %1939 = vmatprep.subr.bf16.mxu0 0
    %1940 = vmatpush1.bf16.msra.mxu0 0
    %1941 = vmatprep.subr.bf16.mxu0 0
    %1942 = vmatpush1.bf16.msra.mxu0 0
    %1943 = vmatprep.subr.bf16.mxu0 0
    %1944 = vmatpush1.bf16.msra.mxu0 0
    %1945 = vmatprep.subr.bf16.mxu0 0
    %1946 = vmatpush1.bf16.msra.mxu0 0
    %1947 = vmatprep.subr.bf16.mxu0 0
    %1948 = vmatpush1.bf16.msra.mxu0 0
    %1949 = vmatprep.subr.bf16.mxu0 0
    %1950 = vmatpush1.bf16.msra.mxu0 0
    %1951 = vmatprep.subr.bf16.mxu0 0
    %1952 = vmatpush1.bf16.msra.mxu0 0
    %1953 = vmatprep.subr.bf16.mxu0 0
    %1954 = vmatpush1.bf16.msra.mxu0 0
    %1955 = vmatprep.mubr.bf16.mxu0 0
    %1956 = vmatmul.mubr.bf16.gmra.mrb[0].mxu0 %v1818
    %v1957 = vpop.f32.mrb[0].mxu0
    %v1958 = vadd.f32 0.0, %v1957
    %v1959 = vpop.f32.mrb[0].mxu0
    %v1960 = vadd.f32 0.0, %v1959
    %v1961 = vpop.f32.mrb[0].mxu0
    %v1962 = vpop.f32.mrb[0].mxu0
    %1963 = vdwg.mxu0
    %1964 = vmatprep.subr.bf16.mxu0 0
    %1965 = vmatpush1.bf16.msra.mxu0 %v311
    %1966 = vmatprep.subr.bf16.mxu0 0
    %1967 = vmatpush1.bf16.msra.mxu0 %v314
    %1968 = vmatprep.subr.bf16.mxu0 0
    %1969 = vmatpush1.bf16.msra.mxu0 %v317
    %1970 = vmatprep.subr.bf16.mxu0 0
    %1971 = vmatpush1.bf16.msra.mxu0 %v320
    %1972 = vmatprep.subr.bf16.mxu0 0
    %1973 = vmatpush1.bf16.msra.mxu0 %v323
    %1974 = vmatprep.subr.bf16.mxu0 0
    %1975 = vmatpush1.bf16.msra.mxu0 %v326
    %1976 = vmatprep.subr.bf16.mxu0 0
    %1977 = vmatpush1.bf16.msra.mxu0 %v329
    %1978 = vmatprep.subr.bf16.mxu0 0
    %1979 = vmatpush1.bf16.msra.mxu0 %v332
    %1980 = vmatprep.subr.bf16.mxu0 0
    %1981 = vmatpush1.bf16.msra.mxu0 0
    %1982 = vmatprep.subr.bf16.mxu0 0
    %1983 = vmatpush1.bf16.msra.mxu0 0
    %1984 = vmatprep.subr.bf16.mxu0 0
    %1985 = vmatpush1.bf16.msra.mxu0 0
    %1986 = vmatprep.subr.bf16.mxu0 0
    %1987 = vmatpush1.bf16.msra.mxu0 0
    %1988 = vmatprep.subr.bf16.mxu0 0
    %1989 = vmatpush1.bf16.msra.mxu0 0
    %1990 = vmatprep.subr.bf16.mxu0 0
    %1991 = vmatpush1.bf16.msra.mxu0 0
    %1992 = vmatprep.subr.bf16.mxu0 0
    %1993 = vmatpush1.bf16.msra.mxu0 0
    %1994 = vmatprep.subr.bf16.mxu0 0
    %1995 = vmatpush1.bf16.msra.mxu0 0
    %1996 = vmatprep.mubr.bf16.mxu0 0
    %1997 = vmatmul.mubr.bf16.gmra.mrb[0].mxu0 %v1818
    %v1998 = vpop.f32.mrb[0].mxu0
    %v1999 = vadd.f32 0.0, %v1998
    %v2000 = vpop.f32.mrb[0].mxu0
    %v2001 = vpop.f32.mrb[0].mxu0
    %v2002 = vpop.f32.mrb[0].mxu0
    %2003 = vdwg.mxu0
    %v2004 = vld [vmem:[#allocation2 + $0x18] sm:$0x3]
    %v2005 = vld [vmem:[#allocation2 + $0x20] sm:$0x3]
    %v2006 = vld [vmem:[#allocation2 + $0x28] sm:$0x3]
    %v2007 = vadd.f32 %v2004, %v1958
    %v2008 = vadd.f32 %v2005, %v1960
    %v2009 = vxor.u32 %v2007, 2147483648
    %v2010 = vxor.u32 %v2008, 2147483648
    %v2011 = vmul.f32 %v2009, 1.442695
    %v2012 = vpow.pop %v2011
    %v2013 = vmul.f32 %v2010, 1.442695
    %v2014 = vpow.pop %v2013
    %v2015 = vadd.f32 %v2012, 1.0
    %v2016 = vadd.f32 %v2014, 1.0
    %v2017 = vrcp.pop %v2015
    %v2018 = vmul.f32 1.0, %v2017
    %v2019 = vrcp.pop %v2016
    %v2020 = vmul.f32 1.0, %v2019
    %v2021 = vadd.f32 %v1999, %v460
    %v2022 = vmul.f32 %v2018, %v2021
    %v2023 = vadd.f32 %v2006, %v2022
    %v2024 = vtanh.pop %v2023
    %v2025 = vsub.f32 1.0, %v2020
    %v2026 = vmul.f32 %v2025, %v2024
    %v2028 = vrot.slane %v1733, 6
    %v2030 = vmul.f32 %v2020, %v2028
    %v2031 = vadd.f32 %v2026, %v2030
    %v2032 = vpack.c.bf16 %v2031, %v2031
    %v2033 = vpack.c.bf16 %v1922, %v1922
    %2034 = vmatprep.subr.bf16.mxu0 %v585
    %2035 = vmatpush1.bf16.msra.mxu0 %v584
    %2036 = vmatprep.subr.bf16.mxu0 %v588
    %2037 = vmatpush1.bf16.msra.mxu0 %v587
    %2038 = vmatprep.subr.bf16.mxu0 %v591
    %2039 = vmatpush1.bf16.msra.mxu0 %v590
    %2040 = vmatprep.subr.bf16.mxu0 %v594
    %2041 = vmatpush1.bf16.msra.mxu0 %v593
    %2042 = vmatprep.subr.bf16.mxu0 %v597
    %2043 = vmatpush1.bf16.msra.mxu0 %v596
    %2044 = vmatprep.subr.bf16.mxu0 %v600
    %2045 = vmatpush1.bf16.msra.mxu0 %v599
    %2046 = vmatprep.subr.bf16.mxu0 %v603
    %2047 = vmatpush1.bf16.msra.mxu0 %v602
    %2048 = vmatprep.subr.bf16.mxu0 %v606
    %2049 = vmatpush1.bf16.msra.mxu0 %v605
    %2050 = vmatprep.subr.bf16.mxu0 0
    %2051 = vmatpush1.bf16.msra.mxu0 0
    %2052 = vmatprep.subr.bf16.mxu0 0
    %2053 = vmatpush1.bf16.msra.mxu0 0
    %2054 = vmatprep.subr.bf16.mxu0 0
    %2055 = vmatpush1.bf16.msra.mxu0 0
    %2056 = vmatprep.subr.bf16.mxu0 0
    %2057 = vmatpush1.bf16.msra.mxu0 0
    %2058 = vmatprep.subr.bf16.mxu0 0
    %2059 = vmatpush1.bf16.msra.mxu0 0
    %2060 = vmatprep.subr.bf16.mxu0 0
    %2061 = vmatpush1.bf16.msra.mxu0 0
    %2062 = vmatprep.subr.bf16.mxu0 0
    %2063 = vmatpush1.bf16.msra.mxu0 0
    %2064 = vmatprep.subr.bf16.mxu0 0
    %2065 = vmatpush1.bf16.msra.mxu0 0
    %2066 = vmatprep.mubr.bf16.mxu0 0
    %2067 = vmatmul.mubr.bf16.gmra.mrb[0].mxu0 %v2033
    %v2068 = vpop.f32.mrb[0].mxu0
    %v2069 = vadd.f32 0.0, %v2068
    %v2070 = vpop.f32.mrb[0].mxu0
    %v2071 = vadd.f32 0.0, %v2070
    %v2072 = vpop.f32.mrb[0].mxu0
    %v2073 = vpop.f32.mrb[0].mxu0
    %2074 = vdwg.mxu0
    %2075 = vmatprep.subr.bf16.mxu0 0
    %2076 = vmatpush1.bf16.msra.mxu0 %v586
    %2077 = vmatprep.subr.bf16.mxu0 0
    %2078 = vmatpush1.bf16.msra.mxu0 %v589
    %2079 = vmatprep.subr.bf16.mxu0 0
    %2080 = vmatpush1.bf16.msra.mxu0 %v592
    %2081 = vmatprep.subr.bf16.mxu0 0
    %2082 = vmatpush1.bf16.msra.mxu0 %v595
    %2083 = vmatprep.subr.bf16.mxu0 0
    %2084 = vmatpush1.bf16.msra.mxu0 %v598
    %2085 = vmatprep.subr.bf16.mxu0 0
    %2086 = vmatpush1.bf16.msra.mxu0 %v601
    %2087 = vmatprep.subr.bf16.mxu0 0
    %2088 = vmatpush1.bf16.msra.mxu0 %v604
    %2089 = vmatprep.subr.bf16.mxu0 0
    %2090 = vmatpush1.bf16.msra.mxu0 %v607
    %2091 = vmatprep.subr.bf16.mxu0 0
    %2092 = vmatpush1.bf16.msra.mxu0 0
    %2093 = vmatprep.subr.bf16.mxu0 0
    %2094 = vmatpush1.bf16.msra.mxu0 0
    %2095 = vmatprep.subr.bf16.mxu0 0
    %2096 = vmatpush1.bf16.msra.mxu0 0
    %2097 = vmatprep.subr.bf16.mxu0 0
    %2098 = vmatpush1.bf16.msra.mxu0 0
    %2099 = vmatprep.subr.bf16.mxu0 0
    %2100 = vmatpush1.bf16.msra.mxu0 0
    %2101 = vmatprep.subr.bf16.mxu0 0
    %2102 = vmatpush1.bf16.msra.mxu0 0
    %2103 = vmatprep.subr.bf16.mxu0 0
    %2104 = vmatpush1.bf16.msra.mxu0 0
    %2105 = vmatprep.subr.bf16.mxu0 0
    %2106 = vmatpush1.bf16.msra.mxu0 0
    %2107 = vmatprep.mubr.bf16.mxu0 0
    %2108 = vmatmul.mubr.bf16.gmra.mrb[0].mxu0 %v2033
    %v2109 = vpop.f32.mrb[0].mxu0
    %v2110 = vadd.f32 0.0, %v2109
    %v2111 = vpop.f32.mrb[0].mxu0
    %v2112 = vpop.f32.mrb[0].mxu0
    %v2113 = vpop.f32.mrb[0].mxu0
    %2114 = vdwg.mxu0
    %2115 = vmatprep.subr.bf16.mxu0 %v844
    %2116 = vmatpush1.bf16.msra.mxu0 %v843
    %2117 = vmatprep.subr.bf16.mxu0 %v847
    %2118 = vmatpush1.bf16.msra.mxu0 %v846
    %2119 = vmatprep.subr.bf16.mxu0 %v850
    %2120 = vmatpush1.bf16.msra.mxu0 %v849
    %2121 = vmatprep.subr.bf16.mxu0 %v853
    %2122 = vmatpush1.bf16.msra.mxu0 %v852
    %2123 = vmatprep.subr.bf16.mxu0 %v856
    %2124 = vmatpush1.bf16.msra.mxu0 %v855
    %2125 = vmatprep.subr.bf16.mxu0 %v859
    %2126 = vmatpush1.bf16.msra.mxu0 %v858
    %2127 = vmatprep.subr.bf16.mxu0 %v862
    %2128 = vmatpush1.bf16.msra.mxu0 %v861
    %2129 = vmatprep.subr.bf16.mxu0 %v865
    %2130 = vmatpush1.bf16.msra.mxu0 %v864
    %2131 = vmatprep.subr.bf16.mxu0 0
    %2132 = vmatpush1.bf16.msra.mxu0 0
    %2133 = vmatprep.subr.bf16.mxu0 0
    %2134 = vmatpush1.bf16.msra.mxu0 0
    %2135 = vmatprep.subr.bf16.mxu0 0
    %2136 = vmatpush1.bf16.msra.mxu0 0
    %2137 = vmatprep.subr.bf16.mxu0 0
    %2138 = vmatpush1.bf16.msra.mxu0 0
    %2139 = vmatprep.subr.bf16.mxu0 0
    %2140 = vmatpush1.bf16.msra.mxu0 0
    %2141 = vmatprep.subr.bf16.mxu0 0
    %2142 = vmatpush1.bf16.msra.mxu0 0
    %2143 = vmatprep.subr.bf16.mxu0 0
    %2144 = vmatpush1.bf16.msra.mxu0 0
    %2145 = vmatprep.subr.bf16.mxu0 0
    %2146 = vmatpush1.bf16.msra.mxu0 0
    %2147 = vmatprep.mubr.bf16.mxu0 0
    %2148 = vmatmul.mubr.bf16.gmra.mrb[0].mxu0 %v2032
    %v2149 = vpop.f32.mrb[0].mxu0
    %v2150 = vadd.f32 %v751, %v2149
    %v2151 = vpop.f32.mrb[0].mxu0
    %v2152 = vadd.f32 %v755, %v2151
    %v2153 = vpop.f32.mrb[0].mxu0
    %v2154 = vpop.f32.mrb[0].mxu0
    %2155 = vdwg.mxu0
    %2156 = vmatprep.subr.bf16.mxu0 0
    %2157 = vmatpush1.bf16.msra.mxu0 %v845
    %2158 = vmatprep.subr.bf16.mxu0 0
    %2159 = vmatpush1.bf16.msra.mxu0 %v848
    %2160 = vmatprep.subr.bf16.mxu0 0
    %2161 = vmatpush1.bf16.msra.mxu0 %v851
    %2162 = vmatprep.subr.bf16.mxu0 0
    %2163 = vmatpush1.bf16.msra.mxu0 %v854
    %2164 = vmatprep.subr.bf16.mxu0 0
    %2165 = vmatpush1.bf16.msra.mxu0 %v857
    %2166 = vmatprep.subr.bf16.mxu0 0
    %2167 = vmatpush1.bf16.msra.mxu0 %v860
    %2168 = vmatprep.subr.bf16.mxu0 0
    %2169 = vmatpush1.bf16.msra.mxu0 %v863
    %2170 = vmatprep.subr.bf16.mxu0 0
    %2171 = vmatpush1.bf16.msra.mxu0 %v866
    %2172 = vmatprep.subr.bf16.mxu0 0
    %2173 = vmatpush1.bf16.msra.mxu0 0
    %2174 = vmatprep.subr.bf16.mxu0 0
    %2175 = vmatpush1.bf16.msra.mxu0 0
    %2176 = vmatprep.subr.bf16.mxu0 0
    %2177 = vmatpush1.bf16.msra.mxu0 0
    %2178 = vmatprep.subr.bf16.mxu0 0
    %2179 = vmatpush1.bf16.msra.mxu0 0
    %2180 = vmatprep.subr.bf16.mxu0 0
    %2181 = vmatpush1.bf16.msra.mxu0 0
    %2182 = vmatprep.subr.bf16.mxu0 0
    %2183 = vmatpush1.bf16.msra.mxu0 0
    %2184 = vmatprep.subr.bf16.mxu0 0
    %2185 = vmatpush1.bf16.msra.mxu0 0
    %2186 = vmatprep.subr.bf16.mxu0 0
    %2187 = vmatpush1.bf16.msra.mxu0 0
    %2188 = vmatprep.mubr.bf16.mxu0 0
    %2189 = vmatmul.mubr.bf16.gmra.mrb[0].mxu0 %v2032
    %v2190 = vpop.f32.mrb[0].mxu0
    %v2191 = vadd.f32 %v759, %v2190
    %v2192 = vpop.f32.mrb[0].mxu0
    %v2193 = vpop.f32.mrb[0].mxu0
    %v2194 = vpop.f32.mrb[0].mxu0
    %2195 = vdwg.mxu0
    %v2196 = vadd.f32 %v2150, %v2069
    %v2197 = vadd.f32 %v2152, %v2071
    %v2198 = vxor.u32 %v2196, 2147483648
    %v2199 = vxor.u32 %v2197, 2147483648
    %v2200 = vmul.f32 %v2198, 1.442695
    %v2201 = vpow.pop %v2200
    %v2202 = vmul.f32 %v2199, 1.442695
    %v2203 = vpow.pop %v2202
    %v2204 = vadd.f32 %v2201, 1.0
    %v2205 = vadd.f32 %v2203, 1.0
    %v2206 = vrcp.pop %v2204
    %v2207 = vmul.f32 1.0, %v2206
    %v2208 = vrcp.pop %v2205
    %v2209 = vmul.f32 1.0, %v2208
    %v2210 = vadd.f32 %v2110, %v992
    %v2211 = vmul.f32 %v2207, %v2210
    %v2212 = vadd.f32 %v2191, %v2211
    %v2213 = vtanh.pop %v2212
    %v2214 = vsub.f32 1.0, %v2209
    %v2215 = vmul.f32 %v2214, %v2213
    %v2216 = vmul.f32 %v2209, %v1922
    %v2217 = vadd.f32 %v2215, %v2216
    %2218 = vmatprep.subr.bf16.mxu0 %v310
    %2219 = vmatpush1.bf16.msra.mxu0 %v309
    %2220 = vmatprep.subr.bf16.mxu0 %v313
    %2221 = vmatpush1.bf16.msra.mxu0 %v312
    %2222 = vmatprep.subr.bf16.mxu0 %v316
    %2223 = vmatpush1.bf16.msra.mxu0 %v315
    %2224 = vmatprep.subr.bf16.mxu0 %v319
    %2225 = vmatpush1.bf16.msra.mxu0 %v318
    %2226 = vmatprep.subr.bf16.mxu0 %v322
    %2227 = vmatpush1.bf16.msra.mxu0 %v321
    %2228 = vmatprep.subr.bf16.mxu0 %v325
    %2229 = vmatpush1.bf16.msra.mxu0 %v324
    %2230 = vmatprep.subr.bf16.mxu0 %v328
    %2231 = vmatpush1.bf16.msra.mxu0 %v327
    %2232 = vmatprep.subr.bf16.mxu0 %v331
    %2233 = vmatpush1.bf16.msra.mxu0 %v330
    %2234 = vmatprep.subr.bf16.mxu0 0
    %2235 = vmatpush1.bf16.msra.mxu0 0
    %2236 = vmatprep.subr.bf16.mxu0 0
    %2237 = vmatpush1.bf16.msra.mxu0 0
    %2238 = vmatprep.subr.bf16.mxu0 0
    %2239 = vmatpush1.bf16.msra.mxu0 0
    %2240 = vmatprep.subr.bf16.mxu0 0
    %2241 = vmatpush1.bf16.msra.mxu0 0
    %2242 = vmatprep.subr.bf16.mxu0 0
    %2243 = vmatpush1.bf16.msra.mxu0 0
    %2244 = vmatprep.subr.bf16.mxu0 0
    %2245 = vmatpush1.bf16.msra.mxu0 0
    %2246 = vmatprep.subr.bf16.mxu0 0
    %2247 = vmatpush1.bf16.msra.mxu0 0
    %2248 = vmatprep.subr.bf16.mxu0 0
    %2249 = vmatpush1.bf16.msra.mxu0 0
    %2250 = vmatprep.mubr.bf16.mxu0 0
    %2251 = vmatmul.mubr.bf16.gmra.mrb[0].mxu0 %v2032
    %v2252 = vpop.f32.mrb[0].mxu0
    %v2253 = vadd.f32 0.0, %v2252
    %v2254 = vpop.f32.mrb[0].mxu0
    %v2255 = vadd.f32 0.0, %v2254
    %v2256 = vpop.f32.mrb[0].mxu0
    %v2257 = vpop.f32.mrb[0].mxu0
    %2258 = vdwg.mxu0
    %2259 = vmatprep.subr.bf16.mxu0 0
    %2260 = vmatpush1.bf16.msra.mxu0 %v311
    %2261 = vmatprep.subr.bf16.mxu0 0
    %2262 = vmatpush1.bf16.msra.mxu0 %v314
    %2263 = vmatprep.subr.bf16.mxu0 0
    %2264 = vmatpush1.bf16.msra.mxu0 %v317
    %2265 = vmatprep.subr.bf16.mxu0 0
    %2266 = vmatpush1.bf16.msra.mxu0 %v320
    %2267 = vmatprep.subr.bf16.mxu0 0
    %2268 = vmatpush1.bf16.msra.mxu0 %v323
    %2269 = vmatprep.subr.bf16.mxu0 0
    %2270 = vmatpush1.bf16.msra.mxu0 %v326
    %2271 = vmatprep.subr.bf16.mxu0 0
    %2272 = vmatpush1.bf16.msra.mxu0 %v329
    %2273 = vmatprep.subr.bf16.mxu0 0
    %2274 = vmatpush1.bf16.msra.mxu0 %v332
    %2275 = vmatprep.subr.bf16.mxu0 0
    %2276 = vmatpush1.bf16.msra.mxu0 0
    %2277 = vmatprep.subr.bf16.mxu0 0
    %2278 = vmatpush1.bf16.msra.mxu0 0
    %2279 = vmatprep.subr.bf16.mxu0 0
    %2280 = vmatpush1.bf16.msra.mxu0 0
    %2281 = vmatprep.subr.bf16.mxu0 0
    %2282 = vmatpush1.bf16.msra.mxu0 0
    %2283 = vmatprep.subr.bf16.mxu0 0
    %2284 = vmatpush1.bf16.msra.mxu0 0
    %2285 = vmatprep.subr.bf16.mxu0 0
    %2286 = vmatpush1.bf16.msra.mxu0 0
    %2287 = vmatprep.subr.bf16.mxu0 0
    %2288 = vmatpush1.bf16.msra.mxu0 0
    %2289 = vmatprep.subr.bf16.mxu0 0
    %2290 = vmatpush1.bf16.msra.mxu0 0
    %2291 = vmatprep.mubr.bf16.mxu0 0
    %2292 = vmatmul.mubr.bf16.gmra.mrb[0].mxu0 %v2032
    %v2293 = vpop.f32.mrb[0].mxu0
    %v2294 = vadd.f32 0.0, %v2293
    %v2295 = vpop.f32.mrb[0].mxu0
    %v2296 = vpop.f32.mrb[0].mxu0
    %v2297 = vpop.f32.mrb[0].mxu0
    %2298 = vdwg.mxu0
    %v2299 = vld [vmem:[#allocation2 + $0x18] sm:$0xc]
    %v2300 = vld [vmem:[#allocation2 + $0x20] sm:$0xc]
    %v2301 = vld [vmem:[#allocation2 + $0x28] sm:$0xc]
    %v2304 = vrot.slane %v2253, 6
    %v2305 = vrot.slane %v2255, 6
    %v2308 = vadd.f32 %v2299, %v2304
    %v2309 = vadd.f32 %v2300, %v2305
    %v2310 = vxor.u32 %v2308, 2147483648
    %v2311 = vxor.u32 %v2309, 2147483648
    %v2312 = vmul.f32 %v2310, 1.442695
    %v2313 = vpow.pop %v2312
    %v2314 = vmul.f32 %v2311, 1.442695
    %v2315 = vpow.pop %v2314
    %v2316 = vadd.f32 %v2313, 1.0
    %v2317 = vadd.f32 %v2315, 1.0
    %v2318 = vrcp.pop %v2316
    %v2319 = vmul.f32 1.0, %v2318
    %v2320 = vrcp.pop %v2317
    %v2321 = vmul.f32 1.0, %v2320
    %v2322 = vadd.f32 %v2294, %v460
    %v2324 = vrot.slane %v2322, 6
    %v2326 = vmul.f32 %v2319, %v2324
    %v2327 = vadd.f32 %v2301, %v2326
    %v2328 = vtanh.pop %v2327
    %v2329 = vsub.f32 1.0, %v2321
    %v2330 = vmul.f32 %v2329, %v2328
    %v2332 = vrot.slane %v2031, 6
    %v2334 = vmul.f32 %v2321, %v2332
    %v2335 = vadd.f32 %v2330, %v2334
    %v2336 = vpack.c.bf16 %v2335, %v2335
    %v2337 = vpack.c.bf16 %v2217, %v2217
    %2338 = vmatprep.subr.bf16.mxu0 %v585
    %2339 = vmatpush1.bf16.msra.mxu0 %v584
    %2340 = vmatprep.subr.bf16.mxu0 %v588
    %2341 = vmatpush1.bf16.msra.mxu0 %v587
    %2342 = vmatprep.subr.bf16.mxu0 %v591
    %2343 = vmatpush1.bf16.msra.mxu0 %v590
    %2344 = vmatprep.subr.bf16.mxu0 %v594
    %2345 = vmatpush1.bf16.msra.mxu0 %v593
    %2346 = vmatprep.subr.bf16.mxu0 %v597
    %2347 = vmatpush1.bf16.msra.mxu0 %v596
    %2348 = vmatprep.subr.bf16.mxu0 %v600
    %2349 = vmatpush1.bf16.msra.mxu0 %v599
    %2350 = vmatprep.subr.bf16.mxu0 %v603
    %2351 = vmatpush1.bf16.msra.mxu0 %v602
    %2352 = vmatprep.subr.bf16.mxu0 %v606
    %2353 = vmatpush1.bf16.msra.mxu0 %v605
    %2354 = vmatprep.subr.bf16.mxu0 0
    %2355 = vmatpush1.bf16.msra.mxu0 0
    %2356 = vmatprep.subr.bf16.mxu0 0
    %2357 = vmatpush1.bf16.msra.mxu0 0
    %2358 = vmatprep.subr.bf16.mxu0 0
    %2359 = vmatpush1.bf16.msra.mxu0 0
    %2360 = vmatprep.subr.bf16.mxu0 0
    %2361 = vmatpush1.bf16.msra.mxu0 0
    %2362 = vmatprep.subr.bf16.mxu0 0
    %2363 = vmatpush1.bf16.msra.mxu0 0
    %2364 = vmatprep.subr.bf16.mxu0 0
    %2365 = vmatpush1.bf16.msra.mxu0 0
    %2366 = vmatprep.subr.bf16.mxu0 0
    %2367 = vmatpush1.bf16.msra.mxu0 0
    %2368 = vmatprep.subr.bf16.mxu0 0
    %2369 = vmatpush1.bf16.msra.mxu0 0
    %2370 = vmatprep.mubr.bf16.mxu0 0
    %2371 = vmatmul.mubr.bf16.gmra.mrb[0].mxu0 %v2337
    %v2372 = vpop.f32.mrb[0].mxu0
    %v2373 = vadd.f32 0.0, %v2372
    %v2374 = vpop.f32.mrb[0].mxu0
    %v2375 = vadd.f32 0.0, %v2374
    %v2376 = vpop.f32.mrb[0].mxu0
    %v2377 = vpop.f32.mrb[0].mxu0
    %2378 = vdwg.mxu0
    %2379 = vmatprep.subr.bf16.mxu0 0
    %2380 = vmatpush1.bf16.msra.mxu0 %v586
    %2381 = vmatprep.subr.bf16.mxu0 0
    %2382 = vmatpush1.bf16.msra.mxu0 %v589
    %2383 = vmatprep.subr.bf16.mxu0 0
    %2384 = vmatpush1.bf16.msra.mxu0 %v592
    %2385 = vmatprep.subr.bf16.mxu0 0
    %2386 = vmatpush1.bf16.msra.mxu0 %v595
    %2387 = vmatprep.subr.bf16.mxu0 0
    %2388 = vmatpush1.bf16.msra.mxu0 %v598
    %2389 = vmatprep.subr.bf16.mxu0 0
    %2390 = vmatpush1.bf16.msra.mxu0 %v601
    %2391 = vmatprep.subr.bf16.mxu0 0
    %2392 = vmatpush1.bf16.msra.mxu0 %v604
    %2393 = vmatprep.subr.bf16.mxu0 0
    %2394 = vmatpush1.bf16.msra.mxu0 %v607
    %2395 = vmatprep.subr.bf16.mxu0 0
    %2396 = vmatpush1.bf16.msra.mxu0 0
    %2397 = vmatprep.subr.bf16.mxu0 0
    %2398 = vmatpush1.bf16.msra.mxu0 0
    %2399 = vmatprep.subr.bf16.mxu0 0
    %2400 = vmatpush1.bf16.msra.mxu0 0
    %2401 = vmatprep.subr.bf16.mxu0 0
    %2402 = vmatpush1.bf16.msra.mxu0 0
    %2403 = vmatprep.subr.bf16.mxu0 0
    %2404 = vmatpush1.bf16.msra.mxu0 0
    %2405 = vmatprep.subr.bf16.mxu0 0
    %2406 = vmatpush1.bf16.msra.mxu0 0
    %2407 = vmatprep.subr.bf16.mxu0 0
    %2408 = vmatpush1.bf16.msra.mxu0 0
    %2409 = vmatprep.subr.bf16.mxu0 0
    %2410 = vmatpush1.bf16.msra.mxu0 0
    %2411 = vmatprep.mubr.bf16.mxu0 0
    %2412 = vmatmul.mubr.bf16.gmra.mrb[0].mxu0 %v2337
    %v2413 = vpop.f32.mrb[0].mxu0
    %v2414 = vadd.f32 0.0, %v2413
    %v2415 = vpop.f32.mrb[0].mxu0
    %v2416 = vpop.f32.mrb[0].mxu0
    %v2417 = vpop.f32.mrb[0].mxu0
    %2418 = vdwg.mxu0
    %v2420 = vrot.slane %v2336, 1
    %2422 = vmatprep.subr.bf16.mxu0 %v844
    %2423 = vmatpush1.bf16.msra.mxu0 %v843
    %2424 = vmatprep.subr.bf16.mxu0 %v847
    %2425 = vmatpush1.bf16.msra.mxu0 %v846
    %2426 = vmatprep.subr.bf16.mxu0 %v850
    %2427 = vmatpush1.bf16.msra.mxu0 %v849
    %2428 = vmatprep.subr.bf16.mxu0 %v853
    %2429 = vmatpush1.bf16.msra.mxu0 %v852
    %2430 = vmatprep.subr.bf16.mxu0 %v856
    %2431 = vmatpush1.bf16.msra.mxu0 %v855
    %2432 = vmatprep.subr.bf16.mxu0 %v859
    %2433 = vmatpush1.bf16.msra.mxu0 %v858
    %2434 = vmatprep.subr.bf16.mxu0 %v862
    %2435 = vmatpush1.bf16.msra.mxu0 %v861
    %2436 = vmatprep.subr.bf16.mxu0 %v865
    %2437 = vmatpush1.bf16.msra.mxu0 %v864
    %2438 = vmatprep.subr.bf16.mxu0 0
    %2439 = vmatpush1.bf16.msra.mxu0 0
    %2440 = vmatprep.subr.bf16.mxu0 0
    %2441 = vmatpush1.bf16.msra.mxu0 0
    %2442 = vmatprep.subr.bf16.mxu0 0
    %2443 = vmatpush1.bf16.msra.mxu0 0
    %2444 = vmatprep.subr.bf16.mxu0 0
    %2445 = vmatpush1.bf16.msra.mxu0 0
    %2446 = vmatprep.subr.bf16.mxu0 0
    %2447 = vmatpush1.bf16.msra.mxu0 0
    %2448 = vmatprep.subr.bf16.mxu0 0
    %2449 = vmatpush1.bf16.msra.mxu0 0
    %2450 = vmatprep.subr.bf16.mxu0 0
    %2451 = vmatpush1.bf16.msra.mxu0 0
    %2452 = vmatprep.subr.bf16.mxu0 0
    %2453 = vmatpush1.bf16.msra.mxu0 0
    %2454 = vmatprep.mubr.bf16.mxu0 0
    %2455 = vmatmul.mubr.bf16.gmra.mrb[0].mxu0 %v2420
    %v2456 = vpop.f32.mrb[0].mxu0
    %v2457 = vadd.f32 %v751, %v2456
    %v2458 = vpop.f32.mrb[0].mxu0
    %v2459 = vadd.f32 %v755, %v2458
    %v2460 = vpop.f32.mrb[0].mxu0
    %v2461 = vpop.f32.mrb[0].mxu0
    %2462 = vdwg.mxu0
    %2463 = vmatprep.subr.bf16.mxu0 0
    %2464 = vmatpush1.bf16.msra.mxu0 %v845
    %2465 = vmatprep.subr.bf16.mxu0 0
    %2466 = vmatpush1.bf16.msra.mxu0 %v848
    %2467 = vmatprep.subr.bf16.mxu0 0
    %2468 = vmatpush1.bf16.msra.mxu0 %v851
    %2469 = vmatprep.subr.bf16.mxu0 0
    %2470 = vmatpush1.bf16.msra.mxu0 %v854
    %2471 = vmatprep.subr.bf16.mxu0 0
    %2472 = vmatpush1.bf16.msra.mxu0 %v857
    %2473 = vmatprep.subr.bf16.mxu0 0
    %2474 = vmatpush1.bf16.msra.mxu0 %v860
    %2475 = vmatprep.subr.bf16.mxu0 0
    %2476 = vmatpush1.bf16.msra.mxu0 %v863
    %2477 = vmatprep.subr.bf16.mxu0 0
    %2478 = vmatpush1.bf16.msra.mxu0 %v866
    %2479 = vmatprep.subr.bf16.mxu0 0
    %2480 = vmatpush1.bf16.msra.mxu0 0
    %2481 = vmatprep.subr.bf16.mxu0 0
    %2482 = vmatpush1.bf16.msra.mxu0 0
    %2483 = vmatprep.subr.bf16.mxu0 0
    %2484 = vmatpush1.bf16.msra.mxu0 0
    %2485 = vmatprep.subr.bf16.mxu0 0
    %2486 = vmatpush1.bf16.msra.mxu0 0
    %2487 = vmatprep.subr.bf16.mxu0 0
    %2488 = vmatpush1.bf16.msra.mxu0 0
    %2489 = vmatprep.subr.bf16.mxu0 0
    %2490 = vmatpush1.bf16.msra.mxu0 0
    %2491 = vmatprep.subr.bf16.mxu0 0
    %2492 = vmatpush1.bf16.msra.mxu0 0
    %2493 = vmatprep.subr.bf16.mxu0 0
    %2494 = vmatpush1.bf16.msra.mxu0 0
    %2495 = vmatprep.mubr.bf16.mxu0 0
    %2496 = vmatmul.mubr.bf16.gmra.mrb[0].mxu0 %v2420
    %v2497 = vpop.f32.mrb[0].mxu0
    %v2498 = vadd.f32 %v759, %v2497
    %v2499 = vpop.f32.mrb[0].mxu0
    %v2500 = vpop.f32.mrb[0].mxu0
    %v2501 = vpop.f32.mrb[0].mxu0
    %2502 = vdwg.mxu0
    %v2503 = vadd.f32 %v2457, %v2373
    %v2504 = vadd.f32 %v2459, %v2375
    %v2505 = vxor.u32 %v2503, 2147483648
    %v2506 = vxor.u32 %v2504, 2147483648
    %v2507 = vmul.f32 %v2505, 1.442695
    %v2508 = vpow.pop %v2507
    %v2509 = vmul.f32 %v2506, 1.442695
    %v2510 = vpow.pop %v2509
    %v2511 = vadd.f32 %v2508, 1.0
    %v2512 = vadd.f32 %v2510, 1.0
    %v2513 = vrcp.pop %v2511
    %v2514 = vmul.f32 1.0, %v2513
    %v2515 = vrcp.pop %v2512
    %v2516 = vmul.f32 1.0, %v2515
    %v2517 = vadd.f32 %v2414, %v992
    %v2518 = vmul.f32 %v2514, %v2517
    %v2519 = vadd.f32 %v2498, %v2518
    %v2520 = vtanh.pop %v2519
    %v2521 = vsub.f32 1.0, %v2516
    %v2522 = vmul.f32 %v2521, %v2520
    %v2523 = vmul.f32 %v2516, %v2217
    %v2524 = vadd.f32 %v2522, %v2523
    %2525 = vmatprep.subr.bf16.mxu0 %v310
    %2526 = vmatpush1.bf16.msra.mxu0 %v309
    %2527 = vmatprep.subr.bf16.mxu0 %v313
    %2528 = vmatpush1.bf16.msra.mxu0 %v312
    %2529 = vmatprep.subr.bf16.mxu0 %v316
    %2530 = vmatpush1.bf16.msra.mxu0 %v315
    %2531 = vmatprep.subr.bf16.mxu0 %v319
    %2532 = vmatpush1.bf16.msra.mxu0 %v318
    %2533 = vmatprep.subr.bf16.mxu0 %v322
    %2534 = vmatpush1.bf16.msra.mxu0 %v321
    %2535 = vmatprep.subr.bf16.mxu0 %v325
    %2536 = vmatpush1.bf16.msra.mxu0 %v324
    %2537 = vmatprep.subr.bf16.mxu0 %v328
    %2538 = vmatpush1.bf16.msra.mxu0 %v327
    %2539 = vmatprep.subr.bf16.mxu0 %v331
    %2540 = vmatpush1.bf16.msra.mxu0 %v330
    %2541 = vmatprep.subr.bf16.mxu0 0
    %2542 = vmatpush1.bf16.msra.mxu0 0
    %2543 = vmatprep.subr.bf16.mxu0 0
    %2544 = vmatpush1.bf16.msra.mxu0 0
    %2545 = vmatprep.subr.bf16.mxu0 0
    %2546 = vmatpush1.bf16.msra.mxu0 0
    %2547 = vmatprep.subr.bf16.mxu0 0
    %2548 = vmatpush1.bf16.msra.mxu0 0
    %2549 = vmatprep.subr.bf16.mxu0 0
    %2550 = vmatpush1.bf16.msra.mxu0 0
    %2551 = vmatprep.subr.bf16.mxu0 0
    %2552 = vmatpush1.bf16.msra.mxu0 0
    %2553 = vmatprep.subr.bf16.mxu0 0
    %2554 = vmatpush1.bf16.msra.mxu0 0
    %2555 = vmatprep.subr.bf16.mxu0 0
    %2556 = vmatpush1.bf16.msra.mxu0 0
    %2557 = vmatprep.mubr.bf16.mxu0 0
    %2558 = vmatmul.mubr.bf16.gmra.mrb[0].mxu0 %v2420
    %v2559 = vpop.f32.mrb[0].mxu0
    %v2560 = vadd.f32 0.0, %v2559
    %v2561 = vpop.f32.mrb[0].mxu0
    %v2562 = vadd.f32 0.0, %v2561
    %v2563 = vpop.f32.mrb[0].mxu0
    %v2564 = vpop.f32.mrb[0].mxu0
    %2565 = vdwg.mxu0
    %2566 = vmatprep.subr.bf16.mxu0 0
    %2567 = vmatpush1.bf16.msra.mxu0 %v311
    %2568 = vmatprep.subr.bf16.mxu0 0
    %2569 = vmatpush1.bf16.msra.mxu0 %v314
    %2570 = vmatprep.subr.bf16.mxu0 0
    %2571 = vmatpush1.bf16.msra.mxu0 %v317
    %2572 = vmatprep.subr.bf16.mxu0 0
    %2573 = vmatpush1.bf16.msra.mxu0 %v320
    %2574 = vmatprep.subr.bf16.mxu0 0
    %2575 = vmatpush1.bf16.msra.mxu0 %v323
    %2576 = vmatprep.subr.bf16.mxu0 0
    %2577 = vmatpush1.bf16.msra.mxu0 %v326
    %2578 = vmatprep.subr.bf16.mxu0 0
    %2579 = vmatpush1.bf16.msra.mxu0 %v329
    %2580 = vmatprep.subr.bf16.mxu0 0
    %2581 = vmatpush1.bf16.msra.mxu0 %v332
    %2582 = vmatprep.subr.bf16.mxu0 0
    %2583 = vmatpush1.bf16.msra.mxu0 0
    %2584 = vmatprep.subr.bf16.mxu0 0
    %2585 = vmatpush1.bf16.msra.mxu0 0
    %2586 = vmatprep.subr.bf16.mxu0 0
    %2587 = vmatpush1.bf16.msra.mxu0 0
    %2588 = vmatprep.subr.bf16.mxu0 0
    %2589 = vmatpush1.bf16.msra.mxu0 0
    %2590 = vmatprep.subr.bf16.mxu0 0
    %2591 = vmatpush1.bf16.msra.mxu0 0
    %2592 = vmatprep.subr.bf16.mxu0 0
    %2593 = vmatpush1.bf16.msra.mxu0 0
    %2594 = vmatprep.subr.bf16.mxu0 0
    %2595 = vmatpush1.bf16.msra.mxu0 0
    %2596 = vmatprep.subr.bf16.mxu0 0
    %2597 = vmatpush1.bf16.msra.mxu0 0
    %2598 = vmatprep.mubr.bf16.mxu0 0
    %2599 = vmatmul.mubr.bf16.gmra.mrb[0].mxu0 %v2420
    %v2600 = vpop.f32.mrb[0].mxu0
    %v2601 = vadd.f32 0.0, %v2600
    %v2602 = vpop.f32.mrb[0].mxu0
    %v2603 = vpop.f32.mrb[0].mxu0
    %v2604 = vpop.f32.mrb[0].mxu0
    %2605 = vdwg.mxu0
    %v2606 = vld [vmem:[#allocation2 + $0x18] sm:$0x30]
    %v2607 = vld [vmem:[#allocation2 + $0x20] sm:$0x30]
    %v2608 = vld [vmem:[#allocation2 + $0x28] sm:$0x30]
    %v2611 = vrot.slane %v2560, 4
    %v2612 = vrot.slane %v2562, 4
    %v2615 = vadd.f32 %v2606, %v2611
    %v2616 = vadd.f32 %v2607, %v2612
    %v2617 = vxor.u32 %v2615, 2147483648
    %v2618 = vxor.u32 %v2616, 2147483648
    %v2619 = vmul.f32 %v2617, 1.442695
    %v2620 = vpow.pop %v2619
    %v2621 = vmul.f32 %v2618, 1.442695
    %v2622 = vpow.pop %v2621
    %v2623 = vadd.f32 %v2620, 1.0
    %v2624 = vadd.f32 %v2622, 1.0
    %v2625 = vrcp.pop %v2623
    %v2626 = vmul.f32 1.0, %v2625
    %v2627 = vrcp.pop %v2624
    %v2628 = vmul.f32 1.0, %v2627
    %v2629 = vadd.f32 %v2601, %v460
    %v2631 = vrot.slane %v2629, 4
    %v2633 = vmul.f32 %v2626, %v2631
    %v2634 = vadd.f32 %v2608, %v2633
    %v2635 = vtanh.pop %v2634
    %v2636 = vsub.f32 1.0, %v2628
    %v2637 = vmul.f32 %v2636, %v2635
    %v2639 = vrot.slane %v2335, 6
    %v2641 = vmul.f32 %v2628, %v2639
    %v2642 = vadd.f32 %v2637, %v2641
    %v2643 = vpack.c.bf16 %v2642, %v2642
    %v2644 = vpack.c.bf16 %v2524, %v2524
    %2645 = vmatprep.subr.bf16.mxu0 %v585
    %2646 = vmatpush1.bf16.msra.mxu0 %v584
    %2647 = vmatprep.subr.bf16.mxu0 %v588
    %2648 = vmatpush1.bf16.msra.mxu0 %v587
    %2649 = vmatprep.subr.bf16.mxu0 %v591
    %2650 = vmatpush1.bf16.msra.mxu0 %v590
    %2651 = vmatprep.subr.bf16.mxu0 %v594
    %2652 = vmatpush1.bf16.msra.mxu0 %v593
    %2653 = vmatprep.subr.bf16.mxu0 %v597
    %2654 = vmatpush1.bf16.msra.mxu0 %v596
    %2655 = vmatprep.subr.bf16.mxu0 %v600
    %2656 = vmatpush1.bf16.msra.mxu0 %v599
    %2657 = vmatprep.subr.bf16.mxu0 %v603
    %2658 = vmatpush1.bf16.msra.mxu0 %v602
    %2659 = vmatprep.subr.bf16.mxu0 %v606
    %2660 = vmatpush1.bf16.msra.mxu0 %v605
    %2661 = vmatprep.subr.bf16.mxu0 0
    %2662 = vmatpush1.bf16.msra.mxu0 0
    %2663 = vmatprep.subr.bf16.mxu0 0
    %2664 = vmatpush1.bf16.msra.mxu0 0
    %2665 = vmatprep.subr.bf16.mxu0 0
    %2666 = vmatpush1.bf16.msra.mxu0 0
    %2667 = vmatprep.subr.bf16.mxu0 0
    %2668 = vmatpush1.bf16.msra.mxu0 0
    %2669 = vmatprep.subr.bf16.mxu0 0
    %2670 = vmatpush1.bf16.msra.mxu0 0
    %2671 = vmatprep.subr.bf16.mxu0 0
    %2672 = vmatpush1.bf16.msra.mxu0 0
    %2673 = vmatprep.subr.bf16.mxu0 0
    %2674 = vmatpush1.bf16.msra.mxu0 0
    %2675 = vmatprep.subr.bf16.mxu0 0
    %2676 = vmatpush1.bf16.msra.mxu0 0
    %2677 = vmatprep.mubr.bf16.mxu0 0
    %2678 = vmatmul.mubr.bf16.gmra.mrb[0].mxu0 %v2644
    %v2679 = vpop.f32.mrb[0].mxu0
    %v2680 = vadd.f32 0.0, %v2679
    %v2681 = vpop.f32.mrb[0].mxu0
    %v2682 = vadd.f32 0.0, %v2681
    %v2683 = vpop.f32.mrb[0].mxu0
    %v2684 = vpop.f32.mrb[0].mxu0
    %2685 = vdwg.mxu0
    %2686 = vmatprep.subr.bf16.mxu0 0
    %2687 = vmatpush1.bf16.msra.mxu0 %v586
    %2688 = vmatprep.subr.bf16.mxu0 0
    %2689 = vmatpush1.bf16.msra.mxu0 %v589
    %2690 = vmatprep.subr.bf16.mxu0 0
    %2691 = vmatpush1.bf16.msra.mxu0 %v592
    %2692 = vmatprep.subr.bf16.mxu0 0
    %2693 = vmatpush1.bf16.msra.mxu0 %v595
    %2694 = vmatprep.subr.bf16.mxu0 0
    %2695 = vmatpush1.bf16.msra.mxu0 %v598
    %2696 = vmatprep.subr.bf16.mxu0 0
    %2697 = vmatpush1.bf16.msra.mxu0 %v601
    %2698 = vmatprep.subr.bf16.mxu0 0
    %2699 = vmatpush1.bf16.msra.mxu0 %v604
    %2700 = vmatprep.subr.bf16.mxu0 0
    %2701 = vmatpush1.bf16.msra.mxu0 %v607
    %2702 = vmatprep.subr.bf16.mxu0 0
    %2703 = vmatpush1.bf16.msra.mxu0 0
    %2704 = vmatprep.subr.bf16.mxu0 0
    %2705 = vmatpush1.bf16.msra.mxu0 0
    %2706 = vmatprep.subr.bf16.mxu0 0
    %2707 = vmatpush1.bf16.msra.mxu0 0
    %2708 = vmatprep.subr.bf16.mxu0 0
    %2709 = vmatpush1.bf16.msra.mxu0 0
    %2710 = vmatprep.subr.bf16.mxu0 0
    %2711 = vmatpush1.bf16.msra.mxu0 0
    %2712 = vmatprep.subr.bf16.mxu0 0
    %2713 = vmatpush1.bf16.msra.mxu0 0
    %2714 = vmatprep.subr.bf16.mxu0 0
    %2715 = vmatpush1.bf16.msra.mxu0 0
    %2716 = vmatprep.subr.bf16.mxu0 0
    %2717 = vmatpush1.bf16.msra.mxu0 0
    %2718 = vmatprep.mubr.bf16.mxu0 0
    %2719 = vmatmul.mubr.bf16.gmra.mrb[0].mxu0 %v2644
    %v2720 = vpop.f32.mrb[0].mxu0
    %v2721 = vadd.f32 0.0, %v2720
    %v2722 = vpop.f32.mrb[0].mxu0
    %v2723 = vpop.f32.mrb[0].mxu0
    %v2724 = vpop.f32.mrb[0].mxu0
    %2725 = vdwg.mxu0
    %v2727 = vrot.slane %v2643, 2
    %2729 = vmatprep.subr.bf16.mxu0 %v844
    %2730 = vmatpush1.bf16.msra.mxu0 %v843
    %2731 = vmatprep.subr.bf16.mxu0 %v847
    %2732 = vmatpush1.bf16.msra.mxu0 %v846
    %2733 = vmatprep.subr.bf16.mxu0 %v850
    %2734 = vmatpush1.bf16.msra.mxu0 %v849
    %2735 = vmatprep.subr.bf16.mxu0 %v853
    %2736 = vmatpush1.bf16.msra.mxu0 %v852
    %2737 = vmatprep.subr.bf16.mxu0 %v856
    %2738 = vmatpush1.bf16.msra.mxu0 %v855
    %2739 = vmatprep.subr.bf16.mxu0 %v859
    %2740 = vmatpush1.bf16.msra.mxu0 %v858
    %2741 = vmatprep.subr.bf16.mxu0 %v862
    %2742 = vmatpush1.bf16.msra.mxu0 %v861
    %2743 = vmatprep.subr.bf16.mxu0 %v865
    %2744 = vmatpush1.bf16.msra.mxu0 %v864
    %2745 = vmatprep.subr.bf16.mxu0 0
    %2746 = vmatpush1.bf16.msra.mxu0 0
    %2747 = vmatprep.subr.bf16.mxu0 0
    %2748 = vmatpush1.bf16.msra.mxu0 0
    %2749 = vmatprep.subr.bf16.mxu0 0
    %2750 = vmatpush1.bf16.msra.mxu0 0
    %2751 = vmatprep.subr.bf16.mxu0 0
    %2752 = vmatpush1.bf16.msra.mxu0 0
    %2753 = vmatprep.subr.bf16.mxu0 0
    %2754 = vmatpush1.bf16.msra.mxu0 0
    %2755 = vmatprep.subr.bf16.mxu0 0
    %2756 = vmatpush1.bf16.msra.mxu0 0
    %2757 = vmatprep.subr.bf16.mxu0 0
    %2758 = vmatpush1.bf16.msra.mxu0 0
    %2759 = vmatprep.subr.bf16.mxu0 0
    %2760 = vmatpush1.bf16.msra.mxu0 0
    %2761 = vmatprep.mubr.bf16.mxu0 0
    %2762 = vmatmul.mubr.bf16.gmra.mrb[0].mxu0 %v2727
    %v2763 = vpop.f32.mrb[0].mxu0
    %v2764 = vadd.f32 %v751, %v2763
    %v2765 = vpop.f32.mrb[0].mxu0
    %v2766 = vadd.f32 %v755, %v2765
    %v2767 = vpop.f32.mrb[0].mxu0
    %v2768 = vpop.f32.mrb[0].mxu0
    %2769 = vdwg.mxu0
    %2770 = vmatprep.subr.bf16.mxu0 0
    %2771 = vmatpush1.bf16.msra.mxu0 %v845
    %2772 = vmatprep.subr.bf16.mxu0 0
    %2773 = vmatpush1.bf16.msra.mxu0 %v848
    %2774 = vmatprep.subr.bf16.mxu0 0
    %2775 = vmatpush1.bf16.msra.mxu0 %v851
    %2776 = vmatprep.subr.bf16.mxu0 0
    %2777 = vmatpush1.bf16.msra.mxu0 %v854
    %2778 = vmatprep.subr.bf16.mxu0 0
    %2779 = vmatpush1.bf16.msra.mxu0 %v857
    %2780 = vmatprep.subr.bf16.mxu0 0
    %2781 = vmatpush1.bf16.msra.mxu0 %v860
    %2782 = vmatprep.subr.bf16.mxu0 0
    %2783 = vmatpush1.bf16.msra.mxu0 %v863
    %2784 = vmatprep.subr.bf16.mxu0 0
    %2785 = vmatpush1.bf16.msra.mxu0 %v866
    %2786 = vmatprep.subr.bf16.mxu0 0
    %2787 = vmatpush1.bf16.msra.mxu0 0
    %2788 = vmatprep.subr.bf16.mxu0 0
    %2789 = vmatpush1.bf16.msra.mxu0 0
    %2790 = vmatprep.subr.bf16.mxu0 0
    %2791 = vmatpush1.bf16.msra.mxu0 0
    %2792 = vmatprep.subr.bf16.mxu0 0
    %2793 = vmatpush1.bf16.msra.mxu0 0
    %2794 = vmatprep.subr.bf16.mxu0 0
    %2795 = vmatpush1.bf16.msra.mxu0 0
    %2796 = vmatprep.subr.bf16.mxu0 0
    %2797 = vmatpush1.bf16.msra.mxu0 0
    %2798 = vmatprep.subr.bf16.mxu0 0
    %2799 = vmatpush1.bf16.msra.mxu0 0
    %2800 = vmatprep.subr.bf16.mxu0 0
    %2801 = vmatpush1.bf16.msra.mxu0 0
    %2802 = vmatprep.mubr.bf16.mxu0 0
    %2803 = vmatmul.mubr.bf16.gmra.mrb[0].mxu0 %v2727
    %v2804 = vpop.f32.mrb[0].mxu0
    %v2805 = vadd.f32 %v759, %v2804
    %v2806 = vpop.f32.mrb[0].mxu0
    %v2807 = vpop.f32.mrb[0].mxu0
    %v2808 = vpop.f32.mrb[0].mxu0
    %2809 = vdwg.mxu0
    %v2810 = vadd.f32 %v2764, %v2680
    %v2811 = vadd.f32 %v2766, %v2682
    %v2812 = vxor.u32 %v2810, 2147483648
    %v2813 = vxor.u32 %v2811, 2147483648
    %v2814 = vmul.f32 %v2812, 1.442695
    %v2815 = vpow.pop %v2814
    %v2816 = vmul.f32 %v2813, 1.442695
    %v2817 = vpow.pop %v2816
    %v2818 = vadd.f32 %v2815, 1.0
    %v2819 = vadd.f32 %v2817, 1.0
    %v2820 = vrcp.pop %v2818
    %v2821 = vmul.f32 1.0, %v2820
    %v2822 = vrcp.pop %v2819
    %v2823 = vmul.f32 1.0, %v2822
    %v2824 = vadd.f32 %v2721, %v992
    %v2825 = vmul.f32 %v2821, %v2824
    %v2826 = vadd.f32 %v2805, %v2825
    %v2827 = vtanh.pop %v2826
    %v2828 = vsub.f32 1.0, %v2823
    %v2829 = vmul.f32 %v2828, %v2827
    %v2830 = vmul.f32 %v2823, %v2524
    %v2831 = vadd.f32 %v2829, %v2830
    %2832 = vmatprep.subr.bf16.mxu0 %v310
    %2833 = vmatpush1.bf16.msra.mxu0 %v309
    %2834 = vmatprep.subr.bf16.mxu0 %v313
    %2835 = vmatpush1.bf16.msra.mxu0 %v312
    %2836 = vmatprep.subr.bf16.mxu0 %v316
    %2837 = vmatpush1.bf16.msra.mxu0 %v315
    %2838 = vmatprep.subr.bf16.mxu0 %v319
    %2839 = vmatpush1.bf16.msra.mxu0 %v318
    %2840 = vmatprep.subr.bf16.mxu0 %v322
    %2841 = vmatpush1.bf16.msra.mxu0 %v321
    %2842 = vmatprep.subr.bf16.mxu0 %v325
    %2843 = vmatpush1.bf16.msra.mxu0 %v324
    %2844 = vmatprep.subr.bf16.mxu0 %v328
    %2845 = vmatpush1.bf16.msra.mxu0 %v327
    %2846 = vmatprep.subr.bf16.mxu0 %v331
    %2847 = vmatpush1.bf16.msra.mxu0 %v330
    %2848 = vmatprep.subr.bf16.mxu0 0
    %2849 = vmatpush1.bf16.msra.mxu0 0
    %2850 = vmatprep.subr.bf16.mxu0 0
    %2851 = vmatpush1.bf16.msra.mxu0 0
    %2852 = vmatprep.subr.bf16.mxu0 0
    %2853 = vmatpush1.bf16.msra.mxu0 0
    %2854 = vmatprep.subr.bf16.mxu0 0
    %2855 = vmatpush1.bf16.msra.mxu0 0
    %2856 = vmatprep.subr.bf16.mxu0 0
    %2857 = vmatpush1.bf16.msra.mxu0 0
    %2858 = vmatprep.subr.bf16.mxu0 0
    %2859 = vmatpush1.bf16.msra.mxu0 0
    %2860 = vmatprep.subr.bf16.mxu0 0
    %2861 = vmatpush1.bf16.msra.mxu0 0
    %2862 = vmatprep.subr.bf16.mxu0 0
    %2863 = vmatpush1.bf16.msra.mxu0 0
    %2864 = vmatprep.mubr.bf16.mxu0 0
    %2865 = vmatmul.mubr.bf16.gmra.mrb[0].mxu0 %v2727
    %v2866 = vpop.f32.mrb[0].mxu0
    %v2867 = vadd.f32 0.0, %v2866
    %v2868 = vpop.f32.mrb[0].mxu0
    %v2869 = vadd.f32 0.0, %v2868
    %v2870 = vpop.f32.mrb[0].mxu0
    %v2871 = vpop.f32.mrb[0].mxu0
    %2872 = vdwg.mxu0
    %2873 = vmatprep.subr.bf16.mxu0 0
    %2874 = vmatpush1.bf16.msra.mxu0 %v311
    %2875 = vmatprep.subr.bf16.mxu0 0
    %2876 = vmatpush1.bf16.msra.mxu0 %v314
    %2877 = vmatprep.subr.bf16.mxu0 0
    %2878 = vmatpush1.bf16.msra.mxu0 %v317
    %2879 = vmatprep.subr.bf16.mxu0 0
    %2880 = vmatpush1.bf16.msra.mxu0 %v320
    %2881 = vmatprep.subr.bf16.mxu0 0
    %2882 = vmatpush1.bf16.msra.mxu0 %v323
    %2883 = vmatprep.subr.bf16.mxu0 0
    %2884 = vmatpush1.bf16.msra.mxu0 %v326
    %2885 = vmatprep.subr.bf16.mxu0 0
    %2886 = vmatpush1.bf16.msra.mxu0 %v329
    %2887 = vmatprep.subr.bf16.mxu0 0
    %2888 = vmatpush1.bf16.msra.mxu0 %v332
    %2889 = vmatprep.subr.bf16.mxu0 0
    %2890 = vmatpush1.bf16.msra.mxu0 0
    %2891 = vmatprep.subr.bf16.mxu0 0
    %2892 = vmatpush1.bf16.msra.mxu0 0
    %2893 = vmatprep.subr.bf16.mxu0 0
    %2894 = vmatpush1.bf16.msra.mxu0 0
    %2895 = vmatprep.subr.bf16.mxu0 0
    %2896 = vmatpush1.bf16.msra.mxu0 0
    %2897 = vmatprep.subr.bf16.mxu0 0
    %2898 = vmatpush1.bf16.msra.mxu0 0
    %2899 = vmatprep.subr.bf16.mxu0 0
    %2900 = vmatpush1.bf16.msra.mxu0 0
    %2901 = vmatprep.subr.bf16.mxu0 0
    %2902 = vmatpush1.bf16.msra.mxu0 0
    %2903 = vmatprep.subr.bf16.mxu0 0
    %2904 = vmatpush1.bf16.msra.mxu0 0
    %2905 = vmatprep.mubr.bf16.mxu0 0
    %2906 = vmatmul.mubr.bf16.gmra.mrb[0].mxu0 %v2727
    %v2907 = vpop.f32.mrb[0].mxu0
    %v2908 = vadd.f32 0.0, %v2907
    %v2909 = vpop.f32.mrb[0].mxu0
    %v2910 = vpop.f32.mrb[0].mxu0
    %v2911 = vpop.f32.mrb[0].mxu0
    %2912 = vdwg.mxu0
    %v2913 = vld [vmem:[#allocation2 + $0x18] sm:$0xc0]
    %v2914 = vld [vmem:[#allocation2 + $0x20] sm:$0xc0]
    %v2915 = vld [vmem:[#allocation2 + $0x28] sm:$0xc0]
    %v2918 = vrot.slane %v2867, 2
    %v2919 = vrot.slane %v2869, 2
    %v2922 = vadd.f32 %v2913, %v2918
    %v2923 = vadd.f32 %v2914, %v2919
    %v2924 = vxor.u32 %v2922, 2147483648
    %v2925 = vxor.u32 %v2923, 2147483648
    %v2926 = vmul.f32 %v2924, 1.442695
    %v2927 = vpow.pop %v2926
    %v2928 = vmul.f32 %v2925, 1.442695
    %v2929 = vpow.pop %v2928
    %v2930 = vadd.f32 %v2927, 1.0
    %v2931 = vadd.f32 %v2929, 1.0
    %v2932 = vrcp.pop %v2930
    %v2933 = vmul.f32 1.0, %v2932
    %v2934 = vrcp.pop %v2931
    %v2935 = vmul.f32 1.0, %v2934
    %v2936 = vadd.f32 %v2908, %v460
    %v2938 = vrot.slane %v2936, 2
    %v2940 = vmul.f32 %v2933, %v2938
    %v2941 = vadd.f32 %v2915, %v2940
    %v2942 = vtanh.pop %v2941
    %v2943 = vsub.f32 1.0, %v2935
    %v2944 = vmul.f32 %v2943, %v2942
    %v2946 = vrot.slane %v2642, 6
    %v2948 = vmul.f32 %v2935, %v2946
    %v2949 = vadd.f32 %v2944, %v2948
    %v2950 = vpack.c.bf16 %v2949, %v2949
    %v2951 = vpack.c.bf16 %v2831, %v2831
    %2952 = vmatprep.subr.bf16.mxu0 %v585
    %2953 = vmatpush1.bf16.msra.mxu0 %v584
    %2954 = vmatprep.subr.bf16.mxu0 %v588
    %2955 = vmatpush1.bf16.msra.mxu0 %v587
    %2956 = vmatprep.subr.bf16.mxu0 %v591
    %2957 = vmatpush1.bf16.msra.mxu0 %v590
    %2958 = vmatprep.subr.bf16.mxu0 %v594
    %2959 = vmatpush1.bf16.msra.mxu0 %v593
    %2960 = vmatprep.subr.bf16.mxu0 %v597
    %2961 = vmatpush1.bf16.msra.mxu0 %v596
    %2962 = vmatprep.subr.bf16.mxu0 %v600
    %2963 = vmatpush1.bf16.msra.mxu0 %v599
    %2964 = vmatprep.subr.bf16.mxu0 %v603
    %2965 = vmatpush1.bf16.msra.mxu0 %v602
    %2966 = vmatprep.subr.bf16.mxu0 %v606
    %2967 = vmatpush1.bf16.msra.mxu0 %v605
    %2968 = vmatprep.subr.bf16.mxu0 0
    %2969 = vmatpush1.bf16.msra.mxu0 0
    %2970 = vmatprep.subr.bf16.mxu0 0
    %2971 = vmatpush1.bf16.msra.mxu0 0
    %2972 = vmatprep.subr.bf16.mxu0 0
    %2973 = vmatpush1.bf16.msra.mxu0 0
    %2974 = vmatprep.subr.bf16.mxu0 0
    %2975 = vmatpush1.bf16.msra.mxu0 0
    %2976 = vmatprep.subr.bf16.mxu0 0
    %2977 = vmatpush1.bf16.msra.mxu0 0
    %2978 = vmatprep.subr.bf16.mxu0 0
    %2979 = vmatpush1.bf16.msra.mxu0 0
    %2980 = vmatprep.subr.bf16.mxu0 0
    %2981 = vmatpush1.bf16.msra.mxu0 0
    %2982 = vmatprep.subr.bf16.mxu0 0
    %2983 = vmatpush1.bf16.msra.mxu0 0
    %2984 = vmatprep.mubr.bf16.mxu0 0
    %2985 = vmatmul.mubr.bf16.gmra.mrb[0].mxu0 %v2951
    %v2986 = vpop.f32.mrb[0].mxu0
    %v2987 = vadd.f32 0.0, %v2986
    %v2988 = vpop.f32.mrb[0].mxu0
    %v2989 = vadd.f32 0.0, %v2988
    %v2990 = vpop.f32.mrb[0].mxu0
    %v2991 = vpop.f32.mrb[0].mxu0
    %2992 = vdwg.mxu0
    %2993 = vmatprep.subr.bf16.mxu0 0
    %2994 = vmatpush1.bf16.msra.mxu0 %v586
    %2995 = vmatprep.subr.bf16.mxu0 0
    %2996 = vmatpush1.bf16.msra.mxu0 %v589
    %2997 = vmatprep.subr.bf16.mxu0 0
    %2998 = vmatpush1.bf16.msra.mxu0 %v592
    %2999 = vmatprep.subr.bf16.mxu0 0
    %3000 = vmatpush1.bf16.msra.mxu0 %v595
    %3001 = vmatprep.subr.bf16.mxu0 0
    %3002 = vmatpush1.bf16.msra.mxu0 %v598
    %3003 = vmatprep.subr.bf16.mxu0 0
    %3004 = vmatpush1.bf16.msra.mxu0 %v601
    %3005 = vmatprep.subr.bf16.mxu0 0
    %3006 = vmatpush1.bf16.msra.mxu0 %v604
    %3007 = vmatprep.subr.bf16.mxu0 0
    %3008 = vmatpush1.bf16.msra.mxu0 %v607
    %3009 = vmatprep.subr.bf16.mxu0 0
    %3010 = vmatpush1.bf16.msra.mxu0 0
    %3011 = vmatprep.subr.bf16.mxu0 0
    %3012 = vmatpush1.bf16.msra.mxu0 0
    %3013 = vmatprep.subr.bf16.mxu0 0
    %3014 = vmatpush1.bf16.msra.mxu0 0
    %3015 = vmatprep.subr.bf16.mxu0 0
    %3016 = vmatpush1.bf16.msra.mxu0 0
    %3017 = vmatprep.subr.bf16.mxu0 0
    %3018 = vmatpush1.bf16.msra.mxu0 0
    %3019 = vmatprep.subr.bf16.mxu0 0
    %3020 = vmatpush1.bf16.msra.mxu0 0
    %3021 = vmatprep.subr.bf16.mxu0 0
    %3022 = vmatpush1.bf16.msra.mxu0 0
    %3023 = vmatprep.subr.bf16.mxu0 0
    %3024 = vmatpush1.bf16.msra.mxu0 0
    %3025 = vmatprep.mubr.bf16.mxu0 0
    %3026 = vmatmul.mubr.bf16.gmra.mrb[0].mxu0 %v2951
    %v3027 = vpop.f32.mrb[0].mxu0
    %v3028 = vadd.f32 0.0, %v3027
    %v3029 = vpop.f32.mrb[0].mxu0
    %v3030 = vpop.f32.mrb[0].mxu0
    %v3031 = vpop.f32.mrb[0].mxu0
    %3032 = vdwg.mxu0
    %v3034 = vrot.slane %v2950, 3
    %3036 = vmatprep.subr.bf16.mxu0 %v844
    %3037 = vmatpush1.bf16.msra.mxu0 %v843
    %3038 = vmatprep.subr.bf16.mxu0 %v847
    %3039 = vmatpush1.bf16.msra.mxu0 %v846
    %3040 = vmatprep.subr.bf16.mxu0 %v850
    %3041 = vmatpush1.bf16.msra.mxu0 %v849
    %3042 = vmatprep.subr.bf16.mxu0 %v853
    %3043 = vmatpush1.bf16.msra.mxu0 %v852
    %3044 = vmatprep.subr.bf16.mxu0 %v856
    %3045 = vmatpush1.bf16.msra.mxu0 %v855
    %3046 = vmatprep.subr.bf16.mxu0 %v859
    %3047 = vmatpush1.bf16.msra.mxu0 %v858
    %3048 = vmatprep.subr.bf16.mxu0 %v862
    %3049 = vmatpush1.bf16.msra.mxu0 %v861
    %3050 = vmatprep.subr.bf16.mxu0 %v865
    %3051 = vmatpush1.bf16.msra.mxu0 %v864
    %3052 = vmatprep.subr.bf16.mxu0 0
    %3053 = vmatpush1.bf16.msra.mxu0 0
    %3054 = vmatprep.subr.bf16.mxu0 0
    %3055 = vmatpush1.bf16.msra.mxu0 0
    %3056 = vmatprep.subr.bf16.mxu0 0
    %3057 = vmatpush1.bf16.msra.mxu0 0
    %3058 = vmatprep.subr.bf16.mxu0 0
    %3059 = vmatpush1.bf16.msra.mxu0 0
    %3060 = vmatprep.subr.bf16.mxu0 0
    %3061 = vmatpush1.bf16.msra.mxu0 0
    %3062 = vmatprep.subr.bf16.mxu0 0
    %3063 = vmatpush1.bf16.msra.mxu0 0
    %3064 = vmatprep.subr.bf16.mxu0 0
    %3065 = vmatpush1.bf16.msra.mxu0 0
    %3066 = vmatprep.subr.bf16.mxu0 0
    %3067 = vmatpush1.bf16.msra.mxu0 0
    %3068 = vmatprep.mubr.bf16.mxu0 0
    %3069 = vmatmul.mubr.bf16.gmra.mrb[0].mxu0 %v3034
    %v3070 = vpop.f32.mrb[0].mxu0
    %v3071 = vadd.f32 %v751, %v3070
    %v3072 = vpop.f32.mrb[0].mxu0
    %v3073 = vadd.f32 %v755, %v3072
    %v3074 = vpop.f32.mrb[0].mxu0
    %v3075 = vpop.f32.mrb[0].mxu0
    %3076 = vdwg.mxu0
    %3077 = vmatprep.subr.bf16.mxu0 0
    %3078 = vmatpush1.bf16.msra.mxu0 %v845
    %3079 = vmatprep.subr.bf16.mxu0 0
    %3080 = vmatpush1.bf16.msra.mxu0 %v848
    %3081 = vmatprep.subr.bf16.mxu0 0
    %3082 = vmatpush1.bf16.msra.mxu0 %v851
    %3083 = vmatprep.subr.bf16.mxu0 0
    %3084 = vmatpush1.bf16.msra.mxu0 %v854
    %3085 = vmatprep.subr.bf16.mxu0 0
    %3086 = vmatpush1.bf16.msra.mxu0 %v857
    %3087 = vmatprep.subr.bf16.mxu0 0
    %3088 = vmatpush1.bf16.msra.mxu0 %v860
    %3089 = vmatprep.subr.bf16.mxu0 0
    %3090 = vmatpush1.bf16.msra.mxu0 %v863
    %3091 = vmatprep.subr.bf16.mxu0 0
    %3092 = vmatpush1.bf16.msra.mxu0 %v866
    %3093 = vmatprep.subr.bf16.mxu0 0
    %3094 = vmatpush1.bf16.msra.mxu0 0
    %3095 = vmatprep.subr.bf16.mxu0 0
    %3096 = vmatpush1.bf16.msra.mxu0 0
    %3097 = vmatprep.subr.bf16.mxu0 0
    %3098 = vmatpush1.bf16.msra.mxu0 0
    %3099 = vmatprep.subr.bf16.mxu0 0
    %3100 = vmatpush1.bf16.msra.mxu0 0
    %3101 = vmatprep.subr.bf16.mxu0 0
    %3102 = vmatpush1.bf16.msra.mxu0 0
    %3103 = vmatprep.subr.bf16.mxu0 0
    %3104 = vmatpush1.bf16.msra.mxu0 0
    %3105 = vmatprep.subr.bf16.mxu0 0
    %3106 = vmatpush1.bf16.msra.mxu0 0
    %3107 = vmatprep.subr.bf16.mxu0 0
    %3108 = vmatpush1.bf16.msra.mxu0 0
    %3109 = vmatprep.mubr.bf16.mxu0 0
    %3110 = vmatmul.mubr.bf16.gmra.mrb[0].mxu0 %v3034
    %v3111 = vpop.f32.mrb[0].mxu0
    %v3112 = vadd.f32 %v759, %v3111
    %v3113 = vpop.f32.mrb[0].mxu0
    %v3114 = vpop.f32.mrb[0].mxu0
    %v3115 = vpop.f32.mrb[0].mxu0
    %3116 = vdwg.mxu0
    %v3117 = vadd.f32 %v3071, %v2987
    %v3118 = vadd.f32 %v3073, %v2989
    %v3119 = vxor.u32 %v3117, 2147483648
    %v3120 = vxor.u32 %v3118, 2147483648
    %v3121 = vmul.f32 %v3119, 1.442695
    %v3122 = vpow.pop %v3121
    %v3123 = vmul.f32 %v3120, 1.442695
    %v3124 = vpow.pop %v3123
    %v3125 = vadd.f32 %v3122, 1.0
    %v3126 = vadd.f32 %v3124, 1.0
    %v3127 = vrcp.pop %v3125
    %v3128 = vmul.f32 1.0, %v3127
    %v3129 = vrcp.pop %v3126
    %v3130 = vmul.f32 1.0, %v3129
    %v3131 = vadd.f32 %v3028, %v992
    %v3132 = vmul.f32 %v3128, %v3131
    %v3133 = vadd.f32 %v3112, %v3132
    %v3134 = vtanh.pop %v3133
    %v3135 = vsub.f32 1.0, %v3130
    %v3136 = vmul.f32 %v3135, %v3134
    %v3137 = vmul.f32 %v3130, %v2831
    %v3138 = vadd.f32 %v3136, %v3137
    %v3139 = vld [vmem:[%s6] sm:$0xff]
    %v3140 = vld [vmem:[%s6 + $0x8] sm:$0xff]
    %v3141 = vld [vmem:[%s6 + $0x10] sm:$0xff]
    %v3142 = vld [vmem:[%s6 + $0x18] sm:$0xff]
    %v3143 = vld [vmem:[%s6 + $0x20] sm:$0xff]
    %v3144 = vld [vmem:[%s6 + $0x28] sm:$0xff]
    %v3145 = vld [vmem:[%s6 + $0x30] sm:$0xff]
    %v3146 = vld [vmem:[%s6 + $0x38] sm:$0xff]
    %v3147 = vld [vmem:[%s6 + $0x40] sm:$0xff]
    %v3148 = vld [vmem:[%s6 + $0x48] sm:$0xff]
    %v3149 = vld [vmem:[%s6 + $0x50] sm:$0xff]
    %v3150 = vld [vmem:[%s6 + $0x58] sm:$0xff]
    %v3151 = vld [vmem:[%s6 + $0x60] sm:$0xff]
    %v3152 = vld [vmem:[%s6 + $0x68] sm:$0xff]
    %v3153 = vld [vmem:[%s6 + $0x70] sm:$0xff]
    %v3154 = vld [vmem:[%s6 + $0x78] sm:$0xff]
    %v3155 = vld [vmem:[%s7] sm:$0x1]
    %v3157 = vlaneseq
    %v3158 = vshrl.u32 %v3157, 7
    %v3159 = vsub.s32 0, %v3158
    %v3160 = vrot.slane %v3155, %v3159
    %3162 = vmatprep.subr.mxu0 0.0
    %3163 = vmatpush1.msra.mxu0 %v3139
    %3164 = vmatprep.subr.mxu0 0.0
    %3165 = vmatpush1.msra.mxu0 %v3140
    %3166 = vmatprep.subr.mxu0 0.0
    %3167 = vmatpush1.msra.mxu0 %v3141
    %3168 = vmatprep.subr.mxu0 0.0
    %3169 = vmatpush1.msra.mxu0 %v3142
    %3170 = vmatprep.subr.mxu0 0.0
    %3171 = vmatpush1.msra.mxu0 %v3143
    %3172 = vmatprep.subr.mxu0 0.0
    %3173 = vmatpush1.msra.mxu0 %v3144
    %3174 = vmatprep.subr.mxu0 0.0
    %3175 = vmatpush1.msra.mxu0 %v3145
    %3176 = vmatprep.subr.mxu0 0.0
    %3177 = vmatpush1.msra.mxu0 %v3146
    %3178 = vmatprep.subr.mxu0 0.0
    %3179 = vmatpush1.msra.mxu0 %v3147
    %3180 = vmatprep.subr.mxu0 0.0
    %3181 = vmatpush1.msra.mxu0 %v3148
    %3182 = vmatprep.subr.mxu0 0.0
    %3183 = vmatpush1.msra.mxu0 %v3149
    %3184 = vmatprep.subr.mxu0 0.0
    %3185 = vmatpush1.msra.mxu0 %v3150
    %3186 = vmatprep.subr.mxu0 0.0
    %3187 = vmatpush1.msra.mxu0 %v3151
    %3188 = vmatprep.subr.mxu0 0.0
    %3189 = vmatpush1.msra.mxu0 %v3152
    %3190 = vmatprep.subr.mxu0 0.0
    %3191 = vmatpush1.msra.mxu0 %v3153
    %3192 = vmatprep.subr.mxu0 0.0
    %3193 = vmatpush1.msra.mxu0 %v3154
    %3194 = vmatprep.subr.mxu0 0.0
    %3195 = vmatpush1.msra.mxu0 0.0
    %3196 = vmatprep.subr.mxu0 0.0
    %3197 = vmatpush1.msra.mxu0 0.0
    %3198 = vmatprep.subr.mxu0 0.0
    %3199 = vmatpush1.msra.mxu0 0.0
    %3200 = vmatprep.subr.mxu0 0.0
    %3201 = vmatpush1.msra.mxu0 0.0
    %3202 = vmatprep.subr.mxu0 0.0
    %3203 = vmatpush1.msra.mxu0 0.0
    %3204 = vmatprep.subr.mxu0 0.0
    %3205 = vmatpush1.msra.mxu0 0.0
    %3206 = vmatprep.subr.mxu0 0.0
    %3207 = vmatpush1.msra.mxu0 0.0
    %3208 = vmatprep.subr.mxu0 0.0
    %3209 = vmatpush1.msra.mxu0 0.0
    %3210 = vmatprep.subr.mxu0 0.0
    %3211 = vmatpush1.msra.mxu0 0.0
    %3212 = vmatprep.subr.mxu0 0.0
    %3213 = vmatpush1.msra.mxu0 0.0
    %3214 = vmatprep.subr.mxu0 0.0
    %3215 = vmatpush1.msra.mxu0 0.0
    %3216 = vmatprep.subr.mxu0 0.0
    %3217 = vmatpush1.msra.mxu0 0.0
    %3218 = vmatprep.subr.mxu0 0.0
    %3219 = vmatpush1.msra.mxu0 0.0
    %3220 = vmatprep.subr.mxu0 0.0
    %3221 = vmatpush1.msra.mxu0 0.0
    %3222 = vmatprep.subr.mxu0 0.0
    %3223 = vmatpush1.msra.mxu0 0.0
    %3224 = vmatprep.subr.mxu0 0.0
    %3225 = vmatpush1.msra.mxu0 0.0
    %3226 = vmatprep.mubr.f32.mxu0 0.0
    %3227 = vmatmul.mubr.f32.gmra.mrb[0].mxu0 %v3138
    %v3228 = vpop.f32.mrb[0].mxu0
    %v3229 = vadd.f32 %v3160, %v3228
    %v3230 = vpop.f32.mrb[0].mxu0
    %3231 = vdwg.mxu0
    %v3232 = vtanh.pop %v3229
    %vm3233 = vcmask 9216
    %3234 = vst.msk [vmem:[#allocation8] sm:$0x3] %vm3233, %v3232
    // Predicated region
    $region42: #{tpu_custom_call.1} parent=1 // pred_check
      _
    $region43: #{tpu_custom_call.1} parent=1 // pred_check_branch
      %3236 = sbr.rel (0) target = $region45
    $region44: #{tpu_custom_call.1} parent=1 // pred_region
      %s3238 = ssub.s32 32, 32
      %3239 = vsyncadd [#allocation5], %s3238
      %s3241 = sshll.u32 [#allocation8], 4
      %s3242 = int_to_ptr.vmem [resolvable:$true] %s3241
      %3244 = dma.vmem_to_hbm [thread:$0]  %s3242, 32, %s8, [#allocation5]
    $region45: #{tpu_custom_call.1} parent=1 // pred_fallthru
      _
    // Predicated region
    $region46: #{tpu_custom_call.1} parent=1 // pred_check
      _
    $region47: #{tpu_custom_call.1} parent=1 // pred_check_branch
      %3246 = sbr.rel (0) target = $region49
    $region48: #{tpu_custom_call.1} parent=1 // pred_region
      %3247 = dma.done [#allocation5], 32
    $region49: #{tpu_custom_call.1} parent=1 // pred_fallthru
      _
    %3248 = vsyncpa [#allocation4], 1
    %3249 = vsyncpa [#allocation7], 1
    %3250 = vsyncpa [#allocation5], 1

</llo_original>
